<compile_context>
chip_gen: v7x
topology: tpu7x:2x2x1
jax: 0.10.0
libtpu: 0.0.40
codegen_flags: <defaults>
</compile_context>

<pallas_src>
import functools
import math

import jax
import jax.numpy as jnp
from jax.experimental import pallas as pl
from jax.experimental.pallas import tpu as pltpu


# ----------------------------------------------------------------------------
# Pallas kernel: one batch image per grid step, lane-chunked inside.
# ----------------------------------------------------------------------------
def _aeg_conv_kernel(parity_ref, x_ref, aegw_ref, convw_ref, bias_ref, out_ref,
                     *, C_in, OC, K, Wp, OUT_LP, LC, HALO):
    KK = K * K
    bias = bias_ref[...]                                   # (OC, 1)

    for ci in range(OUT_LP // LC):                         # lane-chunked slabs
        c0 = ci * LC
        par = parity_ref[:, :, pl.ds(c0, LC)]              # (1, 1, LC) int32
        m_even = par == 0
        m_odd = par != 0

        # One aligned window load per chunk; every tap below is a static
        # in-register shifted slice of it (the in-kernel "unfold").
        x_win = x_ref[:, pl.ds(c0, LC + HALO)]             # (C_in, LC + HALO)

        result = jnp.zeros((C_in, OC, LC), jnp.float32)
        conv = jnp.zeros((OC, LC), jnp.float32)
        for k in range(KK):                                # static taps
            kh, kw = divmod(k, K)
            s = kh * Wp + kw                               # static lane shift
            xk = x_win[:, s:s + LC]                        # (C_in, LC)
            x_b = xk[:, None, :]                           # (C_in, 1, LC)
            y_b = aegw_ref[k]                              # (C_in, OC, 1)
            m = m_even if (k % 2 == 0) else m_odd          # checkerboard flip
            sel_a = jnp.where(m, x_b, y_b)                 # (C_in, OC, LC)
            sel_b = jnp.where(m, y_b, x_b)
            result = (result + sel_a) * sel_b              # 2 sel + add + mul
            # Standard-conv contribution of this tap on the MXU.
            conv = conv + jnp.dot(convw_ref[k], xk,
                                  preferred_element_type=jnp.float32)

        aeg = jnp.sum(result, axis=0)                      # (OC, LC): slab adds
        out_ref[:, pl.ds(c0, LC)] = jax.nn.sigmoid(aeg) * (conv + bias)


# ----------------------------------------------------------------------------
# Wrapper: pad + flatten input, re-layout weights, pallas_call, slice output.
# ----------------------------------------------------------------------------
def _round_up(v, m):
    return ((v + m - 1) // m) * m


def aeg_conv2d_forward(x, aeg_weight, conv_weight, conv_bias,
                       stride=1, padding=0):
    """x: (N, C_in, H, W); aeg_weight/conv_weight: (OC, C_in, K, K);
       conv_bias: (OC,). Returns (N, OC, OH, OW)."""
    N, C_in, H, W = x.shape
    OC, _, K, _ = aeg_weight.shape
    KK = K * K
    OH = (H - K + 2 * padding) // stride + 1
    OW = (W - K + 2 * padding) // stride + 1
    Hp, Wp = H + 2 * padding, W + 2 * padding

    xf = x.astype(jnp.float32)
    if padding > 0:
        xf = jnp.pad(xf, ((0, 0), (0, 0),
                          (padding, padding), (padding, padding)))
    flat = Hp * Wp

    # Lane extents (all multiples of 128 -> unmasked, aligned vector memory ops)
    OUT_LP = _round_up(flat, 128)                    # lanes the kernel writes
    max_shift = (K - 1) * Wp + (K - 1)               # largest tap lane-offset
    HALO = _round_up(max_shift, 128) if max_shift > 0 else 0
    IN_LP = OUT_LP + HALO                            # input lanes incl. halo
    LC = 256 if OUT_LP % 256 == 0 else 128           # lane-chunk size

    x_flat = jnp.pad(xf.reshape(N, C_in, flat),
                     ((0, 0), (0, 0), (0, IN_LP - flat)))   # (N, C_in, IN_LP)

    # AEG weight -> (KK, C_in, OC, 1): per-tap leading-axis load, broadcasts
    # against (C_in, 1, LC) with no in-kernel transpose.
    aegw = jnp.transpose(aeg_weight.reshape(OC, C_in, KK).astype(jnp.float32),
                         (2, 1, 0))[..., None]               # (KK, C_in, OC, 1)
    # Conv weight -> (KK, OC, C_in): one small MXU dot per tap.
    convw = jnp.transpose(conv_weight.reshape(OC, C_in, KK).astype(jnp.float32),
                          (2, 0, 1))                          # (KK, OC, C_in)
    bias2d = conv_bias.reshape(OC, 1).astype(jnp.float32)

    # Checkerboard parity of the *output* coordinates, laid out over padded
    # flat positions (values at invalid lanes are never used).
    ip = jnp.arange(Hp, dtype=jnp.int32)[:, None] // stride
    jp = jnp.arange(Wp, dtype=jnp.int32)[None, :] // stride
    parity = jnp.pad(((ip + jp) % 2).reshape(-1),
                     (0, OUT_LP - flat)).reshape(1, 1, OUT_LP)

    kernel = functools.partial(_aeg_conv_kernel, C_in=C_in, OC=OC, K=K,
                               Wp=Wp, OUT_LP=OUT_LP, LC=LC, HALO=HALO)

    out_flat = pl.pallas_call(
        kernel,
        out_shape=jax.ShapeDtypeStruct((N, OC, OUT_LP), jnp.float32),
        grid_spec=pltpu.PrefetchScalarGridSpec(
            num_scalar_prefetch=0,
            grid=(N,),                                        # >= 2 grid steps
            in_specs=[
                pl.BlockSpec((1, 1, OUT_LP), lambda n: (0, 0, 0)),       # parity
                pl.BlockSpec((None, C_in, IN_LP), lambda n: (n, 0, 0)),  # x_flat
                pl.BlockSpec((KK, C_in, OC, 1), lambda n: (0, 0, 0, 0)), # aegw
                pl.BlockSpec((KK, OC, C_in), lambda n: (0, 0, 0)),       # convw
                pl.BlockSpec((OC, 1), lambda n: (0, 0)),                 # bias
            ],
            out_specs=pl.BlockSpec((None, OC, OUT_LP), lambda n: (n, 0, 0)),
        ),
        compiler_params=pltpu.CompilerParams(
            dimension_semantics=("parallel",)),
    )(parity, x_flat, aegw, convw, bias2d)

    # (N, OC, OUT_LP) -> (N, OC, OH, OW): drop lane padding and pick the valid
    # window top-left positions (stride-aware).  No transpose pass needed.
    out = out_flat[:, :, :flat].reshape(N, OC, Hp, Wp)
    out = out[:, :, 0:(OH - 1) * stride + 1:stride,
                    0:(OW - 1) * stride + 1:stride]
    return out


# ----------------------------------------------------------------------------
# Pure-JAX reference (mirrors the PyTorch code) for self-checking
# ----------------------------------------------------------------------------
def _unfold_taps(x, K, stride, padding):
    """(N,C,H,W) -> taps (KK, C, N, OH, OW)  (F.unfold, tap-major layout)."""
    N, C, H, W = x.shape
    if padding > 0:
        x = jnp.pad(x, ((0, 0), (0, 0), (padding, padding), (padding, padding)))
    OH = (H - K + 2 * padding) // stride + 1
    OW = (W - K + 2 * padding) // stride + 1
    xt = jnp.transpose(x, (1, 0, 2, 3))           # (C, N, Hp, Wp)
    taps = []
    for kh in range(K):
        for kw in range(K):
            taps.append(xt[:, :,
                           kh:kh + (OH - 1) * stride + 1:stride,
                           kw:kw + (OW - 1) * stride + 1:stride])
    return jnp.stack(taps, axis=0), OH, OW        # (KK, C, N, OH, OW)


def _reference(x, aeg_weight, conv_weight, conv_bias, stride, padding):
    N, C_in, H, W = x.shape
    OC, _, K, _ = aeg_weight.shape
    KK = K * K
    taps, OH, OW = _unfold_taps(x, K, stride, padding)       # (KK,C,N,OH,OW)
    L = OH * OW
    patches = jnp.transpose(taps, (2, 1, 0, 3, 4)).reshape(N, C_in, KK, L)

    kernel_flat = aeg_weight.reshape(OC, C_in, KK)
    l_ids = jnp.arange(L)
    i_idx = (l_ids // OW).reshape(1, 1, 1, L)
    j_idx = (l_ids % OW).reshape(1, 1, 1, L)

    result = jnp.zeros((N, OC, C_in, L), x.dtype)
    for k in range(KK):
        m = ((i_idx + j_idx + k) % 2) == 0                    # (1,1,1,L)
        xk = patches[:, None, :, k, :]                        # (N,1,C,L)
        yk = kernel_flat[None, :, :, k, None]                 # (1,OC,C,1)
        result = jnp.where(m, (result + xk) * yk, (result + yk) * xk)
    aeg = result.sum(axis=2)                                  # (N,OC,L)

    convw = conv_weight.reshape(OC, C_in * KK)
    conv = jnp.einsum('ok,nkl->nol',
                      convw, patches.reshape(N, C_in * KK, L)) \
        + conv_bias.reshape(1, OC, 1)
    return (jax.nn.sigmoid(aeg) * conv).reshape(N, OC, OH, OW)


# ----------------------------------------------------------------------------
if __name__ == "__main__":
    # Module config: in_channels=4, out_channels=8, kernel_size=3,
    # stride=1, padding=1.  Input (2, 4, 16, 16) -> output (2, 8, 16, 16).
    N, C_in, H, W = 2, 4, 16, 16
    OC, K, stride, padding = 8, 3, 1, 1

    key = jax.random.PRNGKey(0)
    kx, kw1, kw2, kb = jax.random.split(key, 4)

    x = jax.random.normal(kx, (N, C_in, H, W), jnp.float32)

    # AEG weight: kaiming_normal_ -> std = sqrt(2 / fan_in)
    fan_in = C_in * K * K
    aeg_weight = jax.random.normal(kw1, (OC, C_in, K, K), jnp.float32) \
        * math.sqrt(2.0 / fan_in)

    # nn.Conv2d weight/bias: uniform(-1/sqrt(fan_in), 1/sqrt(fan_in))
    bound = 1.0 / math.sqrt(fan_in)
    conv_weight = jax.random.uniform(kw2, (OC, C_in, K, K), jnp.float32,
                                     minval=-bound, maxval=bound)
    conv_bias = jax.random.uniform(kb, (OC,), jnp.float32,
                                   minval=-bound, maxval=bound)

    out = aeg_conv2d_forward(x, aeg_weight, conv_weight, conv_bias,
                             stride=stride, padding=padding)
    out = jax.block_until_ready(out)

    ref = _reference(x, aeg_weight, conv_weight, conv_bias, stride, padding)
    assert out.shape == (N, OC, H, W), out.shape
    assert jnp.allclose(out, ref, atol=1e-4, rtol=1e-4), \
        float(jnp.max(jnp.abs(out - ref)))

    print("KERNEL_OK")
</pallas_src>

<mosaic_0001>
module attributes {stable_mosaic.version = 11 : i64} {
  func.func @_aeg_conv_kernel(%arg0: i32, %arg1: memref<1x1x384xi32, #tpu.memory_space<vmem>>, %arg2: memref<1x4x512xf32, #tpu.memory_space<vmem>>, %arg3: memref<9x4x8x1xf32, #tpu.memory_space<vmem>>, %arg4: memref<9x8x4xf32, #tpu.memory_space<vmem>>, %arg5: memref<8x1xf32, #tpu.memory_space<vmem>>, %arg6: memref<1x8x384xf32, #tpu.memory_space<vmem>>) attributes {dimension_semantics = [#tpu.dimension_semantics<parallel>], iteration_bounds = array<i64: 2>, scalar_prefetch = 0 : i64, scratch_operands = 0 : i64, tpu.core_type = #tpu.core_type<tc>, window_params = [{pipeline_mode = #tpu.pipeline_mode<synchronous>, transform_indices = @transform_0, window_bounds = array<i64: 1, 1, 384>}, {transform_indices = @transform_1, window_bounds = array<i64: 1, 4, 512>}, {pipeline_mode = #tpu.pipeline_mode<synchronous>, transform_indices = @transform_2, window_bounds = array<i64: 9, 4, 8, 1>}, {pipeline_mode = #tpu.pipeline_mode<synchronous>, transform_indices = @transform_3, window_bounds = array<i64: 9, 8, 4>}, {pipeline_mode = #tpu.pipeline_mode<synchronous>, transform_indices = @transform_4, window_bounds = array<i64: 8, 1>}, {transform_indices = @transform_5, window_bounds = array<i64: 1, 8, 384>}]} {
    %c0 = arith.constant 0 : index
    %c0_0 = arith.constant 0 : index
    %0 = vector.load %arg5[%c0, %c0_0] : memref<8x1xf32, #tpu.memory_space<vmem>>, vector<8x1xf32>
    %c0_1 = arith.constant 0 : index
    %c0_2 = arith.constant 0 : index
    %c0_3 = arith.constant 0 : index
    %1 = vector.load %arg1[%c0_1, %c0_2, %c0_3] : memref<1x1x384xi32, #tpu.memory_space<vmem>>, vector<1x1x128xi32>
    %c0_i32 = arith.constant 0 : i32
    %2 = vector.broadcast %c0_i32 : i32 to vector<1x1x128xi32>
    %3 = arith.cmpi eq, %1, %2 : vector<1x1x128xi32>
    %c0_i32_4 = arith.constant 0 : i32
    %4 = vector.broadcast %c0_i32_4 : i32 to vector<1x1x128xi32>
    %5 = arith.cmpi ne, %1, %4 : vector<1x1x128xi32>
    %c0_5 = arith.constant 0 : index
    %c0_6 = arith.constant 0 : index
    %c0_7 = arith.constant 0 : index
    %6 = vector.load %arg2[%c0_5, %c0_6, %c0_7] : memref<1x4x512xf32, #tpu.memory_space<vmem>>, vector<1x4x256xf32>
    %7 = vector.shape_cast %6 : vector<1x4x256xf32> to vector<4x256xf32>
    %cst = arith.constant 0.000000e+00 : f32
    %8 = vector.broadcast %cst : f32 to vector<4x8x128xf32>
    %cst_8 = arith.constant 0.000000e+00 : f32
    %9 = vector.broadcast %cst_8 : f32 to vector<8x128xf32>
    %10 = vector.extract_strided_slice %7 {offsets = [0, 0], sizes = [4, 128], strides = [1, 1]} : vector<4x256xf32> to vector<4x128xf32>
    %11 = vector.shape_cast %10 : vector<4x128xf32> to vector<4x1x128xf32>
    %c0_9 = arith.constant 0 : index
    %c0_10 = arith.constant 0 : index
    %c0_11 = arith.constant 0 : index
    %c0_12 = arith.constant 0 : index
    %12 = vector.load %arg3[%c0_9, %c0_10, %c0_11, %c0_12] : memref<9x4x8x1xf32, #tpu.memory_space<vmem>>, vector<1x4x8x1xf32>
    %13 = vector.shape_cast %12 : vector<1x4x8x1xf32> to vector<4x8x1xf32>
    %14 = vector.shape_cast %3 : vector<1x1x128xi1> to vector<1x1x128xi1>
    %15 = vector.broadcast %14 : vector<1x1x128xi1> to vector<4x8x128xi1>
    %16 = vector.shape_cast %11 : vector<4x1x128xf32> to vector<4x1x128xf32>
    %17 = vector.broadcast %16 : vector<4x1x128xf32> to vector<4x8x128xf32>
    %18 = vector.shape_cast %13 : vector<4x8x1xf32> to vector<4x8x1xf32>
    %19 = vector.broadcast %18 : vector<4x8x1xf32> to vector<4x8x128xf32>
    %20 = arith.select %15, %17, %19 : vector<4x8x128xi1>, vector<4x8x128xf32>
    %21 = vector.shape_cast %3 : vector<1x1x128xi1> to vector<1x1x128xi1>
    %22 = vector.broadcast %21 : vector<1x1x128xi1> to vector<4x8x128xi1>
    %23 = vector.shape_cast %13 : vector<4x8x1xf32> to vector<4x8x1xf32>
    %24 = vector.broadcast %23 : vector<4x8x1xf32> to vector<4x8x128xf32>
    %25 = vector.shape_cast %11 : vector<4x1x128xf32> to vector<4x1x128xf32>
    %26 = vector.broadcast %25 : vector<4x1x128xf32> to vector<4x8x128xf32>
    %27 = arith.select %22, %24, %26 : vector<4x8x128xi1>, vector<4x8x128xf32>
    %28 = arith.addf %8, %20 : vector<4x8x128xf32>
    %29 = arith.mulf %28, %27 : vector<4x8x128xf32>
    %c0_13 = arith.constant 0 : index
    %c0_14 = arith.constant 0 : index
    %c0_15 = arith.constant 0 : index
    %30 = vector.load %arg4[%c0_13, %c0_14, %c0_15] : memref<9x8x4xf32, #tpu.memory_space<vmem>>, vector<1x8x4xf32>
    %31 = vector.shape_cast %30 : vector<1x8x4xf32> to vector<8x4xf32>
    %cst_16 = arith.constant dense<0.000000e+00> : vector<8x128xf32>
    %32 = tpu.matmul %31, %10, %cst_16 {dimension_numbers = #tpu.dot_dimension_numbers<[1], [0], [0], [1], [0, 0, 1, 1], [], []>} : vector<8x4xf32>, vector<4x128xf32>, vector<8x128xf32> -> vector<8x128xf32>
    %33 = arith.addf %9, %32 : vector<8x128xf32>
    %34 = vector.extract_strided_slice %7 {offsets = [0, 1], sizes = [4, 128], strides = [1, 1]} : vector<4x256xf32> to vector<4x128xf32>
    %35 = vector.shape_cast %34 : vector<4x128xf32> to vector<4x1x128xf32>
    %c1 = arith.constant 1 : index
    %c0_17 = arith.constant 0 : index
    %c0_18 = arith.constant 0 : index
    %c0_19 = arith.constant 0 : index
    %36 = vector.load %arg3[%c1, %c0_17, %c0_18, %c0_19] : memref<9x4x8x1xf32, #tpu.memory_space<vmem>>, vector<1x4x8x1xf32>
    %37 = vector.shape_cast %36 : vector<1x4x8x1xf32> to vector<4x8x1xf32>
    %38 = vector.shape_cast %5 : vector<1x1x128xi1> to vector<1x1x128xi1>
    %39 = vector.broadcast %38 : vector<1x1x128xi1> to vector<4x8x128xi1>
    %40 = vector.shape_cast %35 : vector<4x1x128xf32> to vector<4x1x128xf32>
    %41 = vector.broadcast %40 : vector<4x1x128xf32> to vector<4x8x128xf32>
    %42 = vector.shape_cast %37 : vector<4x8x1xf32> to vector<4x8x1xf32>
    %43 = vector.broadcast %42 : vector<4x8x1xf32> to vector<4x8x128xf32>
    %44 = arith.select %39, %41, %43 : vector<4x8x128xi1>, vector<4x8x128xf32>
    %45 = vector.shape_cast %5 : vector<1x1x128xi1> to vector<1x1x128xi1>
    %46 = vector.broadcast %45 : vector<1x1x128xi1> to vector<4x8x128xi1>
    %47 = vector.shape_cast %37 : vector<4x8x1xf32> to vector<4x8x1xf32>
    %48 = vector.broadcast %47 : vector<4x8x1xf32> to vector<4x8x128xf32>
    %49 = vector.shape_cast %35 : vector<4x1x128xf32> to vector<4x1x128xf32>
    %50 = vector.broadcast %49 : vector<4x1x128xf32> to vector<4x8x128xf32>
    %51 = arith.select %46, %48, %50 : vector<4x8x128xi1>, vector<4x8x128xf32>
    %52 = arith.addf %29, %44 : vector<4x8x128xf32>
    %53 = arith.mulf %52, %51 : vector<4x8x128xf32>
    %c1_20 = arith.constant 1 : index
    %c0_21 = arith.constant 0 : index
    %c0_22 = arith.constant 0 : index
    %54 = vector.load %arg4[%c1_20, %c0_21, %c0_22] : memref<9x8x4xf32, #tpu.memory_space<vmem>>, vector<1x8x4xf32>
    %55 = vector.shape_cast %54 : vector<1x8x4xf32> to vector<8x4xf32>
    %cst_23 = arith.constant dense<0.000000e+00> : vector<8x128xf32>
    %56 = tpu.matmul %55, %34, %cst_23 {dimension_numbers = #tpu.dot_dimension_numbers<[1], [0], [0], [1], [0, 0, 1, 1], [], []>} : vector<8x4xf32>, vector<4x128xf32>, vector<8x128xf32> -> vector<8x128xf32>
    %57 = arith.addf %33, %56 : vector<8x128xf32>
    %58 = vector.extract_strided_slice %7 {offsets = [0, 2], sizes = [4, 128], strides = [1, 1]} : vector<4x256xf32> to vector<4x128xf32>
    %59 = vector.shape_cast %58 : vector<4x128xf32> to vector<4x1x128xf32>
    %c2 = arith.constant 2 : index
    %c0_24 = arith.constant 0 : index
    %c0_25 = arith.constant 0 : index
    %c0_26 = arith.constant 0 : index
    %60 = vector.load %arg3[%c2, %c0_24, %c0_25, %c0_26] : memref<9x4x8x1xf32, #tpu.memory_space<vmem>>, vector<1x4x8x1xf32>
    %61 = vector.shape_cast %60 : vector<1x4x8x1xf32> to vector<4x8x1xf32>
    %62 = vector.shape_cast %3 : vector<1x1x128xi1> to vector<1x1x128xi1>
    %63 = vector.broadcast %62 : vector<1x1x128xi1> to vector<4x8x128xi1>
    %64 = vector.shape_cast %59 : vector<4x1x128xf32> to vector<4x1x128xf32>
    %65 = vector.broadcast %64 : vector<4x1x128xf32> to vector<4x8x128xf32>
    %66 = vector.shape_cast %61 : vector<4x8x1xf32> to vector<4x8x1xf32>
    %67 = vector.broadcast %66 : vector<4x8x1xf32> to vector<4x8x128xf32>
    %68 = arith.select %63, %65, %67 : vector<4x8x128xi1>, vector<4x8x128xf32>
    %69 = vector.shape_cast %3 : vector<1x1x128xi1> to vector<1x1x128xi1>
    %70 = vector.broadcast %69 : vector<1x1x128xi1> to vector<4x8x128xi1>
    %71 = vector.shape_cast %61 : vector<4x8x1xf32> to vector<4x8x1xf32>
    %72 = vector.broadcast %71 : vector<4x8x1xf32> to vector<4x8x128xf32>
    %73 = vector.shape_cast %59 : vector<4x1x128xf32> to vector<4x1x128xf32>
    %74 = vector.broadcast %73 : vector<4x1x128xf32> to vector<4x8x128xf32>
    %75 = arith.select %70, %72, %74 : vector<4x8x128xi1>, vector<4x8x128xf32>
    %76 = arith.addf %53, %68 : vector<4x8x128xf32>
    %77 = arith.mulf %76, %75 : vector<4x8x128xf32>
    %c2_27 = arith.constant 2 : index
    %c0_28 = arith.constant 0 : index
    %c0_29 = arith.constant 0 : index
    %78 = vector.load %arg4[%c2_27, %c0_28, %c0_29] : memref<9x8x4xf32, #tpu.memory_space<vmem>>, vector<1x8x4xf32>
    %79 = vector.shape_cast %78 : vector<1x8x4xf32> to vector<8x4xf32>
    %cst_30 = arith.constant dense<0.000000e+00> : vector<8x128xf32>
    %80 = tpu.matmul %79, %58, %cst_30 {dimension_numbers = #tpu.dot_dimension_numbers<[1], [0], [0], [1], [0, 0, 1, 1], [], []>} : vector<8x4xf32>, vector<4x128xf32>, vector<8x128xf32> -> vector<8x128xf32>
    %81 = arith.addf %57, %80 : vector<8x128xf32>
    %82 = vector.extract_strided_slice %7 {offsets = [0, 18], sizes = [4, 128], strides = [1, 1]} : vector<4x256xf32> to vector<4x128xf32>
    %83 = vector.shape_cast %82 : vector<4x128xf32> to vector<4x1x128xf32>
    %c3 = arith.constant 3 : index
    %c0_31 = arith.constant 0 : index
    %c0_32 = arith.constant 0 : index
    %c0_33 = arith.constant 0 : index
    %84 = vector.load %arg3[%c3, %c0_31, %c0_32, %c0_33] : memref<9x4x8x1xf32, #tpu.memory_space<vmem>>, vector<1x4x8x1xf32>
    %85 = vector.shape_cast %84 : vector<1x4x8x1xf32> to vector<4x8x1xf32>
    %86 = vector.shape_cast %5 : vector<1x1x128xi1> to vector<1x1x128xi1>
    %87 = vector.broadcast %86 : vector<1x1x128xi1> to vector<4x8x128xi1>
    %88 = vector.shape_cast %83 : vector<4x1x128xf32> to vector<4x1x128xf32>
    %89 = vector.broadcast %88 : vector<4x1x128xf32> to vector<4x8x128xf32>
    %90 = vector.shape_cast %85 : vector<4x8x1xf32> to vector<4x8x1xf32>
    %91 = vector.broadcast %90 : vector<4x8x1xf32> to vector<4x8x128xf32>
    %92 = arith.select %87, %89, %91 : vector<4x8x128xi1>, vector<4x8x128xf32>
    %93 = vector.shape_cast %5 : vector<1x1x128xi1> to vector<1x1x128xi1>
    %94 = vector.broadcast %93 : vector<1x1x128xi1> to vector<4x8x128xi1>
    %95 = vector.shape_cast %85 : vector<4x8x1xf32> to vector<4x8x1xf32>
    %96 = vector.broadcast %95 : vector<4x8x1xf32> to vector<4x8x128xf32>
    %97 = vector.shape_cast %83 : vector<4x1x128xf32> to vector<4x1x128xf32>
    %98 = vector.broadcast %97 : vector<4x1x128xf32> to vector<4x8x128xf32>
    %99 = arith.select %94, %96, %98 : vector<4x8x128xi1>, vector<4x8x128xf32>
    %100 = arith.addf %77, %92 : vector<4x8x128xf32>
    %101 = arith.mulf %100, %99 : vector<4x8x128xf32>
    %c3_34 = arith.constant 3 : index
    %c0_35 = arith.constant 0 : index
    %c0_36 = arith.constant 0 : index
    %102 = vector.load %arg4[%c3_34, %c0_35, %c0_36] : memref<9x8x4xf32, #tpu.memory_space<vmem>>, vector<1x8x4xf32>
    %103 = vector.shape_cast %102 : vector<1x8x4xf32> to vector<8x4xf32>
    %cst_37 = arith.constant dense<0.000000e+00> : vector<8x128xf32>
    %104 = tpu.matmul %103, %82, %cst_37 {dimension_numbers = #tpu.dot_dimension_numbers<[1], [0], [0], [1], [0, 0, 1, 1], [], []>} : vector<8x4xf32>, vector<4x128xf32>, vector<8x128xf32> -> vector<8x128xf32>
    %105 = arith.addf %81, %104 : vector<8x128xf32>
    %106 = vector.extract_strided_slice %7 {offsets = [0, 19], sizes = [4, 128], strides = [1, 1]} : vector<4x256xf32> to vector<4x128xf32>
    %107 = vector.shape_cast %106 : vector<4x128xf32> to vector<4x1x128xf32>
    %c4 = arith.constant 4 : index
    %c0_38 = arith.constant 0 : index
    %c0_39 = arith.constant 0 : index
    %c0_40 = arith.constant 0 : index
    %108 = vector.load %arg3[%c4, %c0_38, %c0_39, %c0_40] : memref<9x4x8x1xf32, #tpu.memory_space<vmem>>, vector<1x4x8x1xf32>
    %109 = vector.shape_cast %108 : vector<1x4x8x1xf32> to vector<4x8x1xf32>
    %110 = vector.shape_cast %3 : vector<1x1x128xi1> to vector<1x1x128xi1>
    %111 = vector.broadcast %110 : vector<1x1x128xi1> to vector<4x8x128xi1>
    %112 = vector.shape_cast %107 : vector<4x1x128xf32> to vector<4x1x128xf32>
    %113 = vector.broadcast %112 : vector<4x1x128xf32> to vector<4x8x128xf32>
    %114 = vector.shape_cast %109 : vector<4x8x1xf32> to vector<4x8x1xf32>
    %115 = vector.broadcast %114 : vector<4x8x1xf32> to vector<4x8x128xf32>
    %116 = arith.select %111, %113, %115 : vector<4x8x128xi1>, vector<4x8x128xf32>
    %117 = vector.shape_cast %3 : vector<1x1x128xi1> to vector<1x1x128xi1>
    %118 = vector.broadcast %117 : vector<1x1x128xi1> to vector<4x8x128xi1>
    %119 = vector.shape_cast %109 : vector<4x8x1xf32> to vector<4x8x1xf32>
    %120 = vector.broadcast %119 : vector<4x8x1xf32> to vector<4x8x128xf32>
    %121 = vector.shape_cast %107 : vector<4x1x128xf32> to vector<4x1x128xf32>
    %122 = vector.broadcast %121 : vector<4x1x128xf32> to vector<4x8x128xf32>
    %123 = arith.select %118, %120, %122 : vector<4x8x128xi1>, vector<4x8x128xf32>
    %124 = arith.addf %101, %116 : vector<4x8x128xf32>
    %125 = arith.mulf %124, %123 : vector<4x8x128xf32>
    %c4_41 = arith.constant 4 : index
    %c0_42 = arith.constant 0 : index
    %c0_43 = arith.constant 0 : index
    %126 = vector.load %arg4[%c4_41, %c0_42, %c0_43] : memref<9x8x4xf32, #tpu.memory_space<vmem>>, vector<1x8x4xf32>
    %127 = vector.shape_cast %126 : vector<1x8x4xf32> to vector<8x4xf32>
    %cst_44 = arith.constant dense<0.000000e+00> : vector<8x128xf32>
    %128 = tpu.matmul %127, %106, %cst_44 {dimension_numbers = #tpu.dot_dimension_numbers<[1], [0], [0], [1], [0, 0, 1, 1], [], []>} : vector<8x4xf32>, vector<4x128xf32>, vector<8x128xf32> -> vector<8x128xf32>
    %129 = arith.addf %105, %128 : vector<8x128xf32>
    %130 = vector.extract_strided_slice %7 {offsets = [0, 20], sizes = [4, 128], strides = [1, 1]} : vector<4x256xf32> to vector<4x128xf32>
    %131 = vector.shape_cast %130 : vector<4x128xf32> to vector<4x1x128xf32>
    %c5 = arith.constant 5 : index
    %c0_45 = arith.constant 0 : index
    %c0_46 = arith.constant 0 : index
    %c0_47 = arith.constant 0 : index
    %132 = vector.load %arg3[%c5, %c0_45, %c0_46, %c0_47] : memref<9x4x8x1xf32, #tpu.memory_space<vmem>>, vector<1x4x8x1xf32>
    %133 = vector.shape_cast %132 : vector<1x4x8x1xf32> to vector<4x8x1xf32>
    %134 = vector.shape_cast %5 : vector<1x1x128xi1> to vector<1x1x128xi1>
    %135 = vector.broadcast %134 : vector<1x1x128xi1> to vector<4x8x128xi1>
    %136 = vector.shape_cast %131 : vector<4x1x128xf32> to vector<4x1x128xf32>
    %137 = vector.broadcast %136 : vector<4x1x128xf32> to vector<4x8x128xf32>
    %138 = vector.shape_cast %133 : vector<4x8x1xf32> to vector<4x8x1xf32>
    %139 = vector.broadcast %138 : vector<4x8x1xf32> to vector<4x8x128xf32>
    %140 = arith.select %135, %137, %139 : vector<4x8x128xi1>, vector<4x8x128xf32>
    %141 = vector.shape_cast %5 : vector<1x1x128xi1> to vector<1x1x128xi1>
    %142 = vector.broadcast %141 : vector<1x1x128xi1> to vector<4x8x128xi1>
    %143 = vector.shape_cast %133 : vector<4x8x1xf32> to vector<4x8x1xf32>
    %144 = vector.broadcast %143 : vector<4x8x1xf32> to vector<4x8x128xf32>
    %145 = vector.shape_cast %131 : vector<4x1x128xf32> to vector<4x1x128xf32>
    %146 = vector.broadcast %145 : vector<4x1x128xf32> to vector<4x8x128xf32>
    %147 = arith.select %142, %144, %146 : vector<4x8x128xi1>, vector<4x8x128xf32>
    %148 = arith.addf %125, %140 : vector<4x8x128xf32>
    %149 = arith.mulf %148, %147 : vector<4x8x128xf32>
    %c5_48 = arith.constant 5 : index
    %c0_49 = arith.constant 0 : index
    %c0_50 = arith.constant 0 : index
    %150 = vector.load %arg4[%c5_48, %c0_49, %c0_50] : memref<9x8x4xf32, #tpu.memory_space<vmem>>, vector<1x8x4xf32>
    %151 = vector.shape_cast %150 : vector<1x8x4xf32> to vector<8x4xf32>
    %cst_51 = arith.constant dense<0.000000e+00> : vector<8x128xf32>
    %152 = tpu.matmul %151, %130, %cst_51 {dimension_numbers = #tpu.dot_dimension_numbers<[1], [0], [0], [1], [0, 0, 1, 1], [], []>} : vector<8x4xf32>, vector<4x128xf32>, vector<8x128xf32> -> vector<8x128xf32>
    %153 = arith.addf %129, %152 : vector<8x128xf32>
    %154 = vector.extract_strided_slice %7 {offsets = [0, 36], sizes = [4, 128], strides = [1, 1]} : vector<4x256xf32> to vector<4x128xf32>
    %155 = vector.shape_cast %154 : vector<4x128xf32> to vector<4x1x128xf32>
    %c6 = arith.constant 6 : index
    %c0_52 = arith.constant 0 : index
    %c0_53 = arith.constant 0 : index
    %c0_54 = arith.constant 0 : index
    %156 = vector.load %arg3[%c6, %c0_52, %c0_53, %c0_54] : memref<9x4x8x1xf32, #tpu.memory_space<vmem>>, vector<1x4x8x1xf32>
    %157 = vector.shape_cast %156 : vector<1x4x8x1xf32> to vector<4x8x1xf32>
    %158 = vector.shape_cast %3 : vector<1x1x128xi1> to vector<1x1x128xi1>
    %159 = vector.broadcast %158 : vector<1x1x128xi1> to vector<4x8x128xi1>
    %160 = vector.shape_cast %155 : vector<4x1x128xf32> to vector<4x1x128xf32>
    %161 = vector.broadcast %160 : vector<4x1x128xf32> to vector<4x8x128xf32>
    %162 = vector.shape_cast %157 : vector<4x8x1xf32> to vector<4x8x1xf32>
    %163 = vector.broadcast %162 : vector<4x8x1xf32> to vector<4x8x128xf32>
    %164 = arith.select %159, %161, %163 : vector<4x8x128xi1>, vector<4x8x128xf32>
    %165 = vector.shape_cast %3 : vector<1x1x128xi1> to vector<1x1x128xi1>
    %166 = vector.broadcast %165 : vector<1x1x128xi1> to vector<4x8x128xi1>
    %167 = vector.shape_cast %157 : vector<4x8x1xf32> to vector<4x8x1xf32>
    %168 = vector.broadcast %167 : vector<4x8x1xf32> to vector<4x8x128xf32>
    %169 = vector.shape_cast %155 : vector<4x1x128xf32> to vector<4x1x128xf32>
    %170 = vector.broadcast %169 : vector<4x1x128xf32> to vector<4x8x128xf32>
    %171 = arith.select %166, %168, %170 : vector<4x8x128xi1>, vector<4x8x128xf32>
    %172 = arith.addf %149, %164 : vector<4x8x128xf32>
    %173 = arith.mulf %172, %171 : vector<4x8x128xf32>
    %c6_55 = arith.constant 6 : index
    %c0_56 = arith.constant 0 : index
    %c0_57 = arith.constant 0 : index
    %174 = vector.load %arg4[%c6_55, %c0_56, %c0_57] : memref<9x8x4xf32, #tpu.memory_space<vmem>>, vector<1x8x4xf32>
    %175 = vector.shape_cast %174 : vector<1x8x4xf32> to vector<8x4xf32>
    %cst_58 = arith.constant dense<0.000000e+00> : vector<8x128xf32>
    %176 = tpu.matmul %175, %154, %cst_58 {dimension_numbers = #tpu.dot_dimension_numbers<[1], [0], [0], [1], [0, 0, 1, 1], [], []>} : vector<8x4xf32>, vector<4x128xf32>, vector<8x128xf32> -> vector<8x128xf32>
    %177 = arith.addf %153, %176 : vector<8x128xf32>
    %178 = vector.extract_strided_slice %7 {offsets = [0, 37], sizes = [4, 128], strides = [1, 1]} : vector<4x256xf32> to vector<4x128xf32>
    %179 = vector.shape_cast %178 : vector<4x128xf32> to vector<4x1x128xf32>
    %c7 = arith.constant 7 : index
    %c0_59 = arith.constant 0 : index
    %c0_60 = arith.constant 0 : index
    %c0_61 = arith.constant 0 : index
    %180 = vector.load %arg3[%c7, %c0_59, %c0_60, %c0_61] : memref<9x4x8x1xf32, #tpu.memory_space<vmem>>, vector<1x4x8x1xf32>
    %181 = vector.shape_cast %180 : vector<1x4x8x1xf32> to vector<4x8x1xf32>
    %182 = vector.shape_cast %5 : vector<1x1x128xi1> to vector<1x1x128xi1>
    %183 = vector.broadcast %182 : vector<1x1x128xi1> to vector<4x8x128xi1>
    %184 = vector.shape_cast %179 : vector<4x1x128xf32> to vector<4x1x128xf32>
    %185 = vector.broadcast %184 : vector<4x1x128xf32> to vector<4x8x128xf32>
    %186 = vector.shape_cast %181 : vector<4x8x1xf32> to vector<4x8x1xf32>
    %187 = vector.broadcast %186 : vector<4x8x1xf32> to vector<4x8x128xf32>
    %188 = arith.select %183, %185, %187 : vector<4x8x128xi1>, vector<4x8x128xf32>
    %189 = vector.shape_cast %5 : vector<1x1x128xi1> to vector<1x1x128xi1>
    %190 = vector.broadcast %189 : vector<1x1x128xi1> to vector<4x8x128xi1>
    %191 = vector.shape_cast %181 : vector<4x8x1xf32> to vector<4x8x1xf32>
    %192 = vector.broadcast %191 : vector<4x8x1xf32> to vector<4x8x128xf32>
    %193 = vector.shape_cast %179 : vector<4x1x128xf32> to vector<4x1x128xf32>
    %194 = vector.broadcast %193 : vector<4x1x128xf32> to vector<4x8x128xf32>
    %195 = arith.select %190, %192, %194 : vector<4x8x128xi1>, vector<4x8x128xf32>
    %196 = arith.addf %173, %188 : vector<4x8x128xf32>
    %197 = arith.mulf %196, %195 : vector<4x8x128xf32>
    %c7_62 = arith.constant 7 : index
    %c0_63 = arith.constant 0 : index
    %c0_64 = arith.constant 0 : index
    %198 = vector.load %arg4[%c7_62, %c0_63, %c0_64] : memref<9x8x4xf32, #tpu.memory_space<vmem>>, vector<1x8x4xf32>
    %199 = vector.shape_cast %198 : vector<1x8x4xf32> to vector<8x4xf32>
    %cst_65 = arith.constant dense<0.000000e+00> : vector<8x128xf32>
    %200 = tpu.matmul %199, %178, %cst_65 {dimension_numbers = #tpu.dot_dimension_numbers<[1], [0], [0], [1], [0, 0, 1, 1], [], []>} : vector<8x4xf32>, vector<4x128xf32>, vector<8x128xf32> -> vector<8x128xf32>
    %201 = arith.addf %177, %200 : vector<8x128xf32>
    %202 = vector.extract_strided_slice %7 {offsets = [0, 38], sizes = [4, 128], strides = [1, 1]} : vector<4x256xf32> to vector<4x128xf32>
    %203 = vector.shape_cast %202 : vector<4x128xf32> to vector<4x1x128xf32>
    %c8 = arith.constant 8 : index
    %c0_66 = arith.constant 0 : index
    %c0_67 = arith.constant 0 : index
    %c0_68 = arith.constant 0 : index
    %204 = vector.load %arg3[%c8, %c0_66, %c0_67, %c0_68] : memref<9x4x8x1xf32, #tpu.memory_space<vmem>>, vector<1x4x8x1xf32>
    %205 = vector.shape_cast %204 : vector<1x4x8x1xf32> to vector<4x8x1xf32>
    %206 = vector.shape_cast %3 : vector<1x1x128xi1> to vector<1x1x128xi1>
    %207 = vector.broadcast %206 : vector<1x1x128xi1> to vector<4x8x128xi1>
    %208 = vector.shape_cast %203 : vector<4x1x128xf32> to vector<4x1x128xf32>
    %209 = vector.broadcast %208 : vector<4x1x128xf32> to vector<4x8x128xf32>
    %210 = vector.shape_cast %205 : vector<4x8x1xf32> to vector<4x8x1xf32>
    %211 = vector.broadcast %210 : vector<4x8x1xf32> to vector<4x8x128xf32>
    %212 = arith.select %207, %209, %211 : vector<4x8x128xi1>, vector<4x8x128xf32>
    %213 = vector.shape_cast %3 : vector<1x1x128xi1> to vector<1x1x128xi1>
    %214 = vector.broadcast %213 : vector<1x1x128xi1> to vector<4x8x128xi1>
    %215 = vector.shape_cast %205 : vector<4x8x1xf32> to vector<4x8x1xf32>
    %216 = vector.broadcast %215 : vector<4x8x1xf32> to vector<4x8x128xf32>
    %217 = vector.shape_cast %203 : vector<4x1x128xf32> to vector<4x1x128xf32>
    %218 = vector.broadcast %217 : vector<4x1x128xf32> to vector<4x8x128xf32>
    %219 = arith.select %214, %216, %218 : vector<4x8x128xi1>, vector<4x8x128xf32>
    %220 = arith.addf %197, %212 : vector<4x8x128xf32>
    %221 = arith.mulf %220, %219 : vector<4x8x128xf32>
    %c8_69 = arith.constant 8 : index
    %c0_70 = arith.constant 0 : index
    %c0_71 = arith.constant 0 : index
    %222 = vector.load %arg4[%c8_69, %c0_70, %c0_71] : memref<9x8x4xf32, #tpu.memory_space<vmem>>, vector<1x8x4xf32>
    %223 = vector.shape_cast %222 : vector<1x8x4xf32> to vector<8x4xf32>
    %cst_72 = arith.constant dense<0.000000e+00> : vector<8x128xf32>
    %224 = tpu.matmul %223, %202, %cst_72 {dimension_numbers = #tpu.dot_dimension_numbers<[1], [0], [0], [1], [0, 0, 1, 1], [], []>} : vector<8x4xf32>, vector<4x128xf32>, vector<8x128xf32> -> vector<8x128xf32>
    %225 = arith.addf %201, %224 : vector<8x128xf32>
    %cst_73 = arith.constant dense<0.000000e+00> : vector<8x128xf32>
    %226 = vector.multi_reduction <add>, %221, %cst_73 [0] : vector<4x8x128xf32> to vector<8x128xf32>
    %227 = arith.negf %226 : vector<8x128xf32>
    %228 = math.exp %227 : vector<8x128xf32>
    %cst_74 = arith.constant 1.000000e+00 : f32
    %229 = vector.broadcast %cst_74 : f32 to vector<8x128xf32>
    %230 = arith.addf %229, %228 : vector<8x128xf32>
    %231 = arith.divf %229, %230 : vector<8x128xf32>
    %232 = vector.broadcast %0 : vector<8x1xf32> to vector<8x128xf32>
    %233 = arith.addf %225, %232 : vector<8x128xf32>
    %234 = arith.mulf %231, %233 : vector<8x128xf32>
    %c0_75 = arith.constant 0 : index
    %c0_76 = arith.constant 0 : index
    %c0_77 = arith.constant 0 : index
    %235 = vector.load %arg6[%c0_75, %c0_76, %c0_77] : memref<1x8x384xf32, #tpu.memory_space<vmem>>, vector<1x8x128xf32>
    %236 = vector.shape_cast %235 : vector<1x8x128xf32> to vector<8x128xf32>
    %237 = vector.shape_cast %234 : vector<8x128xf32> to vector<1x8x128xf32>
    tpu.vector_store %arg6[%c0_75, %c0_76, %c0_77], %237 {strides = array<i32>} : memref<1x8x384xf32, #tpu.memory_space<vmem>>, vector<1x8x128xf32>,
    %c0_78 = arith.constant 0 : index
    %c0_79 = arith.constant 0 : index
    %c128 = arith.constant 128 : index
    %238 = vector.load %arg1[%c0_78, %c0_79, %c128] : memref<1x1x384xi32, #tpu.memory_space<vmem>>, vector<1x1x128xi32>
    %c0_i32_80 = arith.constant 0 : i32
    %239 = vector.broadcast %c0_i32_80 : i32 to vector<1x1x128xi32>
    %240 = arith.cmpi eq, %238, %239 : vector<1x1x128xi32>
    %c0_i32_81 = arith.constant 0 : i32
    %241 = vector.broadcast %c0_i32_81 : i32 to vector<1x1x128xi32>
    %242 = arith.cmpi ne, %238, %241 : vector<1x1x128xi32>
    %c0_82 = arith.constant 0 : index
    %c0_83 = arith.constant 0 : index
    %c128_84 = arith.constant 128 : index
    %243 = vector.load %arg2[%c0_82, %c0_83, %c128_84] : memref<1x4x512xf32, #tpu.memory_space<vmem>>, vector<1x4x256xf32>
    %244 = vector.shape_cast %243 : vector<1x4x256xf32> to vector<4x256xf32>
    %cst_85 = arith.constant 0.000000e+00 : f32
    %245 = vector.broadcast %cst_85 : f32 to vector<4x8x128xf32>
    %cst_86 = arith.constant 0.000000e+00 : f32
    %246 = vector.broadcast %cst_86 : f32 to vector<8x128xf32>
    %247 = vector.extract_strided_slice %244 {offsets = [0, 0], sizes = [4, 128], strides = [1, 1]} : vector<4x256xf32> to vector<4x128xf32>
    %248 = vector.shape_cast %247 : vector<4x128xf32> to vector<4x1x128xf32>
    %c0_87 = arith.constant 0 : index
    %c0_88 = arith.constant 0 : index
    %c0_89 = arith.constant 0 : index
    %c0_90 = arith.constant 0 : index
    %249 = vector.load %arg3[%c0_87, %c0_88, %c0_89, %c0_90] : memref<9x4x8x1xf32, #tpu.memory_space<vmem>>, vector<1x4x8x1xf32>
    %250 = vector.shape_cast %249 : vector<1x4x8x1xf32> to vector<4x8x1xf32>
    %251 = vector.shape_cast %240 : vector<1x1x128xi1> to vector<1x1x128xi1>
    %252 = vector.broadcast %251 : vector<1x1x128xi1> to vector<4x8x128xi1>
    %253 = vector.shape_cast %248 : vector<4x1x128xf32> to vector<4x1x128xf32>
    %254 = vector.broadcast %253 : vector<4x1x128xf32> to vector<4x8x128xf32>
    %255 = vector.shape_cast %250 : vector<4x8x1xf32> to vector<4x8x1xf32>
    %256 = vector.broadcast %255 : vector<4x8x1xf32> to vector<4x8x128xf32>
    %257 = arith.select %252, %254, %256 : vector<4x8x128xi1>, vector<4x8x128xf32>
    %258 = vector.shape_cast %240 : vector<1x1x128xi1> to vector<1x1x128xi1>
    %259 = vector.broadcast %258 : vector<1x1x128xi1> to vector<4x8x128xi1>
    %260 = vector.shape_cast %250 : vector<4x8x1xf32> to vector<4x8x1xf32>
    %261 = vector.broadcast %260 : vector<4x8x1xf32> to vector<4x8x128xf32>
    %262 = vector.shape_cast %248 : vector<4x1x128xf32> to vector<4x1x128xf32>
    %263 = vector.broadcast %262 : vector<4x1x128xf32> to vector<4x8x128xf32>
    %264 = arith.select %259, %261, %263 : vector<4x8x128xi1>, vector<4x8x128xf32>
    %265 = arith.addf %245, %257 : vector<4x8x128xf32>
    %266 = arith.mulf %265, %264 : vector<4x8x128xf32>
    %c0_91 = arith.constant 0 : index
    %c0_92 = arith.constant 0 : index
    %c0_93 = arith.constant 0 : index
    %267 = vector.load %arg4[%c0_91, %c0_92, %c0_93] : memref<9x8x4xf32, #tpu.memory_space<vmem>>, vector<1x8x4xf32>
    %268 = vector.shape_cast %267 : vector<1x8x4xf32> to vector<8x4xf32>
    %cst_94 = arith.constant dense<0.000000e+00> : vector<8x128xf32>
    %269 = tpu.matmul %268, %247, %cst_94 {dimension_numbers = #tpu.dot_dimension_numbers<[1], [0], [0], [1], [0, 0, 1, 1], [], []>} : vector<8x4xf32>, vector<4x128xf32>, vector<8x128xf32> -> vector<8x128xf32>
    %270 = arith.addf %246, %269 : vector<8x128xf32>
    %271 = vector.extract_strided_slice %244 {offsets = [0, 1], sizes = [4, 128], strides = [1, 1]} : vector<4x256xf32> to vector<4x128xf32>
    %272 = vector.shape_cast %271 : vector<4x128xf32> to vector<4x1x128xf32>
    %c1_95 = arith.constant 1 : index
    %c0_96 = arith.constant 0 : index
    %c0_97 = arith.constant 0 : index
    %c0_98 = arith.constant 0 : index
    %273 = vector.load %arg3[%c1_95, %c0_96, %c0_97, %c0_98] : memref<9x4x8x1xf32, #tpu.memory_space<vmem>>, vector<1x4x8x1xf32>
    %274 = vector.shape_cast %273 : vector<1x4x8x1xf32> to vector<4x8x1xf32>
    %275 = vector.shape_cast %242 : vector<1x1x128xi1> to vector<1x1x128xi1>
    %276 = vector.broadcast %275 : vector<1x1x128xi1> to vector<4x8x128xi1>
    %277 = vector.shape_cast %272 : vector<4x1x128xf32> to vector<4x1x128xf32>
    %278 = vector.broadcast %277 : vector<4x1x128xf32> to vector<4x8x128xf32>
    %279 = vector.shape_cast %274 : vector<4x8x1xf32> to vector<4x8x1xf32>
    %280 = vector.broadcast %279 : vector<4x8x1xf32> to vector<4x8x128xf32>
    %281 = arith.select %276, %278, %280 : vector<4x8x128xi1>, vector<4x8x128xf32>
    %282 = vector.shape_cast %242 : vector<1x1x128xi1> to vector<1x1x128xi1>
    %283 = vector.broadcast %282 : vector<1x1x128xi1> to vector<4x8x128xi1>
    %284 = vector.shape_cast %274 : vector<4x8x1xf32> to vector<4x8x1xf32>
    %285 = vector.broadcast %284 : vector<4x8x1xf32> to vector<4x8x128xf32>
    %286 = vector.shape_cast %272 : vector<4x1x128xf32> to vector<4x1x128xf32>
    %287 = vector.broadcast %286 : vector<4x1x128xf32> to vector<4x8x128xf32>
    %288 = arith.select %283, %285, %287 : vector<4x8x128xi1>, vector<4x8x128xf32>
    %289 = arith.addf %266, %281 : vector<4x8x128xf32>
    %290 = arith.mulf %289, %288 : vector<4x8x128xf32>
    %c1_99 = arith.constant 1 : index
    %c0_100 = arith.constant 0 : index
    %c0_101 = arith.constant 0 : index
    %291 = vector.load %arg4[%c1_99, %c0_100, %c0_101] : memref<9x8x4xf32, #tpu.memory_space<vmem>>, vector<1x8x4xf32>
    %292 = vector.shape_cast %291 : vector<1x8x4xf32> to vector<8x4xf32>
    %cst_102 = arith.constant dense<0.000000e+00> : vector<8x128xf32>
    %293 = tpu.matmul %292, %271, %cst_102 {dimension_numbers = #tpu.dot_dimension_numbers<[1], [0], [0], [1], [0, 0, 1, 1], [], []>} : vector<8x4xf32>, vector<4x128xf32>, vector<8x128xf32> -> vector<8x128xf32>
    %294 = arith.addf %270, %293 : vector<8x128xf32>
    %295 = vector.extract_strided_slice %244 {offsets = [0, 2], sizes = [4, 128], strides = [1, 1]} : vector<4x256xf32> to vector<4x128xf32>
    %296 = vector.shape_cast %295 : vector<4x128xf32> to vector<4x1x128xf32>
    %c2_103 = arith.constant 2 : index
    %c0_104 = arith.constant 0 : index
    %c0_105 = arith.constant 0 : index
    %c0_106 = arith.constant 0 : index
    %297 = vector.load %arg3[%c2_103, %c0_104, %c0_105, %c0_106] : memref<9x4x8x1xf32, #tpu.memory_space<vmem>>, vector<1x4x8x1xf32>
    %298 = vector.shape_cast %297 : vector<1x4x8x1xf32> to vector<4x8x1xf32>
    %299 = vector.shape_cast %240 : vector<1x1x128xi1> to vector<1x1x128xi1>
    %300 = vector.broadcast %299 : vector<1x1x128xi1> to vector<4x8x128xi1>
    %301 = vector.shape_cast %296 : vector<4x1x128xf32> to vector<4x1x128xf32>
    %302 = vector.broadcast %301 : vector<4x1x128xf32> to vector<4x8x128xf32>
    %303 = vector.shape_cast %298 : vector<4x8x1xf32> to vector<4x8x1xf32>
    %304 = vector.broadcast %303 : vector<4x8x1xf32> to vector<4x8x128xf32>
    %305 = arith.select %300, %302, %304 : vector<4x8x128xi1>, vector<4x8x128xf32>
    %306 = vector.shape_cast %240 : vector<1x1x128xi1> to vector<1x1x128xi1>
    %307 = vector.broadcast %306 : vector<1x1x128xi1> to vector<4x8x128xi1>
    %308 = vector.shape_cast %298 : vector<4x8x1xf32> to vector<4x8x1xf32>
    %309 = vector.broadcast %308 : vector<4x8x1xf32> to vector<4x8x128xf32>
    %310 = vector.shape_cast %296 : vector<4x1x128xf32> to vector<4x1x128xf32>
    %311 = vector.broadcast %310 : vector<4x1x128xf32> to vector<4x8x128xf32>
    %312 = arith.select %307, %309, %311 : vector<4x8x128xi1>, vector<4x8x128xf32>
    %313 = arith.addf %290, %305 : vector<4x8x128xf32>
    %314 = arith.mulf %313, %312 : vector<4x8x128xf32>
    %c2_107 = arith.constant 2 : index
    %c0_108 = arith.constant 0 : index
    %c0_109 = arith.constant 0 : index
    %315 = vector.load %arg4[%c2_107, %c0_108, %c0_109] : memref<9x8x4xf32, #tpu.memory_space<vmem>>, vector<1x8x4xf32>
    %316 = vector.shape_cast %315 : vector<1x8x4xf32> to vector<8x4xf32>
    %cst_110 = arith.constant dense<0.000000e+00> : vector<8x128xf32>
    %317 = tpu.matmul %316, %295, %cst_110 {dimension_numbers = #tpu.dot_dimension_numbers<[1], [0], [0], [1], [0, 0, 1, 1], [], []>} : vector<8x4xf32>, vector<4x128xf32>, vector<8x128xf32> -> vector<8x128xf32>
    %318 = arith.addf %294, %317 : vector<8x128xf32>
    %319 = vector.extract_strided_slice %244 {offsets = [0, 18], sizes = [4, 128], strides = [1, 1]} : vector<4x256xf32> to vector<4x128xf32>
    %320 = vector.shape_cast %319 : vector<4x128xf32> to vector<4x1x128xf32>
    %c3_111 = arith.constant 3 : index
    %c0_112 = arith.constant 0 : index
    %c0_113 = arith.constant 0 : index
    %c0_114 = arith.constant 0 : index
    %321 = vector.load %arg3[%c3_111, %c0_112, %c0_113, %c0_114] : memref<9x4x8x1xf32, #tpu.memory_space<vmem>>, vector<1x4x8x1xf32>
    %322 = vector.shape_cast %321 : vector<1x4x8x1xf32> to vector<4x8x1xf32>
    %323 = vector.shape_cast %242 : vector<1x1x128xi1> to vector<1x1x128xi1>
    %324 = vector.broadcast %323 : vector<1x1x128xi1> to vector<4x8x128xi1>
    %325 = vector.shape_cast %320 : vector<4x1x128xf32> to vector<4x1x128xf32>
    %326 = vector.broadcast %325 : vector<4x1x128xf32> to vector<4x8x128xf32>
    %327 = vector.shape_cast %322 : vector<4x8x1xf32> to vector<4x8x1xf32>
    %328 = vector.broadcast %327 : vector<4x8x1xf32> to vector<4x8x128xf32>
    %329 = arith.select %324, %326, %328 : vector<4x8x128xi1>, vector<4x8x128xf32>
    %330 = vector.shape_cast %242 : vector<1x1x128xi1> to vector<1x1x128xi1>
    %331 = vector.broadcast %330 : vector<1x1x128xi1> to vector<4x8x128xi1>
    %332 = vector.shape_cast %322 : vector<4x8x1xf32> to vector<4x8x1xf32>
    %333 = vector.broadcast %332 : vector<4x8x1xf32> to vector<4x8x128xf32>
    %334 = vector.shape_cast %320 : vector<4x1x128xf32> to vector<4x1x128xf32>
    %335 = vector.broadcast %334 : vector<4x1x128xf32> to vector<4x8x128xf32>
    %336 = arith.select %331, %333, %335 : vector<4x8x128xi1>, vector<4x8x128xf32>
    %337 = arith.addf %314, %329 : vector<4x8x128xf32>
    %338 = arith.mulf %337, %336 : vector<4x8x128xf32>
    %c3_115 = arith.constant 3 : index
    %c0_116 = arith.constant 0 : index
    %c0_117 = arith.constant 0 : index
    %339 = vector.load %arg4[%c3_115, %c0_116, %c0_117] : memref<9x8x4xf32, #tpu.memory_space<vmem>>, vector<1x8x4xf32>
    %340 = vector.shape_cast %339 : vector<1x8x4xf32> to vector<8x4xf32>
    %cst_118 = arith.constant dense<0.000000e+00> : vector<8x128xf32>
    %341 = tpu.matmul %340, %319, %cst_118 {dimension_numbers = #tpu.dot_dimension_numbers<[1], [0], [0], [1], [0, 0, 1, 1], [], []>} : vector<8x4xf32>, vector<4x128xf32>, vector<8x128xf32> -> vector<8x128xf32>
    %342 = arith.addf %318, %341 : vector<8x128xf32>
    %343 = vector.extract_strided_slice %244 {offsets = [0, 19], sizes = [4, 128], strides = [1, 1]} : vector<4x256xf32> to vector<4x128xf32>
    %344 = vector.shape_cast %343 : vector<4x128xf32> to vector<4x1x128xf32>
    %c4_119 = arith.constant 4 : index
    %c0_120 = arith.constant 0 : index
    %c0_121 = arith.constant 0 : index
    %c0_122 = arith.constant 0 : index
    %345 = vector.load %arg3[%c4_119, %c0_120, %c0_121, %c0_122] : memref<9x4x8x1xf32, #tpu.memory_space<vmem>>, vector<1x4x8x1xf32>
    %346 = vector.shape_cast %345 : vector<1x4x8x1xf32> to vector<4x8x1xf32>
    %347 = vector.shape_cast %240 : vector<1x1x128xi1> to vector<1x1x128xi1>
    %348 = vector.broadcast %347 : vector<1x1x128xi1> to vector<4x8x128xi1>
    %349 = vector.shape_cast %344 : vector<4x1x128xf32> to vector<4x1x128xf32>
    %350 = vector.broadcast %349 : vector<4x1x128xf32> to vector<4x8x128xf32>
    %351 = vector.shape_cast %346 : vector<4x8x1xf32> to vector<4x8x1xf32>
    %352 = vector.broadcast %351 : vector<4x8x1xf32> to vector<4x8x128xf32>
    %353 = arith.select %348, %350, %352 : vector<4x8x128xi1>, vector<4x8x128xf32>
    %354 = vector.shape_cast %240 : vector<1x1x128xi1> to vector<1x1x128xi1>
    %355 = vector.broadcast %354 : vector<1x1x128xi1> to vector<4x8x128xi1>
    %356 = vector.shape_cast %346 : vector<4x8x1xf32> to vector<4x8x1xf32>
    %357 = vector.broadcast %356 : vector<4x8x1xf32> to vector<4x8x128xf32>
    %358 = vector.shape_cast %344 : vector<4x1x128xf32> to vector<4x1x128xf32>
    %359 = vector.broadcast %358 : vector<4x1x128xf32> to vector<4x8x128xf32>
    %360 = arith.select %355, %357, %359 : vector<4x8x128xi1>, vector<4x8x128xf32>
    %361 = arith.addf %338, %353 : vector<4x8x128xf32>
    %362 = arith.mulf %361, %360 : vector<4x8x128xf32>
    %c4_123 = arith.constant 4 : index
    %c0_124 = arith.constant 0 : index
    %c0_125 = arith.constant 0 : index
    %363 = vector.load %arg4[%c4_123, %c0_124, %c0_125] : memref<9x8x4xf32, #tpu.memory_space<vmem>>, vector<1x8x4xf32>
    %364 = vector.shape_cast %363 : vector<1x8x4xf32> to vector<8x4xf32>
    %cst_126 = arith.constant dense<0.000000e+00> : vector<8x128xf32>
    %365 = tpu.matmul %364, %343, %cst_126 {dimension_numbers = #tpu.dot_dimension_numbers<[1], [0], [0], [1], [0, 0, 1, 1], [], []>} : vector<8x4xf32>, vector<4x128xf32>, vector<8x128xf32> -> vector<8x128xf32>
    %366 = arith.addf %342, %365 : vector<8x128xf32>
    %367 = vector.extract_strided_slice %244 {offsets = [0, 20], sizes = [4, 128], strides = [1, 1]} : vector<4x256xf32> to vector<4x128xf32>
    %368 = vector.shape_cast %367 : vector<4x128xf32> to vector<4x1x128xf32>
    %c5_127 = arith.constant 5 : index
    %c0_128 = arith.constant 0 : index
    %c0_129 = arith.constant 0 : index
    %c0_130 = arith.constant 0 : index
    %369 = vector.load %arg3[%c5_127, %c0_128, %c0_129, %c0_130] : memref<9x4x8x1xf32, #tpu.memory_space<vmem>>, vector<1x4x8x1xf32>
    %370 = vector.shape_cast %369 : vector<1x4x8x1xf32> to vector<4x8x1xf32>
    %371 = vector.shape_cast %242 : vector<1x1x128xi1> to vector<1x1x128xi1>
    %372 = vector.broadcast %371 : vector<1x1x128xi1> to vector<4x8x128xi1>
    %373 = vector.shape_cast %368 : vector<4x1x128xf32> to vector<4x1x128xf32>
    %374 = vector.broadcast %373 : vector<4x1x128xf32> to vector<4x8x128xf32>
    %375 = vector.shape_cast %370 : vector<4x8x1xf32> to vector<4x8x1xf32>
    %376 = vector.broadcast %375 : vector<4x8x1xf32> to vector<4x8x128xf32>
    %377 = arith.select %372, %374, %376 : vector<4x8x128xi1>, vector<4x8x128xf32>
    %378 = vector.shape_cast %242 : vector<1x1x128xi1> to vector<1x1x128xi1>
    %379 = vector.broadcast %378 : vector<1x1x128xi1> to vector<4x8x128xi1>
    %380 = vector.shape_cast %370 : vector<4x8x1xf32> to vector<4x8x1xf32>
    %381 = vector.broadcast %380 : vector<4x8x1xf32> to vector<4x8x128xf32>
    %382 = vector.shape_cast %368 : vector<4x1x128xf32> to vector<4x1x128xf32>
    %383 = vector.broadcast %382 : vector<4x1x128xf32> to vector<4x8x128xf32>
    %384 = arith.select %379, %381, %383 : vector<4x8x128xi1>, vector<4x8x128xf32>
    %385 = arith.addf %362, %377 : vector<4x8x128xf32>
    %386 = arith.mulf %385, %384 : vector<4x8x128xf32>
    %c5_131 = arith.constant 5 : index
    %c0_132 = arith.constant 0 : index
    %c0_133 = arith.constant 0 : index
    %387 = vector.load %arg4[%c5_131, %c0_132, %c0_133] : memref<9x8x4xf32, #tpu.memory_space<vmem>>, vector<1x8x4xf32>
    %388 = vector.shape_cast %387 : vector<1x8x4xf32> to vector<8x4xf32>
    %cst_134 = arith.constant dense<0.000000e+00> : vector<8x128xf32>
    %389 = tpu.matmul %388, %367, %cst_134 {dimension_numbers = #tpu.dot_dimension_numbers<[1], [0], [0], [1], [0, 0, 1, 1], [], []>} : vector<8x4xf32>, vector<4x128xf32>, vector<8x128xf32> -> vector<8x128xf32>
    %390 = arith.addf %366, %389 : vector<8x128xf32>
    %391 = vector.extract_strided_slice %244 {offsets = [0, 36], sizes = [4, 128], strides = [1, 1]} : vector<4x256xf32> to vector<4x128xf32>
    %392 = vector.shape_cast %391 : vector<4x128xf32> to vector<4x1x128xf32>
    %c6_135 = arith.constant 6 : index
    %c0_136 = arith.constant 0 : index
    %c0_137 = arith.constant 0 : index
    %c0_138 = arith.constant 0 : index
    %393 = vector.load %arg3[%c6_135, %c0_136, %c0_137, %c0_138] : memref<9x4x8x1xf32, #tpu.memory_space<vmem>>, vector<1x4x8x1xf32>
    %394 = vector.shape_cast %393 : vector<1x4x8x1xf32> to vector<4x8x1xf32>
    %395 = vector.shape_cast %240 : vector<1x1x128xi1> to vector<1x1x128xi1>
    %396 = vector.broadcast %395 : vector<1x1x128xi1> to vector<4x8x128xi1>
    %397 = vector.shape_cast %392 : vector<4x1x128xf32> to vector<4x1x128xf32>
    %398 = vector.broadcast %397 : vector<4x1x128xf32> to vector<4x8x128xf32>
    %399 = vector.shape_cast %394 : vector<4x8x1xf32> to vector<4x8x1xf32>
    %400 = vector.broadcast %399 : vector<4x8x1xf32> to vector<4x8x128xf32>
    %401 = arith.select %396, %398, %400 : vector<4x8x128xi1>, vector<4x8x128xf32>
    %402 = vector.shape_cast %240 : vector<1x1x128xi1> to vector<1x1x128xi1>
    %403 = vector.broadcast %402 : vector<1x1x128xi1> to vector<4x8x128xi1>
    %404 = vector.shape_cast %394 : vector<4x8x1xf32> to vector<4x8x1xf32>
    %405 = vector.broadcast %404 : vector<4x8x1xf32> to vector<4x8x128xf32>
    %406 = vector.shape_cast %392 : vector<4x1x128xf32> to vector<4x1x128xf32>
    %407 = vector.broadcast %406 : vector<4x1x128xf32> to vector<4x8x128xf32>
    %408 = arith.select %403, %405, %407 : vector<4x8x128xi1>, vector<4x8x128xf32>
    %409 = arith.addf %386, %401 : vector<4x8x128xf32>
    %410 = arith.mulf %409, %408 : vector<4x8x128xf32>
    %c6_139 = arith.constant 6 : index
    %c0_140 = arith.constant 0 : index
    %c0_141 = arith.constant 0 : index
    %411 = vector.load %arg4[%c6_139, %c0_140, %c0_141] : memref<9x8x4xf32, #tpu.memory_space<vmem>>, vector<1x8x4xf32>
    %412 = vector.shape_cast %411 : vector<1x8x4xf32> to vector<8x4xf32>
    %cst_142 = arith.constant dense<0.000000e+00> : vector<8x128xf32>
    %413 = tpu.matmul %412, %391, %cst_142 {dimension_numbers = #tpu.dot_dimension_numbers<[1], [0], [0], [1], [0, 0, 1, 1], [], []>} : vector<8x4xf32>, vector<4x128xf32>, vector<8x128xf32> -> vector<8x128xf32>
    %414 = arith.addf %390, %413 : vector<8x128xf32>
    %415 = vector.extract_strided_slice %244 {offsets = [0, 37], sizes = [4, 128], strides = [1, 1]} : vector<4x256xf32> to vector<4x128xf32>
    %416 = vector.shape_cast %415 : vector<4x128xf32> to vector<4x1x128xf32>
    %c7_143 = arith.constant 7 : index
    %c0_144 = arith.constant 0 : index
    %c0_145 = arith.constant 0 : index
    %c0_146 = arith.constant 0 : index
    %417 = vector.load %arg3[%c7_143, %c0_144, %c0_145, %c0_146] : memref<9x4x8x1xf32, #tpu.memory_space<vmem>>, vector<1x4x8x1xf32>
    %418 = vector.shape_cast %417 : vector<1x4x8x1xf32> to vector<4x8x1xf32>
    %419 = vector.shape_cast %242 : vector<1x1x128xi1> to vector<1x1x128xi1>
    %420 = vector.broadcast %419 : vector<1x1x128xi1> to vector<4x8x128xi1>
    %421 = vector.shape_cast %416 : vector<4x1x128xf32> to vector<4x1x128xf32>
    %422 = vector.broadcast %421 : vector<4x1x128xf32> to vector<4x8x128xf32>
    %423 = vector.shape_cast %418 : vector<4x8x1xf32> to vector<4x8x1xf32>
    %424 = vector.broadcast %423 : vector<4x8x1xf32> to vector<4x8x128xf32>
    %425 = arith.select %420, %422, %424 : vector<4x8x128xi1>, vector<4x8x128xf32>
    %426 = vector.shape_cast %242 : vector<1x1x128xi1> to vector<1x1x128xi1>
    %427 = vector.broadcast %426 : vector<1x1x128xi1> to vector<4x8x128xi1>
    %428 = vector.shape_cast %418 : vector<4x8x1xf32> to vector<4x8x1xf32>
    %429 = vector.broadcast %428 : vector<4x8x1xf32> to vector<4x8x128xf32>
    %430 = vector.shape_cast %416 : vector<4x1x128xf32> to vector<4x1x128xf32>
    %431 = vector.broadcast %430 : vector<4x1x128xf32> to vector<4x8x128xf32>
    %432 = arith.select %427, %429, %431 : vector<4x8x128xi1>, vector<4x8x128xf32>
    %433 = arith.addf %410, %425 : vector<4x8x128xf32>
    %434 = arith.mulf %433, %432 : vector<4x8x128xf32>
    %c7_147 = arith.constant 7 : index
    %c0_148 = arith.constant 0 : index
    %c0_149 = arith.constant 0 : index
    %435 = vector.load %arg4[%c7_147, %c0_148, %c0_149] : memref<9x8x4xf32, #tpu.memory_space<vmem>>, vector<1x8x4xf32>
    %436 = vector.shape_cast %435 : vector<1x8x4xf32> to vector<8x4xf32>
    %cst_150 = arith.constant dense<0.000000e+00> : vector<8x128xf32>
    %437 = tpu.matmul %436, %415, %cst_150 {dimension_numbers = #tpu.dot_dimension_numbers<[1], [0], [0], [1], [0, 0, 1, 1], [], []>} : vector<8x4xf32>, vector<4x128xf32>, vector<8x128xf32> -> vector<8x128xf32>
    %438 = arith.addf %414, %437 : vector<8x128xf32>
    %439 = vector.extract_strided_slice %244 {offsets = [0, 38], sizes = [4, 128], strides = [1, 1]} : vector<4x256xf32> to vector<4x128xf32>
    %440 = vector.shape_cast %439 : vector<4x128xf32> to vector<4x1x128xf32>
    %c8_151 = arith.constant 8 : index
    %c0_152 = arith.constant 0 : index
    %c0_153 = arith.constant 0 : index
    %c0_154 = arith.constant 0 : index
    %441 = vector.load %arg3[%c8_151, %c0_152, %c0_153, %c0_154] : memref<9x4x8x1xf32, #tpu.memory_space<vmem>>, vector<1x4x8x1xf32>
    %442 = vector.shape_cast %441 : vector<1x4x8x1xf32> to vector<4x8x1xf32>
    %443 = vector.shape_cast %240 : vector<1x1x128xi1> to vector<1x1x128xi1>
    %444 = vector.broadcast %443 : vector<1x1x128xi1> to vector<4x8x128xi1>
    %445 = vector.shape_cast %440 : vector<4x1x128xf32> to vector<4x1x128xf32>
    %446 = vector.broadcast %445 : vector<4x1x128xf32> to vector<4x8x128xf32>
    %447 = vector.shape_cast %442 : vector<4x8x1xf32> to vector<4x8x1xf32>
    %448 = vector.broadcast %447 : vector<4x8x1xf32> to vector<4x8x128xf32>
    %449 = arith.select %444, %446, %448 : vector<4x8x128xi1>, vector<4x8x128xf32>
    %450 = vector.shape_cast %240 : vector<1x1x128xi1> to vector<1x1x128xi1>
    %451 = vector.broadcast %450 : vector<1x1x128xi1> to vector<4x8x128xi1>
    %452 = vector.shape_cast %442 : vector<4x8x1xf32> to vector<4x8x1xf32>
    %453 = vector.broadcast %452 : vector<4x8x1xf32> to vector<4x8x128xf32>
    %454 = vector.shape_cast %440 : vector<4x1x128xf32> to vector<4x1x128xf32>
    %455 = vector.broadcast %454 : vector<4x1x128xf32> to vector<4x8x128xf32>
    %456 = arith.select %451, %453, %455 : vector<4x8x128xi1>, vector<4x8x128xf32>
    %457 = arith.addf %434, %449 : vector<4x8x128xf32>
    %458 = arith.mulf %457, %456 : vector<4x8x128xf32>
    %c8_155 = arith.constant 8 : index
    %c0_156 = arith.constant 0 : index
    %c0_157 = arith.constant 0 : index
    %459 = vector.load %arg4[%c8_155, %c0_156, %c0_157] : memref<9x8x4xf32, #tpu.memory_space<vmem>>, vector<1x8x4xf32>
    %460 = vector.shape_cast %459 : vector<1x8x4xf32> to vector<8x4xf32>
    %cst_158 = arith.constant dense<0.000000e+00> : vector<8x128xf32>
    %461 = tpu.matmul %460, %439, %cst_158 {dimension_numbers = #tpu.dot_dimension_numbers<[1], [0], [0], [1], [0, 0, 1, 1], [], []>} : vector<8x4xf32>, vector<4x128xf32>, vector<8x128xf32> -> vector<8x128xf32>
    %462 = arith.addf %438, %461 : vector<8x128xf32>
    %cst_159 = arith.constant dense<0.000000e+00> : vector<8x128xf32>
    %463 = vector.multi_reduction <add>, %458, %cst_159 [0] : vector<4x8x128xf32> to vector<8x128xf32>
    %464 = arith.negf %463 : vector<8x128xf32>
    %465 = math.exp %464 : vector<8x128xf32>
    %cst_160 = arith.constant 1.000000e+00 : f32
    %466 = vector.broadcast %cst_160 : f32 to vector<8x128xf32>
    %467 = arith.addf %466, %465 : vector<8x128xf32>
    %468 = arith.divf %466, %467 : vector<8x128xf32>
    %469 = vector.broadcast %0 : vector<8x1xf32> to vector<8x128xf32>
    %470 = arith.addf %462, %469 : vector<8x128xf32>
    %471 = arith.mulf %468, %470 : vector<8x128xf32>
    %c0_161 = arith.constant 0 : index
    %c0_162 = arith.constant 0 : index
    %c128_163 = arith.constant 128 : index
    %472 = vector.load %arg6[%c0_161, %c0_162, %c128_163] : memref<1x8x384xf32, #tpu.memory_space<vmem>>, vector<1x8x128xf32>
    %473 = vector.shape_cast %472 : vector<1x8x128xf32> to vector<8x128xf32>
    %474 = vector.shape_cast %471 : vector<8x128xf32> to vector<1x8x128xf32>
    tpu.vector_store %arg6[%c0_161, %c0_162, %c128_163], %474 {strides = array<i32>} : memref<1x8x384xf32, #tpu.memory_space<vmem>>, vector<1x8x128xf32>,
    %c0_164 = arith.constant 0 : index
    %c0_165 = arith.constant 0 : index
    %c256 = arith.constant 256 : index
    %475 = vector.load %arg1[%c0_164, %c0_165, %c256] : memref<1x1x384xi32, #tpu.memory_space<vmem>>, vector<1x1x128xi32>
    %c0_i32_166 = arith.constant 0 : i32
    %476 = vector.broadcast %c0_i32_166 : i32 to vector<1x1x128xi32>
    %477 = arith.cmpi eq, %475, %476 : vector<1x1x128xi32>
    %c0_i32_167 = arith.constant 0 : i32
    %478 = vector.broadcast %c0_i32_167 : i32 to vector<1x1x128xi32>
    %479 = arith.cmpi ne, %475, %478 : vector<1x1x128xi32>
    %c0_168 = arith.constant 0 : index
    %c0_169 = arith.constant 0 : index
    %c256_170 = arith.constant 256 : index
    %480 = vector.load %arg2[%c0_168, %c0_169, %c256_170] : memref<1x4x512xf32, #tpu.memory_space<vmem>>, vector<1x4x256xf32>
    %481 = vector.shape_cast %480 : vector<1x4x256xf32> to vector<4x256xf32>
    %cst_171 = arith.constant 0.000000e+00 : f32
    %482 = vector.broadcast %cst_171 : f32 to vector<4x8x128xf32>
    %cst_172 = arith.constant 0.000000e+00 : f32
    %483 = vector.broadcast %cst_172 : f32 to vector<8x128xf32>
    %484 = vector.extract_strided_slice %481 {offsets = [0, 0], sizes = [4, 128], strides = [1, 1]} : vector<4x256xf32> to vector<4x128xf32>
    %485 = vector.shape_cast %484 : vector<4x128xf32> to vector<4x1x128xf32>
    %c0_173 = arith.constant 0 : index
    %c0_174 = arith.constant 0 : index
    %c0_175 = arith.constant 0 : index
    %c0_176 = arith.constant 0 : index
    %486 = vector.load %arg3[%c0_173, %c0_174, %c0_175, %c0_176] : memref<9x4x8x1xf32, #tpu.memory_space<vmem>>, vector<1x4x8x1xf32>
    %487 = vector.shape_cast %486 : vector<1x4x8x1xf32> to vector<4x8x1xf32>
    %488 = vector.shape_cast %477 : vector<1x1x128xi1> to vector<1x1x128xi1>
    %489 = vector.broadcast %488 : vector<1x1x128xi1> to vector<4x8x128xi1>
    %490 = vector.shape_cast %485 : vector<4x1x128xf32> to vector<4x1x128xf32>
    %491 = vector.broadcast %490 : vector<4x1x128xf32> to vector<4x8x128xf32>
    %492 = vector.shape_cast %487 : vector<4x8x1xf32> to vector<4x8x1xf32>
    %493 = vector.broadcast %492 : vector<4x8x1xf32> to vector<4x8x128xf32>
    %494 = arith.select %489, %491, %493 : vector<4x8x128xi1>, vector<4x8x128xf32>
    %495 = vector.shape_cast %477 : vector<1x1x128xi1> to vector<1x1x128xi1>
    %496 = vector.broadcast %495 : vector<1x1x128xi1> to vector<4x8x128xi1>
    %497 = vector.shape_cast %487 : vector<4x8x1xf32> to vector<4x8x1xf32>
    %498 = vector.broadcast %497 : vector<4x8x1xf32> to vector<4x8x128xf32>
    %499 = vector.shape_cast %485 : vector<4x1x128xf32> to vector<4x1x128xf32>
    %500 = vector.broadcast %499 : vector<4x1x128xf32> to vector<4x8x128xf32>
    %501 = arith.select %496, %498, %500 : vector<4x8x128xi1>, vector<4x8x128xf32>
    %502 = arith.addf %482, %494 : vector<4x8x128xf32>
    %503 = arith.mulf %502, %501 : vector<4x8x128xf32>
    %c0_177 = arith.constant 0 : index
    %c0_178 = arith.constant 0 : index
    %c0_179 = arith.constant 0 : index
    %504 = vector.load %arg4[%c0_177, %c0_178, %c0_179] : memref<9x8x4xf32, #tpu.memory_space<vmem>>, vector<1x8x4xf32>
    %505 = vector.shape_cast %504 : vector<1x8x4xf32> to vector<8x4xf32>
    %cst_180 = arith.constant dense<0.000000e+00> : vector<8x128xf32>
    %506 = tpu.matmul %505, %484, %cst_180 {dimension_numbers = #tpu.dot_dimension_numbers<[1], [0], [0], [1], [0, 0, 1, 1], [], []>} : vector<8x4xf32>, vector<4x128xf32>, vector<8x128xf32> -> vector<8x128xf32>
    %507 = arith.addf %483, %506 : vector<8x128xf32>
    %508 = vector.extract_strided_slice %481 {offsets = [0, 1], sizes = [4, 128], strides = [1, 1]} : vector<4x256xf32> to vector<4x128xf32>
    %509 = vector.shape_cast %508 : vector<4x128xf32> to vector<4x1x128xf32>
    %c1_181 = arith.constant 1 : index
    %c0_182 = arith.constant 0 : index
    %c0_183 = arith.constant 0 : index
    %c0_184 = arith.constant 0 : index
    %510 = vector.load %arg3[%c1_181, %c0_182, %c0_183, %c0_184] : memref<9x4x8x1xf32, #tpu.memory_space<vmem>>, vector<1x4x8x1xf32>
    %511 = vector.shape_cast %510 : vector<1x4x8x1xf32> to vector<4x8x1xf32>
    %512 = vector.shape_cast %479 : vector<1x1x128xi1> to vector<1x1x128xi1>
    %513 = vector.broadcast %512 : vector<1x1x128xi1> to vector<4x8x128xi1>
    %514 = vector.shape_cast %509 : vector<4x1x128xf32> to vector<4x1x128xf32>
    %515 = vector.broadcast %514 : vector<4x1x128xf32> to vector<4x8x128xf32>
    %516 = vector.shape_cast %511 : vector<4x8x1xf32> to vector<4x8x1xf32>
    %517 = vector.broadcast %516 : vector<4x8x1xf32> to vector<4x8x128xf32>
    %518 = arith.select %513, %515, %517 : vector<4x8x128xi1>, vector<4x8x128xf32>
    %519 = vector.shape_cast %479 : vector<1x1x128xi1> to vector<1x1x128xi1>
    %520 = vector.broadcast %519 : vector<1x1x128xi1> to vector<4x8x128xi1>
    %521 = vector.shape_cast %511 : vector<4x8x1xf32> to vector<4x8x1xf32>
    %522 = vector.broadcast %521 : vector<4x8x1xf32> to vector<4x8x128xf32>
    %523 = vector.shape_cast %509 : vector<4x1x128xf32> to vector<4x1x128xf32>
    %524 = vector.broadcast %523 : vector<4x1x128xf32> to vector<4x8x128xf32>
    %525 = arith.select %520, %522, %524 : vector<4x8x128xi1>, vector<4x8x128xf32>
    %526 = arith.addf %503, %518 : vector<4x8x128xf32>
    %527 = arith.mulf %526, %525 : vector<4x8x128xf32>
    %c1_185 = arith.constant 1 : index
    %c0_186 = arith.constant 0 : index
    %c0_187 = arith.constant 0 : index
    %528 = vector.load %arg4[%c1_185, %c0_186, %c0_187] : memref<9x8x4xf32, #tpu.memory_space<vmem>>, vector<1x8x4xf32>
    %529 = vector.shape_cast %528 : vector<1x8x4xf32> to vector<8x4xf32>
    %cst_188 = arith.constant dense<0.000000e+00> : vector<8x128xf32>
    %530 = tpu.matmul %529, %508, %cst_188 {dimension_numbers = #tpu.dot_dimension_numbers<[1], [0], [0], [1], [0, 0, 1, 1], [], []>} : vector<8x4xf32>, vector<4x128xf32>, vector<8x128xf32> -> vector<8x128xf32>
    %531 = arith.addf %507, %530 : vector<8x128xf32>
    %532 = vector.extract_strided_slice %481 {offsets = [0, 2], sizes = [4, 128], strides = [1, 1]} : vector<4x256xf32> to vector<4x128xf32>
    %533 = vector.shape_cast %532 : vector<4x128xf32> to vector<4x1x128xf32>
    %c2_189 = arith.constant 2 : index
    %c0_190 = arith.constant 0 : index
    %c0_191 = arith.constant 0 : index
    %c0_192 = arith.constant 0 : index
    %534 = vector.load %arg3[%c2_189, %c0_190, %c0_191, %c0_192] : memref<9x4x8x1xf32, #tpu.memory_space<vmem>>, vector<1x4x8x1xf32>
    %535 = vector.shape_cast %534 : vector<1x4x8x1xf32> to vector<4x8x1xf32>
    %536 = vector.shape_cast %477 : vector<1x1x128xi1> to vector<1x1x128xi1>
    %537 = vector.broadcast %536 : vector<1x1x128xi1> to vector<4x8x128xi1>
    %538 = vector.shape_cast %533 : vector<4x1x128xf32> to vector<4x1x128xf32>
    %539 = vector.broadcast %538 : vector<4x1x128xf32> to vector<4x8x128xf32>
    %540 = vector.shape_cast %535 : vector<4x8x1xf32> to vector<4x8x1xf32>
    %541 = vector.broadcast %540 : vector<4x8x1xf32> to vector<4x8x128xf32>
    %542 = arith.select %537, %539, %541 : vector<4x8x128xi1>, vector<4x8x128xf32>
    %543 = vector.shape_cast %477 : vector<1x1x128xi1> to vector<1x1x128xi1>
    %544 = vector.broadcast %543 : vector<1x1x128xi1> to vector<4x8x128xi1>
    %545 = vector.shape_cast %535 : vector<4x8x1xf32> to vector<4x8x1xf32>
    %546 = vector.broadcast %545 : vector<4x8x1xf32> to vector<4x8x128xf32>
    %547 = vector.shape_cast %533 : vector<4x1x128xf32> to vector<4x1x128xf32>
    %548 = vector.broadcast %547 : vector<4x1x128xf32> to vector<4x8x128xf32>
    %549 = arith.select %544, %546, %548 : vector<4x8x128xi1>, vector<4x8x128xf32>
    %550 = arith.addf %527, %542 : vector<4x8x128xf32>
    %551 = arith.mulf %550, %549 : vector<4x8x128xf32>
    %c2_193 = arith.constant 2 : index
    %c0_194 = arith.constant 0 : index
    %c0_195 = arith.constant 0 : index
    %552 = vector.load %arg4[%c2_193, %c0_194, %c0_195] : memref<9x8x4xf32, #tpu.memory_space<vmem>>, vector<1x8x4xf32>
    %553 = vector.shape_cast %552 : vector<1x8x4xf32> to vector<8x4xf32>
    %cst_196 = arith.constant dense<0.000000e+00> : vector<8x128xf32>
    %554 = tpu.matmul %553, %532, %cst_196 {dimension_numbers = #tpu.dot_dimension_numbers<[1], [0], [0], [1], [0, 0, 1, 1], [], []>} : vector<8x4xf32>, vector<4x128xf32>, vector<8x128xf32> -> vector<8x128xf32>
    %555 = arith.addf %531, %554 : vector<8x128xf32>
    %556 = vector.extract_strided_slice %481 {offsets = [0, 18], sizes = [4, 128], strides = [1, 1]} : vector<4x256xf32> to vector<4x128xf32>
    %557 = vector.shape_cast %556 : vector<4x128xf32> to vector<4x1x128xf32>
    %c3_197 = arith.constant 3 : index
    %c0_198 = arith.constant 0 : index
    %c0_199 = arith.constant 0 : index
    %c0_200 = arith.constant 0 : index
    %558 = vector.load %arg3[%c3_197, %c0_198, %c0_199, %c0_200] : memref<9x4x8x1xf32, #tpu.memory_space<vmem>>, vector<1x4x8x1xf32>
    %559 = vector.shape_cast %558 : vector<1x4x8x1xf32> to vector<4x8x1xf32>
    %560 = vector.shape_cast %479 : vector<1x1x128xi1> to vector<1x1x128xi1>
    %561 = vector.broadcast %560 : vector<1x1x128xi1> to vector<4x8x128xi1>
    %562 = vector.shape_cast %557 : vector<4x1x128xf32> to vector<4x1x128xf32>
    %563 = vector.broadcast %562 : vector<4x1x128xf32> to vector<4x8x128xf32>
    %564 = vector.shape_cast %559 : vector<4x8x1xf32> to vector<4x8x1xf32>
    %565 = vector.broadcast %564 : vector<4x8x1xf32> to vector<4x8x128xf32>
    %566 = arith.select %561, %563, %565 : vector<4x8x128xi1>, vector<4x8x128xf32>
    %567 = vector.shape_cast %479 : vector<1x1x128xi1> to vector<1x1x128xi1>
    %568 = vector.broadcast %567 : vector<1x1x128xi1> to vector<4x8x128xi1>
    %569 = vector.shape_cast %559 : vector<4x8x1xf32> to vector<4x8x1xf32>
    %570 = vector.broadcast %569 : vector<4x8x1xf32> to vector<4x8x128xf32>
    %571 = vector.shape_cast %557 : vector<4x1x128xf32> to vector<4x1x128xf32>
    %572 = vector.broadcast %571 : vector<4x1x128xf32> to vector<4x8x128xf32>
    %573 = arith.select %568, %570, %572 : vector<4x8x128xi1>, vector<4x8x128xf32>
    %574 = arith.addf %551, %566 : vector<4x8x128xf32>
    %575 = arith.mulf %574, %573 : vector<4x8x128xf32>
    %c3_201 = arith.constant 3 : index
    %c0_202 = arith.constant 0 : index
    %c0_203 = arith.constant 0 : index
    %576 = vector.load %arg4[%c3_201, %c0_202, %c0_203] : memref<9x8x4xf32, #tpu.memory_space<vmem>>, vector<1x8x4xf32>
    %577 = vector.shape_cast %576 : vector<1x8x4xf32> to vector<8x4xf32>
    %cst_204 = arith.constant dense<0.000000e+00> : vector<8x128xf32>
    %578 = tpu.matmul %577, %556, %cst_204 {dimension_numbers = #tpu.dot_dimension_numbers<[1], [0], [0], [1], [0, 0, 1, 1], [], []>} : vector<8x4xf32>, vector<4x128xf32>, vector<8x128xf32> -> vector<8x128xf32>
    %579 = arith.addf %555, %578 : vector<8x128xf32>
    %580 = vector.extract_strided_slice %481 {offsets = [0, 19], sizes = [4, 128], strides = [1, 1]} : vector<4x256xf32> to vector<4x128xf32>
    %581 = vector.shape_cast %580 : vector<4x128xf32> to vector<4x1x128xf32>
    %c4_205 = arith.constant 4 : index
    %c0_206 = arith.constant 0 : index
    %c0_207 = arith.constant 0 : index
    %c0_208 = arith.constant 0 : index
    %582 = vector.load %arg3[%c4_205, %c0_206, %c0_207, %c0_208] : memref<9x4x8x1xf32, #tpu.memory_space<vmem>>, vector<1x4x8x1xf32>
    %583 = vector.shape_cast %582 : vector<1x4x8x1xf32> to vector<4x8x1xf32>
    %584 = vector.shape_cast %477 : vector<1x1x128xi1> to vector<1x1x128xi1>
    %585 = vector.broadcast %584 : vector<1x1x128xi1> to vector<4x8x128xi1>
    %586 = vector.shape_cast %581 : vector<4x1x128xf32> to vector<4x1x128xf32>
    %587 = vector.broadcast %586 : vector<4x1x128xf32> to vector<4x8x128xf32>
    %588 = vector.shape_cast %583 : vector<4x8x1xf32> to vector<4x8x1xf32>
    %589 = vector.broadcast %588 : vector<4x8x1xf32> to vector<4x8x128xf32>
    %590 = arith.select %585, %587, %589 : vector<4x8x128xi1>, vector<4x8x128xf32>
    %591 = vector.shape_cast %477 : vector<1x1x128xi1> to vector<1x1x128xi1>
    %592 = vector.broadcast %591 : vector<1x1x128xi1> to vector<4x8x128xi1>
    %593 = vector.shape_cast %583 : vector<4x8x1xf32> to vector<4x8x1xf32>
    %594 = vector.broadcast %593 : vector<4x8x1xf32> to vector<4x8x128xf32>
    %595 = vector.shape_cast %581 : vector<4x1x128xf32> to vector<4x1x128xf32>
    %596 = vector.broadcast %595 : vector<4x1x128xf32> to vector<4x8x128xf32>
    %597 = arith.select %592, %594, %596 : vector<4x8x128xi1>, vector<4x8x128xf32>
    %598 = arith.addf %575, %590 : vector<4x8x128xf32>
    %599 = arith.mulf %598, %597 : vector<4x8x128xf32>
    %c4_209 = arith.constant 4 : index
    %c0_210 = arith.constant 0 : index
    %c0_211 = arith.constant 0 : index
    %600 = vector.load %arg4[%c4_209, %c0_210, %c0_211] : memref<9x8x4xf32, #tpu.memory_space<vmem>>, vector<1x8x4xf32>
    %601 = vector.shape_cast %600 : vector<1x8x4xf32> to vector<8x4xf32>
    %cst_212 = arith.constant dense<0.000000e+00> : vector<8x128xf32>
    %602 = tpu.matmul %601, %580, %cst_212 {dimension_numbers = #tpu.dot_dimension_numbers<[1], [0], [0], [1], [0, 0, 1, 1], [], []>} : vector<8x4xf32>, vector<4x128xf32>, vector<8x128xf32> -> vector<8x128xf32>
    %603 = arith.addf %579, %602 : vector<8x128xf32>
    %604 = vector.extract_strided_slice %481 {offsets = [0, 20], sizes = [4, 128], strides = [1, 1]} : vector<4x256xf32> to vector<4x128xf32>
    %605 = vector.shape_cast %604 : vector<4x128xf32> to vector<4x1x128xf32>
    %c5_213 = arith.constant 5 : index
    %c0_214 = arith.constant 0 : index
    %c0_215 = arith.constant 0 : index
    %c0_216 = arith.constant 0 : index
    %606 = vector.load %arg3[%c5_213, %c0_214, %c0_215, %c0_216] : memref<9x4x8x1xf32, #tpu.memory_space<vmem>>, vector<1x4x8x1xf32>
    %607 = vector.shape_cast %606 : vector<1x4x8x1xf32> to vector<4x8x1xf32>
    %608 = vector.shape_cast %479 : vector<1x1x128xi1> to vector<1x1x128xi1>
    %609 = vector.broadcast %608 : vector<1x1x128xi1> to vector<4x8x128xi1>
    %610 = vector.shape_cast %605 : vector<4x1x128xf32> to vector<4x1x128xf32>
    %611 = vector.broadcast %610 : vector<4x1x128xf32> to vector<4x8x128xf32>
    %612 = vector.shape_cast %607 : vector<4x8x1xf32> to vector<4x8x1xf32>
    %613 = vector.broadcast %612 : vector<4x8x1xf32> to vector<4x8x128xf32>
    %614 = arith.select %609, %611, %613 : vector<4x8x128xi1>, vector<4x8x128xf32>
    %615 = vector.shape_cast %479 : vector<1x1x128xi1> to vector<1x1x128xi1>
    %616 = vector.broadcast %615 : vector<1x1x128xi1> to vector<4x8x128xi1>
    %617 = vector.shape_cast %607 : vector<4x8x1xf32> to vector<4x8x1xf32>
    %618 = vector.broadcast %617 : vector<4x8x1xf32> to vector<4x8x128xf32>
    %619 = vector.shape_cast %605 : vector<4x1x128xf32> to vector<4x1x128xf32>
    %620 = vector.broadcast %619 : vector<4x1x128xf32> to vector<4x8x128xf32>
    %621 = arith.select %616, %618, %620 : vector<4x8x128xi1>, vector<4x8x128xf32>
    %622 = arith.addf %599, %614 : vector<4x8x128xf32>
    %623 = arith.mulf %622, %621 : vector<4x8x128xf32>
    %c5_217 = arith.constant 5 : index
    %c0_218 = arith.constant 0 : index
    %c0_219 = arith.constant 0 : index
    %624 = vector.load %arg4[%c5_217, %c0_218, %c0_219] : memref<9x8x4xf32, #tpu.memory_space<vmem>>, vector<1x8x4xf32>
    %625 = vector.shape_cast %624 : vector<1x8x4xf32> to vector<8x4xf32>
    %cst_220 = arith.constant dense<0.000000e+00> : vector<8x128xf32>
    %626 = tpu.matmul %625, %604, %cst_220 {dimension_numbers = #tpu.dot_dimension_numbers<[1], [0], [0], [1], [0, 0, 1, 1], [], []>} : vector<8x4xf32>, vector<4x128xf32>, vector<8x128xf32> -> vector<8x128xf32>
    %627 = arith.addf %603, %626 : vector<8x128xf32>
    %628 = vector.extract_strided_slice %481 {offsets = [0, 36], sizes = [4, 128], strides = [1, 1]} : vector<4x256xf32> to vector<4x128xf32>
    %629 = vector.shape_cast %628 : vector<4x128xf32> to vector<4x1x128xf32>
    %c6_221 = arith.constant 6 : index
    %c0_222 = arith.constant 0 : index
    %c0_223 = arith.constant 0 : index
    %c0_224 = arith.constant 0 : index
    %630 = vector.load %arg3[%c6_221, %c0_222, %c0_223, %c0_224] : memref<9x4x8x1xf32, #tpu.memory_space<vmem>>, vector<1x4x8x1xf32>
    %631 = vector.shape_cast %630 : vector<1x4x8x1xf32> to vector<4x8x1xf32>
    %632 = vector.shape_cast %477 : vector<1x1x128xi1> to vector<1x1x128xi1>
    %633 = vector.broadcast %632 : vector<1x1x128xi1> to vector<4x8x128xi1>
    %634 = vector.shape_cast %629 : vector<4x1x128xf32> to vector<4x1x128xf32>
    %635 = vector.broadcast %634 : vector<4x1x128xf32> to vector<4x8x128xf32>
    %636 = vector.shape_cast %631 : vector<4x8x1xf32> to vector<4x8x1xf32>
    %637 = vector.broadcast %636 : vector<4x8x1xf32> to vector<4x8x128xf32>
    %638 = arith.select %633, %635, %637 : vector<4x8x128xi1>, vector<4x8x128xf32>
    %639 = vector.shape_cast %477 : vector<1x1x128xi1> to vector<1x1x128xi1>
    %640 = vector.broadcast %639 : vector<1x1x128xi1> to vector<4x8x128xi1>
    %641 = vector.shape_cast %631 : vector<4x8x1xf32> to vector<4x8x1xf32>
    %642 = vector.broadcast %641 : vector<4x8x1xf32> to vector<4x8x128xf32>
    %643 = vector.shape_cast %629 : vector<4x1x128xf32> to vector<4x1x128xf32>
    %644 = vector.broadcast %643 : vector<4x1x128xf32> to vector<4x8x128xf32>
    %645 = arith.select %640, %642, %644 : vector<4x8x128xi1>, vector<4x8x128xf32>
    %646 = arith.addf %623, %638 : vector<4x8x128xf32>
    %647 = arith.mulf %646, %645 : vector<4x8x128xf32>
    %c6_225 = arith.constant 6 : index
    %c0_226 = arith.constant 0 : index
    %c0_227 = arith.constant 0 : index
    %648 = vector.load %arg4[%c6_225, %c0_226, %c0_227] : memref<9x8x4xf32, #tpu.memory_space<vmem>>, vector<1x8x4xf32>
    %649 = vector.shape_cast %648 : vector<1x8x4xf32> to vector<8x4xf32>
    %cst_228 = arith.constant dense<0.000000e+00> : vector<8x128xf32>
    %650 = tpu.matmul %649, %628, %cst_228 {dimension_numbers = #tpu.dot_dimension_numbers<[1], [0], [0], [1], [0, 0, 1, 1], [], []>} : vector<8x4xf32>, vector<4x128xf32>, vector<8x128xf32> -> vector<8x128xf32>
    %651 = arith.addf %627, %650 : vector<8x128xf32>
    %652 = vector.extract_strided_slice %481 {offsets = [0, 37], sizes = [4, 128], strides = [1, 1]} : vector<4x256xf32> to vector<4x128xf32>
    %653 = vector.shape_cast %652 : vector<4x128xf32> to vector<4x1x128xf32>
    %c7_229 = arith.constant 7 : index
    %c0_230 = arith.constant 0 : index
    %c0_231 = arith.constant 0 : index
    %c0_232 = arith.constant 0 : index
    %654 = vector.load %arg3[%c7_229, %c0_230, %c0_231, %c0_232] : memref<9x4x8x1xf32, #tpu.memory_space<vmem>>, vector<1x4x8x1xf32>
    %655 = vector.shape_cast %654 : vector<1x4x8x1xf32> to vector<4x8x1xf32>
    %656 = vector.shape_cast %479 : vector<1x1x128xi1> to vector<1x1x128xi1>
    %657 = vector.broadcast %656 : vector<1x1x128xi1> to vector<4x8x128xi1>
    %658 = vector.shape_cast %653 : vector<4x1x128xf32> to vector<4x1x128xf32>
    %659 = vector.broadcast %658 : vector<4x1x128xf32> to vector<4x8x128xf32>
    %660 = vector.shape_cast %655 : vector<4x8x1xf32> to vector<4x8x1xf32>
    %661 = vector.broadcast %660 : vector<4x8x1xf32> to vector<4x8x128xf32>
    %662 = arith.select %657, %659, %661 : vector<4x8x128xi1>, vector<4x8x128xf32>
    %663 = vector.shape_cast %479 : vector<1x1x128xi1> to vector<1x1x128xi1>
    %664 = vector.broadcast %663 : vector<1x1x128xi1> to vector<4x8x128xi1>
    %665 = vector.shape_cast %655 : vector<4x8x1xf32> to vector<4x8x1xf32>
    %666 = vector.broadcast %665 : vector<4x8x1xf32> to vector<4x8x128xf32>
    %667 = vector.shape_cast %653 : vector<4x1x128xf32> to vector<4x1x128xf32>
    %668 = vector.broadcast %667 : vector<4x1x128xf32> to vector<4x8x128xf32>
    %669 = arith.select %664, %666, %668 : vector<4x8x128xi1>, vector<4x8x128xf32>
    %670 = arith.addf %647, %662 : vector<4x8x128xf32>
    %671 = arith.mulf %670, %669 : vector<4x8x128xf32>
    %c7_233 = arith.constant 7 : index
    %c0_234 = arith.constant 0 : index
    %c0_235 = arith.constant 0 : index
    %672 = vector.load %arg4[%c7_233, %c0_234, %c0_235] : memref<9x8x4xf32, #tpu.memory_space<vmem>>, vector<1x8x4xf32>
    %673 = vector.shape_cast %672 : vector<1x8x4xf32> to vector<8x4xf32>
    %cst_236 = arith.constant dense<0.000000e+00> : vector<8x128xf32>
    %674 = tpu.matmul %673, %652, %cst_236 {dimension_numbers = #tpu.dot_dimension_numbers<[1], [0], [0], [1], [0, 0, 1, 1], [], []>} : vector<8x4xf32>, vector<4x128xf32>, vector<8x128xf32> -> vector<8x128xf32>
    %675 = arith.addf %651, %674 : vector<8x128xf32>
    %676 = vector.extract_strided_slice %481 {offsets = [0, 38], sizes = [4, 128], strides = [1, 1]} : vector<4x256xf32> to vector<4x128xf32>
    %677 = vector.shape_cast %676 : vector<4x128xf32> to vector<4x1x128xf32>
    %c8_237 = arith.constant 8 : index
    %c0_238 = arith.constant 0 : index
    %c0_239 = arith.constant 0 : index
    %c0_240 = arith.constant 0 : index
    %678 = vector.load %arg3[%c8_237, %c0_238, %c0_239, %c0_240] : memref<9x4x8x1xf32, #tpu.memory_space<vmem>>, vector<1x4x8x1xf32>
    %679 = vector.shape_cast %678 : vector<1x4x8x1xf32> to vector<4x8x1xf32>
    %680 = vector.shape_cast %477 : vector<1x1x128xi1> to vector<1x1x128xi1>
    %681 = vector.broadcast %680 : vector<1x1x128xi1> to vector<4x8x128xi1>
    %682 = vector.shape_cast %677 : vector<4x1x128xf32> to vector<4x1x128xf32>
    %683 = vector.broadcast %682 : vector<4x1x128xf32> to vector<4x8x128xf32>
    %684 = vector.shape_cast %679 : vector<4x8x1xf32> to vector<4x8x1xf32>
    %685 = vector.broadcast %684 : vector<4x8x1xf32> to vector<4x8x128xf32>
    %686 = arith.select %681, %683, %685 : vector<4x8x128xi1>, vector<4x8x128xf32>
    %687 = vector.shape_cast %477 : vector<1x1x128xi1> to vector<1x1x128xi1>
    %688 = vector.broadcast %687 : vector<1x1x128xi1> to vector<4x8x128xi1>
    %689 = vector.shape_cast %679 : vector<4x8x1xf32> to vector<4x8x1xf32>
    %690 = vector.broadcast %689 : vector<4x8x1xf32> to vector<4x8x128xf32>
    %691 = vector.shape_cast %677 : vector<4x1x128xf32> to vector<4x1x128xf32>
    %692 = vector.broadcast %691 : vector<4x1x128xf32> to vector<4x8x128xf32>
    %693 = arith.select %688, %690, %692 : vector<4x8x128xi1>, vector<4x8x128xf32>
    %694 = arith.addf %671, %686 : vector<4x8x128xf32>
    %695 = arith.mulf %694, %693 : vector<4x8x128xf32>
    %c8_241 = arith.constant 8 : index
    %c0_242 = arith.constant 0 : index
    %c0_243 = arith.constant 0 : index
    %696 = vector.load %arg4[%c8_241, %c0_242, %c0_243] : memref<9x8x4xf32, #tpu.memory_space<vmem>>, vector<1x8x4xf32>
    %697 = vector.shape_cast %696 : vector<1x8x4xf32> to vector<8x4xf32>
    %cst_244 = arith.constant dense<0.000000e+00> : vector<8x128xf32>
    %698 = tpu.matmul %697, %676, %cst_244 {dimension_numbers = #tpu.dot_dimension_numbers<[1], [0], [0], [1], [0, 0, 1, 1], [], []>} : vector<8x4xf32>, vector<4x128xf32>, vector<8x128xf32> -> vector<8x128xf32>
    %699 = arith.addf %675, %698 : vector<8x128xf32>
    %cst_245 = arith.constant dense<0.000000e+00> : vector<8x128xf32>
    %700 = vector.multi_reduction <add>, %695, %cst_245 [0] : vector<4x8x128xf32> to vector<8x128xf32>
    %701 = arith.negf %700 : vector<8x128xf32>
    %702 = math.exp %701 : vector<8x128xf32>
    %cst_246 = arith.constant 1.000000e+00 : f32
    %703 = vector.broadcast %cst_246 : f32 to vector<8x128xf32>
    %704 = arith.addf %703, %702 : vector<8x128xf32>
    %705 = arith.divf %703, %704 : vector<8x128xf32>
    %706 = vector.broadcast %0 : vector<8x1xf32> to vector<8x128xf32>
    %707 = arith.addf %699, %706 : vector<8x128xf32>
    %708 = arith.mulf %705, %707 : vector<8x128xf32>
    %c0_247 = arith.constant 0 : index
    %c0_248 = arith.constant 0 : index
    %c256_249 = arith.constant 256 : index
    %709 = vector.load %arg6[%c0_247, %c0_248, %c256_249] : memref<1x8x384xf32, #tpu.memory_space<vmem>>, vector<1x8x128xf32>
    %710 = vector.shape_cast %709 : vector<1x8x128xf32> to vector<8x128xf32>
    %711 = vector.shape_cast %708 : vector<8x128xf32> to vector<1x8x128xf32>
    tpu.vector_store %arg6[%c0_247, %c0_248, %c256_249], %711 {strides = array<i32>} : memref<1x8x384xf32, #tpu.memory_space<vmem>>, vector<1x8x128xf32>,
    return
  }
  func.func @transform_0(%arg0: i32) -> (i32, i32, i32) {
    %c0_i32 = arith.constant 0 : i32
    %c0_i32_0 = arith.constant 0 : i32
    %c0_i32_1 = arith.constant 0 : i32
    %c0_i32_2 = arith.constant 0 : i32
    return %c0_i32, %c0_i32_0, %c0_i32_1 : i32, i32, i32
  }
  func.func @transform_1(%arg0: i32) -> (i32, i32, i32) {
    %c0_i32 = arith.constant 0 : i32
    %c0_i32_0 = arith.constant 0 : i32
    %c0_i32_1 = arith.constant 0 : i32
    return %arg0, %c0_i32, %c0_i32_0 : i32, i32, i32
  }
  func.func @transform_2(%arg0: i32) -> (i32, i32, i32, i32) {
    %c0_i32 = arith.constant 0 : i32
    %c0_i32_0 = arith.constant 0 : i32
    %c0_i32_1 = arith.constant 0 : i32
    %c0_i32_2 = arith.constant 0 : i32
    %c0_i32_3 = arith.constant 0 : i32
    return %c0_i32, %c0_i32_0, %c0_i32_1, %c0_i32_2 : i32, i32, i32, i32
  }
  func.func @transform_3(%arg0: i32) -> (i32, i32, i32) {
    %c0_i32 = arith.constant 0 : i32
    %c0_i32_0 = arith.constant 0 : i32
    %c0_i32_1 = arith.constant 0 : i32
    %c0_i32_2 = arith.constant 0 : i32
    return %c0_i32, %c0_i32_0, %c0_i32_1 : i32, i32, i32
  }
  func.func @transform_4(%arg0: i32) -> (i32, i32) {
    %c0_i32 = arith.constant 0 : i32
    %c0_i32_0 = arith.constant 0 : i32
    %c0_i32_1 = arith.constant 0 : i32
    return %c0_i32, %c0_i32_0 : i32, i32
  }
  func.func @transform_5(%arg0: i32) -> (i32, i32, i32) {
    %c0_i32 = arith.constant 0 : i32
    %c0_i32_0 = arith.constant 0 : i32
    %c0_i32_1 = arith.constant 0 : i32
    return %arg0, %c0_i32, %c0_i32_0 : i32, i32, i32
  }
}

</mosaic_0001>

<llo_original>
// kernel: tpu_custom_call.1
$region0: #{tpu_custom_call.1}
  #allocation0 [shape = 'u32[]', space=smem, size = 0x4, offset = 0x4, fixed_abs, tag = 'smem constant byte address 0x4 - core index']
  #allocation1 [shape = 'u32[144,128]{1,0:T(1,128)}', space=vmem, size = 0x12000, scoped, tag = 'internal scratch']
  %s0 = inlined_call_operand.vmem [shape: s32[1,1,384], index: 0, kind: input, shape index: {}]
  %s1 = inlined_call_operand.vmem [shape: f32[2,4,512], index: 1, kind: input, shape index: {}]
  %s2 = inlined_call_operand.vmem [shape: f32[9,4,8,1], index: 2, kind: input, shape index: {}]
  %s3 = inlined_call_operand.vmem [shape: f32[9,8,4], index: 3, kind: input, shape index: {}]
  %s4 = inlined_call_operand.vmem [shape: f32[8,1], index: 4, kind: input, shape index: {}]
  %s5 = inlined_call_operand.hbm [shape: f32[2,8,384], index: 5, kind: output, shape index: {}]
  %s6 = sld [smem:[#allocation0]]
  $region53: #{tpu_custom_call.1} parent=0
    _
  %s8 = ssub.s32 1, %s6
  %s9 = scalar_select 0, %s8, %s6
  $region1: #{tpu_custom_call.1} parent=0
    #allocation2 [shape = 'u8[24576]{0}', space=vmem, size = 0x6000, scoped, tag = 'output window, operand 0']
    #allocation3 [shape = 's32[2]{0}', space=sflag, size = 0x8, scoped, tag = 'scoped memory for tpu_custom_call.1']
    %10 = vsyncpa [#allocation3], 0
    %s11 = scalar_lea.sflag [#allocation3], 1
    %12 = vsyncpa %s11, 0
    loop: start=0, step=1, limit=4
    $region2: #{tpu_custom_call.1} parent=1 // loop_pre_header
      _
    $region3: #{tpu_custom_call.1} parent=1 // loop_header
      %s14 = sphi 0, %s18
      %p15 = scmp.ge.s32.totalorder %s14, 4
      %s22 = sphi 0, %s22
      %s24 = sphi 0, %s22
      %s25 = sphi 0, %s24
      %s39 = sphi 0, %s25
      %s45 = sphi 0, %s47
      %s48 = sphi 0, %s45
      %s49 = sphi 0, %s48
      %s65 = sphi 0, %s49
      %s69 = sphi 0, %s69
      %s71 = sphi 0, %s69
      %s72 = sphi 0, %s71
      %s86 = sphi 0, %s72
      %s90 = sphi 0, %s90
      %s92 = sphi 0, %s90
      %s93 = sphi 0, %s92
      %s107 = sphi 0, %s93
      %s111 = sphi 0, %s111
      %s113 = sphi 0, %s111
      %s114 = sphi 0, %s113
      %s128 = sphi 0, %s114
      %s134 = sphi 0, %s136
      %s137 = sphi 0, %s134
      %s138 = sphi 0, %s137
      %s154 = sphi 0, %s138
    $region4: #{tpu_custom_call.1} parent=1 // loop_header_branch
      %17 = sbr.rel (%p15) target = $region8
    $region5: #{tpu_custom_call.1} parent=1 // loop_body
      %s19 = ssub.s32 %s14, 1
      %s20 = ssub.s32 %s14, 2
      %s21 = sadd.s32 %s14, 1
      %s23 = sadd.s32 %s22, 1
      %p26 = scmp.eq.s32.totalorder %s14, 1
      %p27 = scmp.ne.s32.totalorder %s22, %s24
      %p28 = scmp.eq.s32.totalorder %s14, 0
      %p29 = por %p27, %p28
      %p30 = scmp.ne.s32.totalorder %s22, %s24
      %p31 = scmp.eq.s32.totalorder %s19, 1
      %p32 = por %p30, %p31
      %p33 = scmp.ne.s32.totalorder %s24, %s25
      %p34 = scmp.eq.s32.totalorder %s19, 0
      %p35 = por %p33, %p34
      %p36 = scmp.ne.s32.totalorder %s24, %s25
      %p37 = scmp.eq.s32.totalorder %s20, 1
      %p38 = por %p36, %p37
      %p40 = scmp.ne.s32.totalorder %s25, %s39
      %p41 = scmp.eq.s32.totalorder %s20, 0
      %p42 = por %p40, %p41
      %s43 = ssub.s32 %s14, %s21
      %p44 = scmp.eq.s32.totalorder %s43, 0
      %s46 = sadd.s32 %s45, 1
      %s47 = scalar_select %p44, %s45, %s46
      %p50 = pneg %p44
      %p51 = scmp.eq.s32.totalorder %s14, 1
      %p52 = por %p50, %p51
      %p53 = scmp.ne.s32.totalorder %s45, %s48
      %p54 = scmp.eq.s32.totalorder %s14, 0
      %p55 = por %p53, %p54
      %p56 = scmp.ne.s32.totalorder %s45, %s48
      %p57 = scmp.eq.s32.totalorder %s19, 1
      %p58 = por %p56, %p57
      %p59 = scmp.ne.s32.totalorder %s48, %s49
      %p60 = scmp.eq.s32.totalorder %s19, 0
      %p61 = por %p59, %p60
      %p62 = scmp.ne.s32.totalorder %s48, %s49
      %p63 = scmp.eq.s32.totalorder %s20, 1
      %p64 = por %p62, %p63
      %p66 = scmp.ne.s32.totalorder %s49, %s65
      %p67 = scmp.eq.s32.totalorder %s20, 0
      %p68 = por %p66, %p67
      %s70 = sadd.s32 %s69, 1
      %p73 = scmp.eq.s32.totalorder %s14, 1
      %p74 = scmp.ne.s32.totalorder %s69, %s71
      %p75 = scmp.eq.s32.totalorder %s14, 0
      %p76 = por %p74, %p75
      %p77 = scmp.ne.s32.totalorder %s69, %s71
      %p78 = scmp.eq.s32.totalorder %s19, 1
      %p79 = por %p77, %p78
      %p80 = scmp.ne.s32.totalorder %s71, %s72
      %p81 = scmp.eq.s32.totalorder %s19, 0
      %p82 = por %p80, %p81
      %p83 = scmp.ne.s32.totalorder %s71, %s72
      %p84 = scmp.eq.s32.totalorder %s20, 1
      %p85 = por %p83, %p84
      %p87 = scmp.ne.s32.totalorder %s72, %s86
      %p88 = scmp.eq.s32.totalorder %s20, 0
      %p89 = por %p87, %p88
      %s91 = sadd.s32 %s90, 1
      %p94 = scmp.eq.s32.totalorder %s14, 1
      %p95 = scmp.ne.s32.totalorder %s90, %s92
      %p96 = scmp.eq.s32.totalorder %s14, 0
      %p97 = por %p95, %p96
      %p98 = scmp.ne.s32.totalorder %s90, %s92
      %p99 = scmp.eq.s32.totalorder %s19, 1
      %p100 = por %p98, %p99
      %p101 = scmp.ne.s32.totalorder %s92, %s93
      %p102 = scmp.eq.s32.totalorder %s19, 0
      %p103 = por %p101, %p102
      %p104 = scmp.ne.s32.totalorder %s92, %s93
      %p105 = scmp.eq.s32.totalorder %s20, 1
      %p106 = por %p104, %p105
      %p108 = scmp.ne.s32.totalorder %s93, %s107
      %p109 = scmp.eq.s32.totalorder %s20, 0
      %p110 = por %p108, %p109
      %s112 = sadd.s32 %s111, 1
      %p115 = scmp.eq.s32.totalorder %s14, 1
      %p116 = scmp.ne.s32.totalorder %s111, %s113
      %p117 = scmp.eq.s32.totalorder %s14, 0
      %p118 = por %p116, %p117
      %p119 = scmp.ne.s32.totalorder %s111, %s113
      %p120 = scmp.eq.s32.totalorder %s19, 1
      %p121 = por %p119, %p120
      %p122 = scmp.ne.s32.totalorder %s113, %s114
      %p123 = scmp.eq.s32.totalorder %s19, 0
      %p124 = por %p122, %p123
      %p125 = scmp.ne.s32.totalorder %s113, %s114
      %p126 = scmp.eq.s32.totalorder %s20, 1
      %p127 = por %p125, %p126
      %p129 = scmp.ne.s32.totalorder %s114, %s128
      %p130 = scmp.eq.s32.totalorder %s20, 0
      %p131 = por %p129, %p130
      %s132 = ssub.s32 %s14, %s21
      %p133 = scmp.eq.s32.totalorder %s132, 0
      %s135 = sadd.s32 %s134, 1
      %s136 = scalar_select %p133, %s134, %s135
      %p139 = pneg %p133
      %p140 = scmp.eq.s32.totalorder %s14, 1
      %p141 = por %p139, %p140
      %p142 = scmp.ne.s32.totalorder %s134, %s137
      %p143 = scmp.eq.s32.totalorder %s14, 0
      %p144 = por %p142, %p143
      %p145 = scmp.ne.s32.totalorder %s134, %s137
      %p146 = scmp.eq.s32.totalorder %s19, 1
      %p147 = por %p145, %p146
      %p148 = scmp.ne.s32.totalorder %s137, %s138
      %p149 = scmp.eq.s32.totalorder %s19, 0
      %p150 = por %p148, %p149
      %p151 = scmp.ne.s32.totalorder %s137, %s138
      %p152 = scmp.eq.s32.totalorder %s20, 1
      %p153 = por %p151, %p152
      %p155 = scmp.ne.s32.totalorder %s138, %s154
      %p156 = scmp.eq.s32.totalorder %s20, 0
      %p157 = por %p155, %p156
      %p158 = scmp.le.s32.totalorder 1, %s14
      %p159 = scmp.lt.s32.totalorder %s14, 3
      %p160 = pnand %p158, %p159
      %p161 = pneg %p160
      // Predicated region
      $region9: #{tpu_custom_call.1} parent=5 // pred_check
        _
      $region10: #{tpu_custom_call.1} parent=5 // pred_check_branch
        %163 = sbr.rel (%p160) target = $region12
      $region11: #{tpu_custom_call.1} parent=5 // pred_region
        %s164 = ssub.s32 %s14, 1
        // Predicated region
        $region13: #{tpu_custom_call.1} parent=11 // pred_check
          %p165 = pneg %p35
        $region14: #{tpu_custom_call.1} parent=11 // pred_check_branch
          %167 = sbr.rel (%p165) target = $region16
        $region15: #{tpu_custom_call.1} parent=11 // pred_region
          _
        $region16: #{tpu_custom_call.1} parent=11 // pred_fallthru
          _
        // Predicated region
        $region17: #{tpu_custom_call.1} parent=11 // pred_check
          %p168 = pneg %p82
        $region18: #{tpu_custom_call.1} parent=11 // pred_check_branch
          %170 = sbr.rel (%p168) target = $region20
        $region19: #{tpu_custom_call.1} parent=11 // pred_region
          _
        $region20: #{tpu_custom_call.1} parent=11 // pred_fallthru
          _
        // Predicated region
        $region21: #{tpu_custom_call.1} parent=11 // pred_check
          %p171 = pneg %p103
        $region22: #{tpu_custom_call.1} parent=11 // pred_check_branch
          %173 = sbr.rel (%p171) target = $region24
        $region23: #{tpu_custom_call.1} parent=11 // pred_region
          _
        $region24: #{tpu_custom_call.1} parent=11 // pred_fallthru
          _
        // Predicated region
        $region25: #{tpu_custom_call.1} parent=11 // pred_check
          %p174 = pneg %p124
        $region26: #{tpu_custom_call.1} parent=11 // pred_check_branch
          %176 = sbr.rel (%p174) target = $region28
        $region27: #{tpu_custom_call.1} parent=11 // pred_region
          _
        $region28: #{tpu_custom_call.1} parent=11 // pred_fallthru
          _
      $region12: #{tpu_custom_call.1} parent=5 // pred_fallthru
        _
      %p177 = scmp.lt.s32.totalorder %s14, 2
      // Predicated region
      $region29: #{tpu_custom_call.1} parent=5 // pred_check
        %p178 = pneg %p177
      $region30: #{tpu_custom_call.1} parent=5 // pred_check_branch
        %180 = sbr.rel (%p178) target = $region32
      $region31: #{tpu_custom_call.1} parent=5 // pred_region
        // Predicated region
        $region33: #{tpu_custom_call.1} parent=31 // pred_check
          %p181 = pneg %p55
        $region34: #{tpu_custom_call.1} parent=31 // pred_check_branch
          %183 = sbr.rel (%p181) target = $region36
        $region35: #{tpu_custom_call.1} parent=31 // pred_region
          %p184 = scmp.lt.s32.totalorder %s14, 1
          %s185 = scalar_select %p184, %s14, 1
          %s186 = smul.addr %s185, 4
          %s187 = smul.addr %s186, 4
          %s188 = scalar_lea.vmem %s1, %s187
        $region36: #{tpu_custom_call.1} parent=31 // pred_fallthru
          _
      $region32: #{tpu_custom_call.1} parent=5 // pred_fallthru
        _
      %p189 = scmp.le.s32.totalorder 1, %s14
      %p190 = scmp.lt.s32.totalorder %s14, 3
      %p191 = pnand %p189, %p190
      %p192 = pneg %p191
      // Predicated region
      $region37: #{tpu_custom_call.1} parent=5 // pred_check
        _
      $region38: #{tpu_custom_call.1} parent=5 // pred_check_branch
        %194 = sbr.rel (%p191) target = $region40
      $region39: #{tpu_custom_call.1} parent=5 // pred_region
        %s195 = ssub.s32 %s14, 1
        %p196 = pneg %p35
        %p197 = pneg %p32
        %p198 = scmp.lt.s32.totalorder %s19, 1
        %s199 = scalar_select %p198, %s19, 1
        %s200 = smul.addr %s199, 4
        %s201 = smul.addr %s200, 4
        %s202 = scalar_lea.vmem %s1, %s201
        %p203 = pneg %p61
        %p204 = pneg %p58
        %p205 = pneg %p82
        %p206 = pneg %p79
        %p207 = pneg %p103
        %p208 = pneg %p100
        %p209 = pneg %p124
        %p210 = pneg %p121
        %p211 = pneg %p150
        %p212 = pneg %p147
        %s213 = sand.u32 %s137, 1
        %s214 = scalar_lea.sflag [#allocation3], %s213
        %s215 = sand.u32 %s137, 1
        %s216 = smul.addr %s215, 24
        %s217 = scalar_lea.vmem [#allocation2], %s216
        %p218 = scmp.lt.s32.totalorder %s19, 1
        %s219 = scalar_select %p218, %s19, 1
        %s220 = smul.addr %s219, 4
        %s221 = smul.addr %s220, 4
        %s222 = scalar_lea.vmem %s1, %s221
        %v223 = vld [vmem:[%s4] sm:$0xff]
        %v224 = vld [vmem:[%s0] sm:$0x1]
        %vm225 = vcmp.eq.s32.totalorder %v224, 0
        %vm226 = vcmp.ne.s32.totalorder %v224, 0
        %v227 = vld [vmem:[%s222] sm:$0xff]
        %v230 = vunpack.c.l.s4 1966171168
        %v231 = vunpack.c.0.s8 %v230
        %v232 = vlaneseq
        %v233 = vshrl.u32 %v232, 7
        %v234 = vsub.s32 %v231, %v233
        %v235 = vrot.slane %v227, %v234
        %v236 = vcombine.high %v235, %v235
        %v238 = vunpack.c.l.s4 1966171168
        %v239 = vunpack.c.0.s8 %v238
        %v240 = vlaneseq
        %v241 = vshrl.u32 %v240, 7
        %v242 = vsub.s32 %v239, %v241
        %v243 = vrot.slane %v235, %v242
        %v245 = vunpack.c.l.s4 1966171168
        %v246 = vunpack.c.0.s8 %v245
        %v247 = vlaneseq
        %v248 = vshrl.u32 %v247, 7
        %v249 = vsub.s32 %v246, %v248
        %v250 = vrot.slane %v236, %v249
        %v251 = vcombine.high %v243, %v243
        %v252 = vcombine.high %v250, %v250
        %v253 = vld [vmem:[%s2] sm:$0xff]
        %v254 = vld [vmem:[%s2 + $0x8] sm:$0xff]
        %v255 = vld [vmem:[%s2 + $0x10] sm:$0xff]
        %v256 = vld [vmem:[%s2 + $0x18] sm:$0xff]
        %v257 = vsel %vm225, 1, 0
        %v258 = vlaneseq
        %v259 = vshrl.u32 %v258, 7
        %v260 = vsub.s32 0, %v259
        %v261 = vrot.slane %v257, %v260
        %vm262 = vcmp.eq.s32.totalorder %v261, 1
        %v263 = vlaneseq
        %v264 = vshrl.u32 %v263, 7
        %v265 = vsub.s32 0, %v264
        %v266 = vrot.slane %v243, %v265
        %v267 = vlaneseq
        %v268 = vshrl.u32 %v267, 7
        %v269 = vsub.s32 0, %v268
        %v270 = vrot.slane %v250, %v269
        %v271 = vlaneseq
        %v272 = vshrl.u32 %v271, 7
        %v273 = vsub.s32 0, %v272
        %v274 = vrot.slane %v251, %v273
        %v275 = vlaneseq
        %v276 = vshrl.u32 %v275, 7
        %v277 = vsub.s32 0, %v276
        %v278 = vrot.slane %v252, %v277
        %284 = vset.pattern.permute.xlu0 0
        %285 = vperm.xlu0 %284, %v253
        %v286 = vpop.permute.xlu0 %285
        %289 = vset.pattern.permute.xlu0 0
        %290 = vperm.xlu0 %289, %v254
        %v291 = vpop.permute.xlu0 %290
        %294 = vset.pattern.permute.xlu0 0
        %295 = vperm.xlu0 %294, %v255
        %v296 = vpop.permute.xlu0 %295
        %299 = vset.pattern.permute.xlu0 0
        %300 = vperm.xlu0 %299, %v256
        %v301 = vpop.permute.xlu0 %300
        %v303 = vsel %vm262, %v266, %v286
        %v304 = vsel %vm262, %v270, %v291
        %v305 = vsel %vm262, %v274, %v296
        %v306 = vsel %vm262, %v278, %v301
        %v307 = vsel %vm262, %v286, %v266
        %v308 = vsel %vm262, %v291, %v270
        %v309 = vsel %vm262, %v296, %v274
        %v310 = vsel %vm262, %v301, %v278
        %v311 = vadd.f32 %v303, 0.0
        %v312 = vadd.f32 %v304, 0.0
        %v313 = vadd.f32 %v305, 0.0
        %v314 = vadd.f32 %v306, 0.0
        %v315 = vmul.f32 %v311, %v307
        %v316 = vmul.f32 %v312, %v308
        %v317 = vmul.f32 %v313, %v309
        %v318 = vmul.f32 %v314, %v310
        %v319 = vld [vmem:[%s3] sm:$0xff]
        %s320 = scalar_lea.vmem %s2, 32
        %v321 = vld [vmem:[%s320] sm:$0xff]
        %v322 = vld [vmem:[%s320 + $0x8] sm:$0xff]
        %v323 = vld [vmem:[%s320 + $0x10] sm:$0xff]
        %v324 = vld [vmem:[%s320 + $0x18] sm:$0xff]
        %v325 = vsel %vm226, 1, 0
        %v326 = vlaneseq
        %v327 = vshrl.u32 %v326, 7
        %v328 = vsub.s32 0, %v327
        %v329 = vrot.slane %v325, %v328
        %vm330 = vcmp.eq.s32.totalorder %v329, 1
        %v331 = vlaneseq
        %v332 = vshrl.u32 %v331, 7
        %v333 = vsub.s32 1, %v332
        %v334 = vrot.slane %v243, %v333
        %v335 = vlaneseq
        %v336 = vshrl.u32 %v335, 7
        %v337 = vsub.s32 1, %v336
        %v338 = vrot.slane %v250, %v337
        %v339 = vlaneseq
        %v340 = vshrl.u32 %v339, 7
        %v341 = vsub.s32 1, %v340
        %v342 = vrot.slane %v251, %v341
        %v343 = vlaneseq
        %v344 = vshrl.u32 %v343, 7
        %v345 = vsub.s32 1, %v344
        %v346 = vrot.slane %v252, %v345
        %348 = vset.pattern.permute.xlu0 0
        %349 = vperm.xlu0 %348, %v321
        %v350 = vpop.permute.xlu0 %349
        %353 = vset.pattern.permute.xlu0 0
        %354 = vperm.xlu0 %353, %v322
        %v355 = vpop.permute.xlu0 %354
        %358 = vset.pattern.permute.xlu0 0
        %359 = vperm.xlu0 %358, %v323
        %v360 = vpop.permute.xlu0 %359
        %363 = vset.pattern.permute.xlu0 0
        %364 = vperm.xlu0 %363, %v324
        %v365 = vpop.permute.xlu0 %364
        %367 = vrot.lane.b32.xlu0 %v266, 127
        %v368 = vpop.permute.xlu0 %367
        %369 = vrot.lane.b32.xlu0 %v334, 127
        %v370 = vpop.permute.xlu0 %369
        %371 = vrot.lane.b32.xlu0 %v270, 127
        %v372 = vpop.permute.xlu0 %371
        %373 = vrot.lane.b32.xlu0 %v338, 127
        %v374 = vpop.permute.xlu0 %373
        %375 = vrot.lane.b32.xlu0 %v274, 127
        %v376 = vpop.permute.xlu0 %375
        %377 = vrot.lane.b32.xlu0 %v342, 127
        %v378 = vpop.permute.xlu0 %377
        %379 = vrot.lane.b32.xlu0 %v278, 127
        %v380 = vpop.permute.xlu0 %379
        %381 = vrot.lane.b32.xlu0 %v346, 127
        %v382 = vpop.permute.xlu0 %381
        %vm383 = vcmask 1039360
        %v384 = vsel %vm383, %v368, %v370
        %v385 = vsel %vm383, %v372, %v374
        %v386 = vsel %vm383, %v376, %v378
        %v387 = vsel %vm383, %v380, %v382
        %v392 = vsel %vm330, %v384, %v350
        %v393 = vsel %vm330, %v385, %v355
        %v394 = vsel %vm330, %v386, %v360
        %v395 = vsel %vm330, %v387, %v365
        %v396 = vsel %vm330, %v350, %v384
        %v397 = vsel %vm330, %v355, %v385
        %v398 = vsel %vm330, %v360, %v386
        %v399 = vsel %vm330, %v365, %v387
        %v400 = vadd.f32 %v315, %v392
        %v401 = vadd.f32 %v316, %v393
        %v402 = vadd.f32 %v317, %v394
        %v403 = vadd.f32 %v318, %v395
        %v404 = vmul.f32 %v400, %v396
        %v405 = vmul.f32 %v401, %v397
        %v406 = vmul.f32 %v402, %v398
        %v407 = vmul.f32 %v403, %v399
        %s408 = scalar_lea.vmem %s3, 8
        %v409 = vld [vmem:[%s408] sm:$0xff]
        %v410 = vcombine.high %v227, %v227
        %411 = vrot.lane.b32.xlu0 %v227, 127
        %v412 = vpop.permute.xlu0 %411
        %413 = vrot.lane.b32.xlu0 %v410, 127
        %v414 = vpop.permute.xlu0 %413
        %v415 = vsel %vm383, %v412, %v414
        %vm416 = vcmask 31744
        %v418 = vsel %vm416, %v409, 0
        %vm420 = vcmask 1043456
        %v421 = vsel %vm420, %v415, 0
        %423 = vmatprep.subr.mxu0 0.0
        %424 = vmatpush1.msra.mxu0 %v421
        %425 = vmatprep.subr.mxu0 0.0
        %426 = vmatpush1.msra.mxu0 0.0
        %427 = vmatprep.subr.mxu0 0.0
        %428 = vmatpush1.msra.mxu0 0.0
        %429 = vmatprep.subr.mxu0 0.0
        %430 = vmatpush1.msra.mxu0 0.0
        %431 = vmatprep.subr.mxu0 0.0
        %432 = vmatpush1.msra.mxu0 0.0
        %433 = vmatprep.subr.mxu0 0.0
        %434 = vmatpush1.msra.mxu0 0.0
        %435 = vmatprep.subr.mxu0 0.0
        %436 = vmatpush1.msra.mxu0 0.0
        %437 = vmatprep.subr.mxu0 0.0
        %438 = vmatpush1.msra.mxu0 0.0
        %439 = vmatprep.subr.mxu0 0.0
        %440 = vmatpush1.msra.mxu0 0.0
        %441 = vmatprep.subr.mxu0 0.0
        %442 = vmatpush1.msra.mxu0 0.0
        %443 = vmatprep.subr.mxu0 0.0
        %444 = vmatpush1.msra.mxu0 0.0
        %445 = vmatprep.subr.mxu0 0.0
        %446 = vmatpush1.msra.mxu0 0.0
        %447 = vmatprep.subr.mxu0 0.0
        %448 = vmatpush1.msra.mxu0 0.0
        %449 = vmatprep.subr.mxu0 0.0
        %450 = vmatpush1.msra.mxu0 0.0
        %451 = vmatprep.subr.mxu0 0.0
        %452 = vmatpush1.msra.mxu0 0.0
        %453 = vmatprep.subr.mxu0 0.0
        %454 = vmatpush1.msra.mxu0 0.0
        %455 = vmatprep.subr.mxu0 0.0
        %456 = vmatpush1.msra.mxu0 0.0
        %457 = vmatprep.subr.mxu0 0.0
        %458 = vmatpush1.msra.mxu0 0.0
        %459 = vmatprep.subr.mxu0 0.0
        %460 = vmatpush1.msra.mxu0 0.0
        %461 = vmatprep.subr.mxu0 0.0
        %462 = vmatpush1.msra.mxu0 0.0
        %463 = vmatprep.subr.mxu0 0.0
        %464 = vmatpush1.msra.mxu0 0.0
        %465 = vmatprep.subr.mxu0 0.0
        %466 = vmatpush1.msra.mxu0 0.0
        %467 = vmatprep.subr.mxu0 0.0
        %468 = vmatpush1.msra.mxu0 0.0
        %469 = vmatprep.subr.mxu0 0.0
        %470 = vmatpush1.msra.mxu0 0.0
        %471 = vmatprep.subr.mxu0 0.0
        %472 = vmatpush1.msra.mxu0 0.0
        %473 = vmatprep.subr.mxu0 0.0
        %474 = vmatpush1.msra.mxu0 0.0
        %475 = vmatprep.subr.mxu0 0.0
        %476 = vmatpush1.msra.mxu0 0.0
        %477 = vmatprep.subr.mxu0 0.0
        %478 = vmatpush1.msra.mxu0 0.0
        %479 = vmatprep.subr.mxu0 0.0
        %480 = vmatpush1.msra.mxu0 0.0
        %481 = vmatprep.subr.mxu0 0.0
        %482 = vmatpush1.msra.mxu0 0.0
        %483 = vmatprep.subr.mxu0 0.0
        %484 = vmatpush1.msra.mxu0 0.0
        %485 = vmatprep.subr.mxu0 0.0
        %486 = vmatpush1.msra.mxu0 0.0
        %487 = vmatprep.mubr.f32.mxu0 0.0
        %488 = vmatmul.mubr.f32.gmra.mrb[0].mxu0 %v418
        %v489 = vpop.f32.mrb[0].mxu0
        %v490 = vadd.f32 0.0, %v489
        %v491 = vpop.f32.mrb[0].mxu0
        %492 = vdwg.mxu0
        %v494 = vsel %vm416, %v319, 0
        %v496 = vsel %vm420, %v227, 0
        %498 = vmatprep.subr.mxu0 0.0
        %499 = vmatpush1.msra.mxu0 %v496
        %500 = vmatprep.subr.mxu0 0.0
        %501 = vmatpush1.msra.mxu0 0.0
        %502 = vmatprep.subr.mxu0 0.0
        %503 = vmatpush1.msra.mxu0 0.0
        %504 = vmatprep.subr.mxu0 0.0
        %505 = vmatpush1.msra.mxu0 0.0
        %506 = vmatprep.subr.mxu0 0.0
        %507 = vmatpush1.msra.mxu0 0.0
        %508 = vmatprep.subr.mxu0 0.0
        %509 = vmatpush1.msra.mxu0 0.0
        %510 = vmatprep.subr.mxu0 0.0
        %511 = vmatpush1.msra.mxu0 0.0
        %512 = vmatprep.subr.mxu0 0.0
        %513 = vmatpush1.msra.mxu0 0.0
        %514 = vmatprep.subr.mxu0 0.0
        %515 = vmatpush1.msra.mxu0 0.0
        %516 = vmatprep.subr.mxu0 0.0
        %517 = vmatpush1.msra.mxu0 0.0
        %518 = vmatprep.subr.mxu0 0.0
        %519 = vmatpush1.msra.mxu0 0.0
        %520 = vmatprep.subr.mxu0 0.0
        %521 = vmatpush1.msra.mxu0 0.0
        %522 = vmatprep.subr.mxu0 0.0
        %523 = vmatpush1.msra.mxu0 0.0
        %524 = vmatprep.subr.mxu0 0.0
        %525 = vmatpush1.msra.mxu0 0.0
        %526 = vmatprep.subr.mxu0 0.0
        %527 = vmatpush1.msra.mxu0 0.0
        %528 = vmatprep.subr.mxu0 0.0
        %529 = vmatpush1.msra.mxu0 0.0
        %530 = vmatprep.subr.mxu0 0.0
        %531 = vmatpush1.msra.mxu0 0.0
        %532 = vmatprep.subr.mxu0 0.0
        %533 = vmatpush1.msra.mxu0 0.0
        %534 = vmatprep.subr.mxu0 0.0
        %535 = vmatpush1.msra.mxu0 0.0
        %536 = vmatprep.subr.mxu0 0.0
        %537 = vmatpush1.msra.mxu0 0.0
        %538 = vmatprep.subr.mxu0 0.0
        %539 = vmatpush1.msra.mxu0 0.0
        %540 = vmatprep.subr.mxu0 0.0
        %541 = vmatpush1.msra.mxu0 0.0
        %542 = vmatprep.subr.mxu0 0.0
        %543 = vmatpush1.msra.mxu0 0.0
        %544 = vmatprep.subr.mxu0 0.0
        %545 = vmatpush1.msra.mxu0 0.0
        %546 = vmatprep.subr.mxu0 0.0
        %547 = vmatpush1.msra.mxu0 0.0
        %548 = vmatprep.subr.mxu0 0.0
        %549 = vmatpush1.msra.mxu0 0.0
        %550 = vmatprep.subr.mxu0 0.0
        %551 = vmatpush1.msra.mxu0 0.0
        %552 = vmatprep.subr.mxu0 0.0
        %553 = vmatpush1.msra.mxu0 0.0
        %554 = vmatprep.subr.mxu0 0.0
        %555 = vmatpush1.msra.mxu0 0.0
        %556 = vmatprep.subr.mxu0 0.0
        %557 = vmatpush1.msra.mxu0 0.0
        %558 = vmatprep.subr.mxu0 0.0
        %559 = vmatpush1.msra.mxu0 0.0
        %560 = vmatprep.subr.mxu0 0.0
        %561 = vmatpush1.msra.mxu0 0.0
        %562 = vmatprep.mubr.f32.mxu0 0.0
        %563 = vmatmul.mubr.f32.gmra.mrb[0].mxu0 %v494
        %v564 = vpop.f32.mrb[0].mxu0
        %v565 = vadd.f32 %v490, %v564
        %v566 = vpop.f32.mrb[0].mxu0
        %567 = vdwg.mxu0
        %s568 = scalar_lea.vmem %s2, 64
        %v569 = vld [vmem:[%s568] sm:$0xff]
        %v570 = vld [vmem:[%s568 + $0x8] sm:$0xff]
        %v571 = vld [vmem:[%s568 + $0x10] sm:$0xff]
        %v572 = vld [vmem:[%s568 + $0x18] sm:$0xff]
        %574 = vset.pattern.permute.xlu0 0
        %575 = vperm.xlu0 %574, %v569
        %v576 = vpop.permute.xlu0 %575
        %579 = vset.pattern.permute.xlu0 0
        %580 = vperm.xlu0 %579, %v570
        %v581 = vpop.permute.xlu0 %580
        %584 = vset.pattern.permute.xlu0 0
        %585 = vperm.xlu0 %584, %v571
        %v586 = vpop.permute.xlu0 %585
        %589 = vset.pattern.permute.xlu0 0
        %590 = vperm.xlu0 %589, %v572
        %v591 = vpop.permute.xlu0 %590
        %593 = vrot.lane.b32.xlu0 %v266, 126
        %v594 = vpop.permute.xlu0 %593
        %595 = vrot.lane.b32.xlu0 %v334, 126
        %v596 = vpop.permute.xlu0 %595
        %597 = vrot.lane.b32.xlu0 %v270, 126
        %v598 = vpop.permute.xlu0 %597
        %599 = vrot.lane.b32.xlu0 %v338, 126
        %v600 = vpop.permute.xlu0 %599
        %601 = vrot.lane.b32.xlu0 %v274, 126
        %v602 = vpop.permute.xlu0 %601
        %603 = vrot.lane.b32.xlu0 %v342, 126
        %v604 = vpop.permute.xlu0 %603
        %605 = vrot.lane.b32.xlu0 %v278, 126
        %v606 = vpop.permute.xlu0 %605
        %607 = vrot.lane.b32.xlu0 %v346, 126
        %v608 = vpop.permute.xlu0 %607
        %vm609 = vcmask 1031168
        %v610 = vsel %vm609, %v594, %v596
        %v611 = vsel %vm609, %v598, %v600
        %v612 = vsel %vm609, %v602, %v604
        %v613 = vsel %vm609, %v606, %v608
        %v618 = vsel %vm262, %v610, %v576
        %v619 = vsel %vm262, %v611, %v581
        %v620 = vsel %vm262, %v612, %v586
        %v621 = vsel %vm262, %v613, %v591
        %v622 = vsel %vm262, %v576, %v610
        %v623 = vsel %vm262, %v581, %v611
        %v624 = vsel %vm262, %v586, %v612
        %v625 = vsel %vm262, %v591, %v613
        %v626 = vadd.f32 %v404, %v618
        %v627 = vadd.f32 %v405, %v619
        %v628 = vadd.f32 %v406, %v620
        %v629 = vadd.f32 %v407, %v621
        %v630 = vmul.f32 %v626, %v622
        %v631 = vmul.f32 %v627, %v623
        %v632 = vmul.f32 %v628, %v624
        %v633 = vmul.f32 %v629, %v625
        %s634 = scalar_lea.vmem %s3, 16
        %v635 = vld [vmem:[%s634] sm:$0xff]
        %636 = vrot.lane.b32.xlu0 %v227, 126
        %v637 = vpop.permute.xlu0 %636
        %638 = vrot.lane.b32.xlu0 %v410, 126
        %v639 = vpop.permute.xlu0 %638
        %v640 = vsel %vm609, %v637, %v639
        %v642 = vsel %vm416, %v635, 0
        %v644 = vsel %vm420, %v640, 0
        %646 = vmatprep.subr.mxu0 0.0
        %647 = vmatpush1.msra.mxu0 %v644
        %648 = vmatprep.subr.mxu0 0.0
        %649 = vmatpush1.msra.mxu0 0.0
        %650 = vmatprep.subr.mxu0 0.0
        %651 = vmatpush1.msra.mxu0 0.0
        %652 = vmatprep.subr.mxu0 0.0
        %653 = vmatpush1.msra.mxu0 0.0
        %654 = vmatprep.subr.mxu0 0.0
        %655 = vmatpush1.msra.mxu0 0.0
        %656 = vmatprep.subr.mxu0 0.0
        %657 = vmatpush1.msra.mxu0 0.0
        %658 = vmatprep.subr.mxu0 0.0
        %659 = vmatpush1.msra.mxu0 0.0
        %660 = vmatprep.subr.mxu0 0.0
        %661 = vmatpush1.msra.mxu0 0.0
        %662 = vmatprep.subr.mxu0 0.0
        %663 = vmatpush1.msra.mxu0 0.0
        %664 = vmatprep.subr.mxu0 0.0
        %665 = vmatpush1.msra.mxu0 0.0
        %666 = vmatprep.subr.mxu0 0.0
        %667 = vmatpush1.msra.mxu0 0.0
        %668 = vmatprep.subr.mxu0 0.0
        %669 = vmatpush1.msra.mxu0 0.0
        %670 = vmatprep.subr.mxu0 0.0
        %671 = vmatpush1.msra.mxu0 0.0
        %672 = vmatprep.subr.mxu0 0.0
        %673 = vmatpush1.msra.mxu0 0.0
        %674 = vmatprep.subr.mxu0 0.0
        %675 = vmatpush1.msra.mxu0 0.0
        %676 = vmatprep.subr.mxu0 0.0
        %677 = vmatpush1.msra.mxu0 0.0
        %678 = vmatprep.subr.mxu0 0.0
        %679 = vmatpush1.msra.mxu0 0.0
        %680 = vmatprep.subr.mxu0 0.0
        %681 = vmatpush1.msra.mxu0 0.0
        %682 = vmatprep.subr.mxu0 0.0
        %683 = vmatpush1.msra.mxu0 0.0
        %684 = vmatprep.subr.mxu0 0.0
        %685 = vmatpush1.msra.mxu0 0.0
        %686 = vmatprep.subr.mxu0 0.0
        %687 = vmatpush1.msra.mxu0 0.0
        %688 = vmatprep.subr.mxu0 0.0
        %689 = vmatpush1.msra.mxu0 0.0
        %690 = vmatprep.subr.mxu0 0.0
        %691 = vmatpush1.msra.mxu0 0.0
        %692 = vmatprep.subr.mxu0 0.0
        %693 = vmatpush1.msra.mxu0 0.0
        %694 = vmatprep.subr.mxu0 0.0
        %695 = vmatpush1.msra.mxu0 0.0
        %696 = vmatprep.subr.mxu0 0.0
        %697 = vmatpush1.msra.mxu0 0.0
        %698 = vmatprep.subr.mxu0 0.0
        %699 = vmatpush1.msra.mxu0 0.0
        %700 = vmatprep.subr.mxu0 0.0
        %701 = vmatpush1.msra.mxu0 0.0
        %702 = vmatprep.subr.mxu0 0.0
        %703 = vmatpush1.msra.mxu0 0.0
        %704 = vmatprep.subr.mxu0 0.0
        %705 = vmatpush1.msra.mxu0 0.0
        %706 = vmatprep.subr.mxu0 0.0
        %707 = vmatpush1.msra.mxu0 0.0
        %708 = vmatprep.subr.mxu0 0.0
        %709 = vmatpush1.msra.mxu0 0.0
        %710 = vmatprep.mubr.f32.mxu0 0.0
        %711 = vmatmul.mubr.f32.gmra.mrb[0].mxu0 %v642
        %v712 = vpop.f32.mrb[0].mxu0
        %v713 = vadd.f32 0.0, %v712
        %v714 = vpop.f32.mrb[0].mxu0
        %715 = vdwg.mxu0
        %v716 = vadd.f32 %v565, %v713
        %s717 = scalar_lea.vmem %s2, 96
        %v718 = vld [vmem:[%s717] sm:$0xff]
        %v719 = vld [vmem:[%s717 + $0x8] sm:$0xff]
        %v720 = vld [vmem:[%s717 + $0x10] sm:$0xff]
        %v721 = vld [vmem:[%s717 + $0x18] sm:$0xff]
        %723 = vset.pattern.permute.xlu0 0
        %724 = vperm.xlu0 %723, %v718
        %v725 = vpop.permute.xlu0 %724
        %728 = vset.pattern.permute.xlu0 0
        %729 = vperm.xlu0 %728, %v719
        %v730 = vpop.permute.xlu0 %729
        %733 = vset.pattern.permute.xlu0 0
        %734 = vperm.xlu0 %733, %v720
        %v735 = vpop.permute.xlu0 %734
        %738 = vset.pattern.permute.xlu0 0
        %739 = vperm.xlu0 %738, %v721
        %v740 = vpop.permute.xlu0 %739
        %742 = vrot.lane.b32.xlu0 %v266, 110
        %v743 = vpop.permute.xlu0 %742
        %744 = vrot.lane.b32.xlu0 %v334, 110
        %v745 = vpop.permute.xlu0 %744
        %746 = vrot.lane.b32.xlu0 %v270, 110
        %v747 = vpop.permute.xlu0 %746
        %748 = vrot.lane.b32.xlu0 %v338, 110
        %v749 = vpop.permute.xlu0 %748
        %750 = vrot.lane.b32.xlu0 %v274, 110
        %v751 = vpop.permute.xlu0 %750
        %752 = vrot.lane.b32.xlu0 %v342, 110
        %v753 = vpop.permute.xlu0 %752
        %754 = vrot.lane.b32.xlu0 %v278, 110
        %v755 = vpop.permute.xlu0 %754
        %756 = vrot.lane.b32.xlu0 %v346, 110
        %v757 = vpop.permute.xlu0 %756
        %vm758 = vcmask 900096
        %v759 = vsel %vm758, %v743, %v745
        %v760 = vsel %vm758, %v747, %v749
        %v761 = vsel %vm758, %v751, %v753
        %v762 = vsel %vm758, %v755, %v757
        %v767 = vsel %vm330, %v759, %v725
        %v768 = vsel %vm330, %v760, %v730
        %v769 = vsel %vm330, %v761, %v735
        %v770 = vsel %vm330, %v762, %v740
        %v771 = vsel %vm330, %v725, %v759
        %v772 = vsel %vm330, %v730, %v760
        %v773 = vsel %vm330, %v735, %v761
        %v774 = vsel %vm330, %v740, %v762
        %v775 = vadd.f32 %v630, %v767
        %v776 = vadd.f32 %v631, %v768
        %v777 = vadd.f32 %v632, %v769
        %v778 = vadd.f32 %v633, %v770
        %v779 = vmul.f32 %v775, %v771
        %v780 = vmul.f32 %v776, %v772
        %v781 = vmul.f32 %v777, %v773
        %v782 = vmul.f32 %v778, %v774
        %s783 = scalar_lea.vmem %s3, 24
        %v784 = vld [vmem:[%s783] sm:$0xff]
        %785 = vrot.lane.b32.xlu0 %v227, 110
        %v786 = vpop.permute.xlu0 %785
        %787 = vrot.lane.b32.xlu0 %v410, 110
        %v788 = vpop.permute.xlu0 %787
        %v789 = vsel %vm758, %v786, %v788
        %v791 = vsel %vm416, %v784, 0
        %v793 = vsel %vm420, %v789, 0
        %795 = vmatprep.subr.mxu0 0.0
        %796 = vmatpush1.msra.mxu0 %v793
        %797 = vmatprep.subr.mxu0 0.0
        %798 = vmatpush1.msra.mxu0 0.0
        %799 = vmatprep.subr.mxu0 0.0
        %800 = vmatpush1.msra.mxu0 0.0
        %801 = vmatprep.subr.mxu0 0.0
        %802 = vmatpush1.msra.mxu0 0.0
        %803 = vmatprep.subr.mxu0 0.0
        %804 = vmatpush1.msra.mxu0 0.0
        %805 = vmatprep.subr.mxu0 0.0
        %806 = vmatpush1.msra.mxu0 0.0
        %807 = vmatprep.subr.mxu0 0.0
        %808 = vmatpush1.msra.mxu0 0.0
        %809 = vmatprep.subr.mxu0 0.0
        %810 = vmatpush1.msra.mxu0 0.0
        %811 = vmatprep.subr.mxu0 0.0
        %812 = vmatpush1.msra.mxu0 0.0
        %813 = vmatprep.subr.mxu0 0.0
        %814 = vmatpush1.msra.mxu0 0.0
        %815 = vmatprep.subr.mxu0 0.0
        %816 = vmatpush1.msra.mxu0 0.0
        %817 = vmatprep.subr.mxu0 0.0
        %818 = vmatpush1.msra.mxu0 0.0
        %819 = vmatprep.subr.mxu0 0.0
        %820 = vmatpush1.msra.mxu0 0.0
        %821 = vmatprep.subr.mxu0 0.0
        %822 = vmatpush1.msra.mxu0 0.0
        %823 = vmatprep.subr.mxu0 0.0
        %824 = vmatpush1.msra.mxu0 0.0
        %825 = vmatprep.subr.mxu0 0.0
        %826 = vmatpush1.msra.mxu0 0.0
        %827 = vmatprep.subr.mxu0 0.0
        %828 = vmatpush1.msra.mxu0 0.0
        %829 = vmatprep.subr.mxu0 0.0
        %830 = vmatpush1.msra.mxu0 0.0
        %831 = vmatprep.subr.mxu0 0.0
        %832 = vmatpush1.msra.mxu0 0.0
        %833 = vmatprep.subr.mxu0 0.0
        %834 = vmatpush1.msra.mxu0 0.0
        %835 = vmatprep.subr.mxu0 0.0
        %836 = vmatpush1.msra.mxu0 0.0
        %837 = vmatprep.subr.mxu0 0.0
        %838 = vmatpush1.msra.mxu0 0.0
        %839 = vmatprep.subr.mxu0 0.0
        %840 = vmatpush1.msra.mxu0 0.0
        %841 = vmatprep.subr.mxu0 0.0
        %842 = vmatpush1.msra.mxu0 0.0
        %843 = vmatprep.subr.mxu0 0.0
        %844 = vmatpush1.msra.mxu0 0.0
        %845 = vmatprep.subr.mxu0 0.0
        %846 = vmatpush1.msra.mxu0 0.0
        %847 = vmatprep.subr.mxu0 0.0
        %848 = vmatpush1.msra.mxu0 0.0
        %849 = vmatprep.subr.mxu0 0.0
        %850 = vmatpush1.msra.mxu0 0.0
        %851 = vmatprep.subr.mxu0 0.0
        %852 = vmatpush1.msra.mxu0 0.0
        %853 = vmatprep.subr.mxu0 0.0
        %854 = vmatpush1.msra.mxu0 0.0
        %855 = vmatprep.subr.mxu0 0.0
        %856 = vmatpush1.msra.mxu0 0.0
        %857 = vmatprep.subr.mxu0 0.0
        %858 = vmatpush1.msra.mxu0 0.0
        %859 = vmatprep.mubr.f32.mxu0 0.0
        %860 = vmatmul.mubr.f32.gmra.mrb[0].mxu0 %v791
        %v861 = vpop.f32.mrb[0].mxu0
        %v862 = vadd.f32 0.0, %v861
        %v863 = vpop.f32.mrb[0].mxu0
        %864 = vdwg.mxu0
        %v865 = vadd.f32 %v716, %v862
        %s866 = scalar_lea.vmem %s2, 128
        %v867 = vld [vmem:[%s866] sm:$0xff]
        %v868 = vld [vmem:[%s866 + $0x8] sm:$0xff]
        %v869 = vld [vmem:[%s866 + $0x10] sm:$0xff]
        %v870 = vld [vmem:[%s866 + $0x18] sm:$0xff]
        %872 = vset.pattern.permute.xlu0 0
        %873 = vperm.xlu0 %872, %v867
        %v874 = vpop.permute.xlu0 %873
        %877 = vset.pattern.permute.xlu0 0
        %878 = vperm.xlu0 %877, %v868
        %v879 = vpop.permute.xlu0 %878
        %882 = vset.pattern.permute.xlu0 0
        %883 = vperm.xlu0 %882, %v869
        %v884 = vpop.permute.xlu0 %883
        %887 = vset.pattern.permute.xlu0 0
        %888 = vperm.xlu0 %887, %v870
        %v889 = vpop.permute.xlu0 %888
        %891 = vrot.lane.b32.xlu0 %v266, 109
        %v892 = vpop.permute.xlu0 %891
        %893 = vrot.lane.b32.xlu0 %v334, 109
        %v894 = vpop.permute.xlu0 %893
        %895 = vrot.lane.b32.xlu0 %v270, 109
        %v896 = vpop.permute.xlu0 %895
        %897 = vrot.lane.b32.xlu0 %v338, 109
        %v898 = vpop.permute.xlu0 %897
        %899 = vrot.lane.b32.xlu0 %v274, 109
        %v900 = vpop.permute.xlu0 %899
        %901 = vrot.lane.b32.xlu0 %v342, 109
        %v902 = vpop.permute.xlu0 %901
        %903 = vrot.lane.b32.xlu0 %v278, 109
        %v904 = vpop.permute.xlu0 %903
        %905 = vrot.lane.b32.xlu0 %v346, 109
        %v906 = vpop.permute.xlu0 %905
        %vm907 = vcmask 891904
        %v908 = vsel %vm907, %v892, %v894
        %v909 = vsel %vm907, %v896, %v898
        %v910 = vsel %vm907, %v900, %v902
        %v911 = vsel %vm907, %v904, %v906
        %v916 = vsel %vm262, %v908, %v874
        %v917 = vsel %vm262, %v909, %v879
        %v918 = vsel %vm262, %v910, %v884
        %v919 = vsel %vm262, %v911, %v889
        %v920 = vsel %vm262, %v874, %v908
        %v921 = vsel %vm262, %v879, %v909
        %v922 = vsel %vm262, %v884, %v910
        %v923 = vsel %vm262, %v889, %v911
        %v924 = vadd.f32 %v779, %v916
        %v925 = vadd.f32 %v780, %v917
        %v926 = vadd.f32 %v781, %v918
        %v927 = vadd.f32 %v782, %v919
        %v928 = vmul.f32 %v924, %v920
        %v929 = vmul.f32 %v925, %v921
        %v930 = vmul.f32 %v926, %v922
        %v931 = vmul.f32 %v927, %v923
        %s932 = scalar_lea.vmem %s3, 32
        %v933 = vld [vmem:[%s932] sm:$0xff]
        %934 = vrot.lane.b32.xlu0 %v227, 109
        %v935 = vpop.permute.xlu0 %934
        %936 = vrot.lane.b32.xlu0 %v410, 109
        %v937 = vpop.permute.xlu0 %936
        %v938 = vsel %vm907, %v935, %v937
        %v940 = vsel %vm416, %v933, 0
        %v942 = vsel %vm420, %v938, 0
        %944 = vmatprep.subr.mxu0 0.0
        %945 = vmatpush1.msra.mxu0 %v942
        %946 = vmatprep.subr.mxu0 0.0
        %947 = vmatpush1.msra.mxu0 0.0
        %948 = vmatprep.subr.mxu0 0.0
        %949 = vmatpush1.msra.mxu0 0.0
        %950 = vmatprep.subr.mxu0 0.0
        %951 = vmatpush1.msra.mxu0 0.0
        %952 = vmatprep.subr.mxu0 0.0
        %953 = vmatpush1.msra.mxu0 0.0
        %954 = vmatprep.subr.mxu0 0.0
        %955 = vmatpush1.msra.mxu0 0.0
        %956 = vmatprep.subr.mxu0 0.0
        %957 = vmatpush1.msra.mxu0 0.0
        %958 = vmatprep.subr.mxu0 0.0
        %959 = vmatpush1.msra.mxu0 0.0
        %960 = vmatprep.subr.mxu0 0.0
        %961 = vmatpush1.msra.mxu0 0.0
        %962 = vmatprep.subr.mxu0 0.0
        %963 = vmatpush1.msra.mxu0 0.0
        %964 = vmatprep.subr.mxu0 0.0
        %965 = vmatpush1.msra.mxu0 0.0
        %966 = vmatprep.subr.mxu0 0.0
        %967 = vmatpush1.msra.mxu0 0.0
        %968 = vmatprep.subr.mxu0 0.0
        %969 = vmatpush1.msra.mxu0 0.0
        %970 = vmatprep.subr.mxu0 0.0
        %971 = vmatpush1.msra.mxu0 0.0
        %972 = vmatprep.subr.mxu0 0.0
        %973 = vmatpush1.msra.mxu0 0.0
        %974 = vmatprep.subr.mxu0 0.0
        %975 = vmatpush1.msra.mxu0 0.0
        %976 = vmatprep.subr.mxu0 0.0
        %977 = vmatpush1.msra.mxu0 0.0
        %978 = vmatprep.subr.mxu0 0.0
        %979 = vmatpush1.msra.mxu0 0.0
        %980 = vmatprep.subr.mxu0 0.0
        %981 = vmatpush1.msra.mxu0 0.0
        %982 = vmatprep.subr.mxu0 0.0
        %983 = vmatpush1.msra.mxu0 0.0
        %984 = vmatprep.subr.mxu0 0.0
        %985 = vmatpush1.msra.mxu0 0.0
        %986 = vmatprep.subr.mxu0 0.0
        %987 = vmatpush1.msra.mxu0 0.0
        %988 = vmatprep.subr.mxu0 0.0
        %989 = vmatpush1.msra.mxu0 0.0
        %990 = vmatprep.subr.mxu0 0.0
        %991 = vmatpush1.msra.mxu0 0.0
        %992 = vmatprep.subr.mxu0 0.0
        %993 = vmatpush1.msra.mxu0 0.0
        %994 = vmatprep.subr.mxu0 0.0
        %995 = vmatpush1.msra.mxu0 0.0
        %996 = vmatprep.subr.mxu0 0.0
        %997 = vmatpush1.msra.mxu0 0.0
        %998 = vmatprep.subr.mxu0 0.0
        %999 = vmatpush1.msra.mxu0 0.0
        %1000 = vmatprep.subr.mxu0 0.0
        %1001 = vmatpush1.msra.mxu0 0.0
        %1002 = vmatprep.subr.mxu0 0.0
        %1003 = vmatpush1.msra.mxu0 0.0
        %1004 = vmatprep.subr.mxu0 0.0
        %1005 = vmatpush1.msra.mxu0 0.0
        %1006 = vmatprep.subr.mxu0 0.0
        %1007 = vmatpush1.msra.mxu0 0.0
        %1008 = vmatprep.mubr.f32.mxu0 0.0
        %1009 = vmatmul.mubr.f32.gmra.mrb[0].mxu0 %v940
        %v1010 = vpop.f32.mrb[0].mxu0
        %v1011 = vadd.f32 0.0, %v1010
        %v1012 = vpop.f32.mrb[0].mxu0
        %1013 = vdwg.mxu0
        %v1014 = vadd.f32 %v865, %v1011
        %s1015 = scalar_lea.vmem %s2, 160
        %v1016 = vld [vmem:[%s1015] sm:$0xff]
        %v1017 = vld [vmem:[%s1015 + $0x8] sm:$0xff]
        %v1018 = vld [vmem:[%s1015 + $0x10] sm:$0xff]
        %v1019 = vld [vmem:[%s1015 + $0x18] sm:$0xff]
        %1021 = vset.pattern.permute.xlu0 0
        %1022 = vperm.xlu0 %1021, %v1016
        %v1023 = vpop.permute.xlu0 %1022
        %1026 = vset.pattern.permute.xlu0 0
        %1027 = vperm.xlu0 %1026, %v1017
        %v1028 = vpop.permute.xlu0 %1027
        %1031 = vset.pattern.permute.xlu0 0
        %1032 = vperm.xlu0 %1031, %v1018
        %v1033 = vpop.permute.xlu0 %1032
        %1036 = vset.pattern.permute.xlu0 0
        %1037 = vperm.xlu0 %1036, %v1019
        %v1038 = vpop.permute.xlu0 %1037
        %1040 = vrot.lane.b32.xlu0 %v266, 108
        %v1041 = vpop.permute.xlu0 %1040
        %1042 = vrot.lane.b32.xlu0 %v334, 108
        %v1043 = vpop.permute.xlu0 %1042
        %1044 = vrot.lane.b32.xlu0 %v270, 108
        %v1045 = vpop.permute.xlu0 %1044
        %1046 = vrot.lane.b32.xlu0 %v338, 108
        %v1047 = vpop.permute.xlu0 %1046
        %1048 = vrot.lane.b32.xlu0 %v274, 108
        %v1049 = vpop.permute.xlu0 %1048
        %1050 = vrot.lane.b32.xlu0 %v342, 108
        %v1051 = vpop.permute.xlu0 %1050
        %1052 = vrot.lane.b32.xlu0 %v278, 108
        %v1053 = vpop.permute.xlu0 %1052
        %1054 = vrot.lane.b32.xlu0 %v346, 108
        %v1055 = vpop.permute.xlu0 %1054
        %vm1056 = vcmask 883712
        %v1057 = vsel %vm1056, %v1041, %v1043
        %v1058 = vsel %vm1056, %v1045, %v1047
        %v1059 = vsel %vm1056, %v1049, %v1051
        %v1060 = vsel %vm1056, %v1053, %v1055
        %v1065 = vsel %vm330, %v1057, %v1023
        %v1066 = vsel %vm330, %v1058, %v1028
        %v1067 = vsel %vm330, %v1059, %v1033
        %v1068 = vsel %vm330, %v1060, %v1038
        %v1069 = vsel %vm330, %v1023, %v1057
        %v1070 = vsel %vm330, %v1028, %v1058
        %v1071 = vsel %vm330, %v1033, %v1059
        %v1072 = vsel %vm330, %v1038, %v1060
        %v1073 = vadd.f32 %v928, %v1065
        %v1074 = vadd.f32 %v929, %v1066
        %v1075 = vadd.f32 %v930, %v1067
        %v1076 = vadd.f32 %v931, %v1068
        %v1077 = vmul.f32 %v1073, %v1069
        %v1078 = vmul.f32 %v1074, %v1070
        %v1079 = vmul.f32 %v1075, %v1071
        %v1080 = vmul.f32 %v1076, %v1072
        %s1081 = scalar_lea.vmem %s3, 40
        %v1082 = vld [vmem:[%s1081] sm:$0xff]
        %1083 = vrot.lane.b32.xlu0 %v227, 108
        %v1084 = vpop.permute.xlu0 %1083
        %1085 = vrot.lane.b32.xlu0 %v410, 108
        %v1086 = vpop.permute.xlu0 %1085
        %v1087 = vsel %vm1056, %v1084, %v1086
        %v1089 = vsel %vm416, %v1082, 0
        %v1091 = vsel %vm420, %v1087, 0
        %1093 = vmatprep.subr.mxu0 0.0
        %1094 = vmatpush1.msra.mxu0 %v1091
        %1095 = vmatprep.subr.mxu0 0.0
        %1096 = vmatpush1.msra.mxu0 0.0
        %1097 = vmatprep.subr.mxu0 0.0
        %1098 = vmatpush1.msra.mxu0 0.0
        %1099 = vmatprep.subr.mxu0 0.0
        %1100 = vmatpush1.msra.mxu0 0.0
        %1101 = vmatprep.subr.mxu0 0.0
        %1102 = vmatpush1.msra.mxu0 0.0
        %1103 = vmatprep.subr.mxu0 0.0
        %1104 = vmatpush1.msra.mxu0 0.0
        %1105 = vmatprep.subr.mxu0 0.0
        %1106 = vmatpush1.msra.mxu0 0.0
        %1107 = vmatprep.subr.mxu0 0.0
        %1108 = vmatpush1.msra.mxu0 0.0
        %1109 = vmatprep.subr.mxu0 0.0
        %1110 = vmatpush1.msra.mxu0 0.0
        %1111 = vmatprep.subr.mxu0 0.0
        %1112 = vmatpush1.msra.mxu0 0.0
        %1113 = vmatprep.subr.mxu0 0.0
        %1114 = vmatpush1.msra.mxu0 0.0
        %1115 = vmatprep.subr.mxu0 0.0
        %1116 = vmatpush1.msra.mxu0 0.0
        %1117 = vmatprep.subr.mxu0 0.0
        %1118 = vmatpush1.msra.mxu0 0.0
        %1119 = vmatprep.subr.mxu0 0.0
        %1120 = vmatpush1.msra.mxu0 0.0
        %1121 = vmatprep.subr.mxu0 0.0
        %1122 = vmatpush1.msra.mxu0 0.0
        %1123 = vmatprep.subr.mxu0 0.0
        %1124 = vmatpush1.msra.mxu0 0.0
        %1125 = vmatprep.subr.mxu0 0.0
        %1126 = vmatpush1.msra.mxu0 0.0
        %1127 = vmatprep.subr.mxu0 0.0
        %1128 = vmatpush1.msra.mxu0 0.0
        %1129 = vmatprep.subr.mxu0 0.0
        %1130 = vmatpush1.msra.mxu0 0.0
        %1131 = vmatprep.subr.mxu0 0.0
        %1132 = vmatpush1.msra.mxu0 0.0
        %1133 = vmatprep.subr.mxu0 0.0
        %1134 = vmatpush1.msra.mxu0 0.0
        %1135 = vmatprep.subr.mxu0 0.0
        %1136 = vmatpush1.msra.mxu0 0.0
        %1137 = vmatprep.subr.mxu0 0.0
        %1138 = vmatpush1.msra.mxu0 0.0
        %1139 = vmatprep.subr.mxu0 0.0
        %1140 = vmatpush1.msra.mxu0 0.0
        %1141 = vmatprep.subr.mxu0 0.0
        %1142 = vmatpush1.msra.mxu0 0.0
        %1143 = vmatprep.subr.mxu0 0.0
        %1144 = vmatpush1.msra.mxu0 0.0
        %1145 = vmatprep.subr.mxu0 0.0
        %1146 = vmatpush1.msra.mxu0 0.0
        %1147 = vmatprep.subr.mxu0 0.0
        %1148 = vmatpush1.msra.mxu0 0.0
        %1149 = vmatprep.subr.mxu0 0.0
        %1150 = vmatpush1.msra.mxu0 0.0
        %1151 = vmatprep.subr.mxu0 0.0
        %1152 = vmatpush1.msra.mxu0 0.0
        %1153 = vmatprep.subr.mxu0 0.0
        %1154 = vmatpush1.msra.mxu0 0.0
        %1155 = vmatprep.subr.mxu0 0.0
        %1156 = vmatpush1.msra.mxu0 0.0
        %1157 = vmatprep.mubr.f32.mxu0 0.0
        %1158 = vmatmul.mubr.f32.gmra.mrb[0].mxu0 %v1089
        %v1159 = vpop.f32.mrb[0].mxu0
        %v1160 = vadd.f32 0.0, %v1159
        %v1161 = vpop.f32.mrb[0].mxu0
        %1162 = vdwg.mxu0
        %v1163 = vadd.f32 %v1014, %v1160
        %s1164 = scalar_lea.vmem %s2, 192
        %v1165 = vld [vmem:[%s1164] sm:$0xff]
        %v1166 = vld [vmem:[%s1164 + $0x8] sm:$0xff]
        %v1167 = vld [vmem:[%s1164 + $0x10] sm:$0xff]
        %v1168 = vld [vmem:[%s1164 + $0x18] sm:$0xff]
        %1170 = vset.pattern.permute.xlu0 0
        %1171 = vperm.xlu0 %1170, %v1165
        %v1172 = vpop.permute.xlu0 %1171
        %1175 = vset.pattern.permute.xlu0 0
        %1176 = vperm.xlu0 %1175, %v1166
        %v1177 = vpop.permute.xlu0 %1176
        %1180 = vset.pattern.permute.xlu0 0
        %1181 = vperm.xlu0 %1180, %v1167
        %v1182 = vpop.permute.xlu0 %1181
        %1185 = vset.pattern.permute.xlu0 0
        %1186 = vperm.xlu0 %1185, %v1168
        %v1187 = vpop.permute.xlu0 %1186
        %1189 = vrot.lane.b32.xlu0 %v266, 92
        %v1190 = vpop.permute.xlu0 %1189
        %1191 = vrot.lane.b32.xlu0 %v334, 92
        %v1192 = vpop.permute.xlu0 %1191
        %1193 = vrot.lane.b32.xlu0 %v270, 92
        %v1194 = vpop.permute.xlu0 %1193
        %1195 = vrot.lane.b32.xlu0 %v338, 92
        %v1196 = vpop.permute.xlu0 %1195
        %1197 = vrot.lane.b32.xlu0 %v274, 92
        %v1198 = vpop.permute.xlu0 %1197
        %1199 = vrot.lane.b32.xlu0 %v342, 92
        %v1200 = vpop.permute.xlu0 %1199
        %1201 = vrot.lane.b32.xlu0 %v278, 92
        %v1202 = vpop.permute.xlu0 %1201
        %1203 = vrot.lane.b32.xlu0 %v346, 92
        %v1204 = vpop.permute.xlu0 %1203
        %vm1205 = vcmask 752640
        %v1206 = vsel %vm1205, %v1190, %v1192
        %v1207 = vsel %vm1205, %v1194, %v1196
        %v1208 = vsel %vm1205, %v1198, %v1200
        %v1209 = vsel %vm1205, %v1202, %v1204
        %v1214 = vsel %vm262, %v1206, %v1172
        %v1215 = vsel %vm262, %v1207, %v1177
        %v1216 = vsel %vm262, %v1208, %v1182
        %v1217 = vsel %vm262, %v1209, %v1187
        %v1218 = vsel %vm262, %v1172, %v1206
        %v1219 = vsel %vm262, %v1177, %v1207
        %v1220 = vsel %vm262, %v1182, %v1208
        %v1221 = vsel %vm262, %v1187, %v1209
        %v1222 = vadd.f32 %v1077, %v1214
        %v1223 = vadd.f32 %v1078, %v1215
        %v1224 = vadd.f32 %v1079, %v1216
        %v1225 = vadd.f32 %v1080, %v1217
        %v1226 = vmul.f32 %v1222, %v1218
        %v1227 = vmul.f32 %v1223, %v1219
        %v1228 = vmul.f32 %v1224, %v1220
        %v1229 = vmul.f32 %v1225, %v1221
        %s1230 = scalar_lea.vmem %s3, 48
        %v1231 = vld [vmem:[%s1230] sm:$0xff]
        %1232 = vrot.lane.b32.xlu0 %v227, 92
        %v1233 = vpop.permute.xlu0 %1232
        %1234 = vrot.lane.b32.xlu0 %v410, 92
        %v1235 = vpop.permute.xlu0 %1234
        %v1236 = vsel %vm1205, %v1233, %v1235
        %v1238 = vsel %vm416, %v1231, 0
        %v1240 = vsel %vm420, %v1236, 0
        %1242 = vmatprep.subr.mxu0 0.0
        %1243 = vmatpush1.msra.mxu0 %v1240
        %1244 = vmatprep.subr.mxu0 0.0
        %1245 = vmatpush1.msra.mxu0 0.0
        %1246 = vmatprep.subr.mxu0 0.0
        %1247 = vmatpush1.msra.mxu0 0.0
        %1248 = vmatprep.subr.mxu0 0.0
        %1249 = vmatpush1.msra.mxu0 0.0
        %1250 = vmatprep.subr.mxu0 0.0
        %1251 = vmatpush1.msra.mxu0 0.0
        %1252 = vmatprep.subr.mxu0 0.0
        %1253 = vmatpush1.msra.mxu0 0.0
        %1254 = vmatprep.subr.mxu0 0.0
        %1255 = vmatpush1.msra.mxu0 0.0
        %1256 = vmatprep.subr.mxu0 0.0
        %1257 = vmatpush1.msra.mxu0 0.0
        %1258 = vmatprep.subr.mxu0 0.0
        %1259 = vmatpush1.msra.mxu0 0.0
        %1260 = vmatprep.subr.mxu0 0.0
        %1261 = vmatpush1.msra.mxu0 0.0
        %1262 = vmatprep.subr.mxu0 0.0
        %1263 = vmatpush1.msra.mxu0 0.0
        %1264 = vmatprep.subr.mxu0 0.0
        %1265 = vmatpush1.msra.mxu0 0.0
        %1266 = vmatprep.subr.mxu0 0.0
        %1267 = vmatpush1.msra.mxu0 0.0
        %1268 = vmatprep.subr.mxu0 0.0
        %1269 = vmatpush1.msra.mxu0 0.0
        %1270 = vmatprep.subr.mxu0 0.0
        %1271 = vmatpush1.msra.mxu0 0.0
        %1272 = vmatprep.subr.mxu0 0.0
        %1273 = vmatpush1.msra.mxu0 0.0
        %1274 = vmatprep.subr.mxu0 0.0
        %1275 = vmatpush1.msra.mxu0 0.0
        %1276 = vmatprep.subr.mxu0 0.0
        %1277 = vmatpush1.msra.mxu0 0.0
        %1278 = vmatprep.subr.mxu0 0.0
        %1279 = vmatpush1.msra.mxu0 0.0
        %1280 = vmatprep.subr.mxu0 0.0
        %1281 = vmatpush1.msra.mxu0 0.0
        %1282 = vmatprep.subr.mxu0 0.0
        %1283 = vmatpush1.msra.mxu0 0.0
        %1284 = vmatprep.subr.mxu0 0.0
        %1285 = vmatpush1.msra.mxu0 0.0
        %1286 = vmatprep.subr.mxu0 0.0
        %1287 = vmatpush1.msra.mxu0 0.0
        %1288 = vmatprep.subr.mxu0 0.0
        %1289 = vmatpush1.msra.mxu0 0.0
        %1290 = vmatprep.subr.mxu0 0.0
        %1291 = vmatpush1.msra.mxu0 0.0
        %1292 = vmatprep.subr.mxu0 0.0
        %1293 = vmatpush1.msra.mxu0 0.0
        %1294 = vmatprep.subr.mxu0 0.0
        %1295 = vmatpush1.msra.mxu0 0.0
        %1296 = vmatprep.subr.mxu0 0.0
        %1297 = vmatpush1.msra.mxu0 0.0
        %1298 = vmatprep.subr.mxu0 0.0
        %1299 = vmatpush1.msra.mxu0 0.0
        %1300 = vmatprep.subr.mxu0 0.0
        %1301 = vmatpush1.msra.mxu0 0.0
        %1302 = vmatprep.subr.mxu0 0.0
        %1303 = vmatpush1.msra.mxu0 0.0
        %1304 = vmatprep.subr.mxu0 0.0
        %1305 = vmatpush1.msra.mxu0 0.0
        %1306 = vmatprep.mubr.f32.mxu0 0.0
        %1307 = vmatmul.mubr.f32.gmra.mrb[0].mxu0 %v1238
        %v1308 = vpop.f32.mrb[0].mxu0
        %v1309 = vadd.f32 0.0, %v1308
        %v1310 = vpop.f32.mrb[0].mxu0
        %1311 = vdwg.mxu0
        %v1312 = vadd.f32 %v1163, %v1309
        %s1313 = scalar_lea.vmem %s2, 224
        %v1314 = vld [vmem:[%s1313] sm:$0xff]
        %v1315 = vld [vmem:[%s1313 + $0x8] sm:$0xff]
        %v1316 = vld [vmem:[%s1313 + $0x10] sm:$0xff]
        %v1317 = vld [vmem:[%s1313 + $0x18] sm:$0xff]
        %1319 = vset.pattern.permute.xlu0 0
        %1320 = vperm.xlu0 %1319, %v1314
        %v1321 = vpop.permute.xlu0 %1320
        %1324 = vset.pattern.permute.xlu0 0
        %1325 = vperm.xlu0 %1324, %v1315
        %v1326 = vpop.permute.xlu0 %1325
        %1329 = vset.pattern.permute.xlu0 0
        %1330 = vperm.xlu0 %1329, %v1316
        %v1331 = vpop.permute.xlu0 %1330
        %1334 = vset.pattern.permute.xlu0 0
        %1335 = vperm.xlu0 %1334, %v1317
        %v1336 = vpop.permute.xlu0 %1335
        %1338 = vrot.lane.b32.xlu0 %v266, 91
        %v1339 = vpop.permute.xlu0 %1338
        %1340 = vrot.lane.b32.xlu0 %v334, 91
        %v1341 = vpop.permute.xlu0 %1340
        %1342 = vrot.lane.b32.xlu0 %v270, 91
        %v1343 = vpop.permute.xlu0 %1342
        %1344 = vrot.lane.b32.xlu0 %v338, 91
        %v1345 = vpop.permute.xlu0 %1344
        %1346 = vrot.lane.b32.xlu0 %v274, 91
        %v1347 = vpop.permute.xlu0 %1346
        %1348 = vrot.lane.b32.xlu0 %v342, 91
        %v1349 = vpop.permute.xlu0 %1348
        %1350 = vrot.lane.b32.xlu0 %v278, 91
        %v1351 = vpop.permute.xlu0 %1350
        %1352 = vrot.lane.b32.xlu0 %v346, 91
        %v1353 = vpop.permute.xlu0 %1352
        %vm1354 = vcmask 744448
        %v1355 = vsel %vm1354, %v1339, %v1341
        %v1356 = vsel %vm1354, %v1343, %v1345
        %v1357 = vsel %vm1354, %v1347, %v1349
        %v1358 = vsel %vm1354, %v1351, %v1353
        %v1363 = vsel %vm330, %v1355, %v1321
        %v1364 = vsel %vm330, %v1356, %v1326
        %v1365 = vsel %vm330, %v1357, %v1331
        %v1366 = vsel %vm330, %v1358, %v1336
        %v1367 = vsel %vm330, %v1321, %v1355
        %v1368 = vsel %vm330, %v1326, %v1356
        %v1369 = vsel %vm330, %v1331, %v1357
        %v1370 = vsel %vm330, %v1336, %v1358
        %v1371 = vadd.f32 %v1226, %v1363
        %v1372 = vadd.f32 %v1227, %v1364
        %v1373 = vadd.f32 %v1228, %v1365
        %v1374 = vadd.f32 %v1229, %v1366
        %v1375 = vmul.f32 %v1371, %v1367
        %v1376 = vmul.f32 %v1372, %v1368
        %v1377 = vmul.f32 %v1373, %v1369
        %v1378 = vmul.f32 %v1374, %v1370
        %s1379 = scalar_lea.vmem %s3, 56
        %v1380 = vld [vmem:[%s1379] sm:$0xff]
        %1381 = vrot.lane.b32.xlu0 %v227, 91
        %v1382 = vpop.permute.xlu0 %1381
        %1383 = vrot.lane.b32.xlu0 %v410, 91
        %v1384 = vpop.permute.xlu0 %1383
        %v1385 = vsel %vm1354, %v1382, %v1384
        %v1387 = vsel %vm416, %v1380, 0
        %v1389 = vsel %vm420, %v1385, 0
        %1391 = vmatprep.subr.mxu0 0.0
        %1392 = vmatpush1.msra.mxu0 %v1389
        %1393 = vmatprep.subr.mxu0 0.0
        %1394 = vmatpush1.msra.mxu0 0.0
        %1395 = vmatprep.subr.mxu0 0.0
        %1396 = vmatpush1.msra.mxu0 0.0
        %1397 = vmatprep.subr.mxu0 0.0
        %1398 = vmatpush1.msra.mxu0 0.0
        %1399 = vmatprep.subr.mxu0 0.0
        %1400 = vmatpush1.msra.mxu0 0.0
        %1401 = vmatprep.subr.mxu0 0.0
        %1402 = vmatpush1.msra.mxu0 0.0
        %1403 = vmatprep.subr.mxu0 0.0
        %1404 = vmatpush1.msra.mxu0 0.0
        %1405 = vmatprep.subr.mxu0 0.0
        %1406 = vmatpush1.msra.mxu0 0.0
        %1407 = vmatprep.subr.mxu0 0.0
        %1408 = vmatpush1.msra.mxu0 0.0
        %1409 = vmatprep.subr.mxu0 0.0
        %1410 = vmatpush1.msra.mxu0 0.0
        %1411 = vmatprep.subr.mxu0 0.0
        %1412 = vmatpush1.msra.mxu0 0.0
        %1413 = vmatprep.subr.mxu0 0.0
        %1414 = vmatpush1.msra.mxu0 0.0
        %1415 = vmatprep.subr.mxu0 0.0
        %1416 = vmatpush1.msra.mxu0 0.0
        %1417 = vmatprep.subr.mxu0 0.0
        %1418 = vmatpush1.msra.mxu0 0.0
        %1419 = vmatprep.subr.mxu0 0.0
        %1420 = vmatpush1.msra.mxu0 0.0
        %1421 = vmatprep.subr.mxu0 0.0
        %1422 = vmatpush1.msra.mxu0 0.0
        %1423 = vmatprep.subr.mxu0 0.0
        %1424 = vmatpush1.msra.mxu0 0.0
        %1425 = vmatprep.subr.mxu0 0.0
        %1426 = vmatpush1.msra.mxu0 0.0
        %1427 = vmatprep.subr.mxu0 0.0
        %1428 = vmatpush1.msra.mxu0 0.0
        %1429 = vmatprep.subr.mxu0 0.0
        %1430 = vmatpush1.msra.mxu0 0.0
        %1431 = vmatprep.subr.mxu0 0.0
        %1432 = vmatpush1.msra.mxu0 0.0
        %1433 = vmatprep.subr.mxu0 0.0
        %1434 = vmatpush1.msra.mxu0 0.0
        %1435 = vmatprep.subr.mxu0 0.0
        %1436 = vmatpush1.msra.mxu0 0.0
        %1437 = vmatprep.subr.mxu0 0.0
        %1438 = vmatpush1.msra.mxu0 0.0
        %1439 = vmatprep.subr.mxu0 0.0
        %1440 = vmatpush1.msra.mxu0 0.0
        %1441 = vmatprep.subr.mxu0 0.0
        %1442 = vmatpush1.msra.mxu0 0.0
        %1443 = vmatprep.subr.mxu0 0.0
        %1444 = vmatpush1.msra.mxu0 0.0
        %1445 = vmatprep.subr.mxu0 0.0
        %1446 = vmatpush1.msra.mxu0 0.0
        %1447 = vmatprep.subr.mxu0 0.0
        %1448 = vmatpush1.msra.mxu0 0.0
        %1449 = vmatprep.subr.mxu0 0.0
        %1450 = vmatpush1.msra.mxu0 0.0
        %1451 = vmatprep.subr.mxu0 0.0
        %1452 = vmatpush1.msra.mxu0 0.0
        %1453 = vmatprep.subr.mxu0 0.0
        %1454 = vmatpush1.msra.mxu0 0.0
        %1455 = vmatprep.mubr.f32.mxu0 0.0
        %1456 = vmatmul.mubr.f32.gmra.mrb[0].mxu0 %v1387
        %v1457 = vpop.f32.mrb[0].mxu0
        %v1458 = vadd.f32 0.0, %v1457
        %v1459 = vpop.f32.mrb[0].mxu0
        %1460 = vdwg.mxu0
        %v1461 = vadd.f32 %v1312, %v1458
        %s1462 = scalar_lea.vmem %s2, 256
        %v1463 = vld [vmem:[%s1462] sm:$0xff]
        %v1464 = vld [vmem:[%s1462 + $0x8] sm:$0xff]
        %v1465 = vld [vmem:[%s1462 + $0x10] sm:$0xff]
        %v1466 = vld [vmem:[%s1462 + $0x18] sm:$0xff]
        %1468 = vset.pattern.permute.xlu0 0
        %1469 = vperm.xlu0 %1468, %v1463
        %v1470 = vpop.permute.xlu0 %1469
        %1473 = vset.pattern.permute.xlu0 0
        %1474 = vperm.xlu0 %1473, %v1464
        %v1475 = vpop.permute.xlu0 %1474
        %1478 = vset.pattern.permute.xlu0 0
        %1479 = vperm.xlu0 %1478, %v1465
        %v1480 = vpop.permute.xlu0 %1479
        %1483 = vset.pattern.permute.xlu0 0
        %1484 = vperm.xlu0 %1483, %v1466
        %v1485 = vpop.permute.xlu0 %1484
        %1487 = vrot.lane.b32.xlu0 %v266, 90
        %v1488 = vpop.permute.xlu0 %1487
        %1489 = vrot.lane.b32.xlu0 %v334, 90
        %v1490 = vpop.permute.xlu0 %1489
        %1491 = vrot.lane.b32.xlu0 %v270, 90
        %v1492 = vpop.permute.xlu0 %1491
        %1493 = vrot.lane.b32.xlu0 %v338, 90
        %v1494 = vpop.permute.xlu0 %1493
        %1495 = vrot.lane.b32.xlu0 %v274, 90
        %v1496 = vpop.permute.xlu0 %1495
        %1497 = vrot.lane.b32.xlu0 %v342, 90
        %v1498 = vpop.permute.xlu0 %1497
        %1499 = vrot.lane.b32.xlu0 %v278, 90
        %v1500 = vpop.permute.xlu0 %1499
        %1501 = vrot.lane.b32.xlu0 %v346, 90
        %v1502 = vpop.permute.xlu0 %1501
        %vm1503 = vcmask 736256
        %v1504 = vsel %vm1503, %v1488, %v1490
        %v1505 = vsel %vm1503, %v1492, %v1494
        %v1506 = vsel %vm1503, %v1496, %v1498
        %v1507 = vsel %vm1503, %v1500, %v1502
        %v1512 = vsel %vm262, %v1504, %v1470
        %v1513 = vsel %vm262, %v1505, %v1475
        %v1514 = vsel %vm262, %v1506, %v1480
        %v1515 = vsel %vm262, %v1507, %v1485
        %v1516 = vsel %vm262, %v1470, %v1504
        %v1517 = vsel %vm262, %v1475, %v1505
        %v1518 = vsel %vm262, %v1480, %v1506
        %v1519 = vsel %vm262, %v1485, %v1507
        %v1520 = vadd.f32 %v1375, %v1512
        %v1521 = vadd.f32 %v1376, %v1513
        %v1522 = vadd.f32 %v1377, %v1514
        %v1523 = vadd.f32 %v1378, %v1515
        %v1524 = vmul.f32 %v1520, %v1516
        %v1525 = vmul.f32 %v1521, %v1517
        %v1526 = vmul.f32 %v1522, %v1518
        %v1527 = vmul.f32 %v1523, %v1519
        %s1528 = scalar_lea.vmem %s3, 64
        %v1529 = vld [vmem:[%s1528] sm:$0xff]
        %1530 = vrot.lane.b32.xlu0 %v227, 90
        %v1531 = vpop.permute.xlu0 %1530
        %1532 = vrot.lane.b32.xlu0 %v410, 90
        %v1533 = vpop.permute.xlu0 %1532
        %v1534 = vsel %vm1503, %v1531, %v1533
        %v1536 = vsel %vm416, %v1529, 0
        %v1538 = vsel %vm420, %v1534, 0
        %1540 = vmatprep.subr.mxu0 0.0
        %1541 = vmatpush1.msra.mxu0 %v1538
        %1542 = vmatprep.subr.mxu0 0.0
        %1543 = vmatpush1.msra.mxu0 0.0
        %1544 = vmatprep.subr.mxu0 0.0
        %1545 = vmatpush1.msra.mxu0 0.0
        %1546 = vmatprep.subr.mxu0 0.0
        %1547 = vmatpush1.msra.mxu0 0.0
        %1548 = vmatprep.subr.mxu0 0.0
        %1549 = vmatpush1.msra.mxu0 0.0
        %1550 = vmatprep.subr.mxu0 0.0
        %1551 = vmatpush1.msra.mxu0 0.0
        %1552 = vmatprep.subr.mxu0 0.0
        %1553 = vmatpush1.msra.mxu0 0.0
        %1554 = vmatprep.subr.mxu0 0.0
        %1555 = vmatpush1.msra.mxu0 0.0
        %1556 = vmatprep.subr.mxu0 0.0
        %1557 = vmatpush1.msra.mxu0 0.0
        %1558 = vmatprep.subr.mxu0 0.0
        %1559 = vmatpush1.msra.mxu0 0.0
        %1560 = vmatprep.subr.mxu0 0.0
        %1561 = vmatpush1.msra.mxu0 0.0
        %1562 = vmatprep.subr.mxu0 0.0
        %1563 = vmatpush1.msra.mxu0 0.0
        %1564 = vmatprep.subr.mxu0 0.0
        %1565 = vmatpush1.msra.mxu0 0.0
        %1566 = vmatprep.subr.mxu0 0.0
        %1567 = vmatpush1.msra.mxu0 0.0
        %1568 = vmatprep.subr.mxu0 0.0
        %1569 = vmatpush1.msra.mxu0 0.0
        %1570 = vmatprep.subr.mxu0 0.0
        %1571 = vmatpush1.msra.mxu0 0.0
        %1572 = vmatprep.subr.mxu0 0.0
        %1573 = vmatpush1.msra.mxu0 0.0
        %1574 = vmatprep.subr.mxu0 0.0
        %1575 = vmatpush1.msra.mxu0 0.0
        %1576 = vmatprep.subr.mxu0 0.0
        %1577 = vmatpush1.msra.mxu0 0.0
        %1578 = vmatprep.subr.mxu0 0.0
        %1579 = vmatpush1.msra.mxu0 0.0
        %1580 = vmatprep.subr.mxu0 0.0
        %1581 = vmatpush1.msra.mxu0 0.0
        %1582 = vmatprep.subr.mxu0 0.0
        %1583 = vmatpush1.msra.mxu0 0.0
        %1584 = vmatprep.subr.mxu0 0.0
        %1585 = vmatpush1.msra.mxu0 0.0
        %1586 = vmatprep.subr.mxu0 0.0
        %1587 = vmatpush1.msra.mxu0 0.0
        %1588 = vmatprep.subr.mxu0 0.0
        %1589 = vmatpush1.msra.mxu0 0.0
        %1590 = vmatprep.subr.mxu0 0.0
        %1591 = vmatpush1.msra.mxu0 0.0
        %1592 = vmatprep.subr.mxu0 0.0
        %1593 = vmatpush1.msra.mxu0 0.0
        %1594 = vmatprep.subr.mxu0 0.0
        %1595 = vmatpush1.msra.mxu0 0.0
        %1596 = vmatprep.subr.mxu0 0.0
        %1597 = vmatpush1.msra.mxu0 0.0
        %1598 = vmatprep.subr.mxu0 0.0
        %1599 = vmatpush1.msra.mxu0 0.0
        %1600 = vmatprep.subr.mxu0 0.0
        %1601 = vmatpush1.msra.mxu0 0.0
        %1602 = vmatprep.subr.mxu0 0.0
        %1603 = vmatpush1.msra.mxu0 0.0
        %1604 = vmatprep.mubr.f32.mxu0 0.0
        %1605 = vmatmul.mubr.f32.gmra.mrb[0].mxu0 %v1536
        %v1606 = vpop.f32.mrb[0].mxu0
        %v1607 = vadd.f32 0.0, %v1606
        %v1608 = vpop.f32.mrb[0].mxu0
        %1609 = vdwg.mxu0
        %v1610 = vadd.f32 %v1461, %v1607
        %v1611 = vadd.f32 %v1524, %v1525
        %v1612 = vadd.f32 %v1611, %v1526
        %v1613 = vadd.f32 %v1612, %v1527
        %v1614 = vxor.u32 %v1613, 2147483648
        %v1615 = vmul.f32 %v1614, 1.442695
        %v1616 = vpow.pop %v1615
        %v1617 = vadd.f32 %v1616, 1.0
        %v1618 = vrcp.pop %v1617
        %v1619 = vmul.f32 1.0, %v1618
        %1621 = vset.pattern.permute.xlu0 0
        %1622 = vperm.xlu0 %1621, %v223
        %v1623 = vpop.permute.xlu0 %1622
        %v1625 = vadd.f32 %v1610, %v1623
        %v1626 = vmul.f32 %v1619, %v1625
        %1627 = vst [vmem:[%s217] sm:$0xff] %v1626
        %v1628 = vld [vmem:[%s0 + $0x1] sm:$0x1]
        %vm1629 = vcmp.eq.s32.totalorder %v1628, 0
        %vm1630 = vcmp.ne.s32.totalorder %v1628, 0
        %v1631 = vld [vmem:[%s222 + $0x4] sm:$0xff]
        %v1634 = vunpack.c.l.s4 1966171168
        %v1635 = vunpack.c.0.s8 %v1634
        %v1636 = vlaneseq
        %v1637 = vshrl.u32 %v1636, 7
        %v1638 = vsub.s32 %v1635, %v1637
        %v1639 = vrot.slane %v1631, %v1638
        %v1640 = vcombine.high %v1639, %v1639
        %v1642 = vunpack.c.l.s4 1966171168
        %v1643 = vunpack.c.0.s8 %v1642
        %v1644 = vlaneseq
        %v1645 = vshrl.u32 %v1644, 7
        %v1646 = vsub.s32 %v1643, %v1645
        %v1647 = vrot.slane %v1639, %v1646
        %v1649 = vunpack.c.l.s4 1966171168
        %v1650 = vunpack.c.0.s8 %v1649
        %v1651 = vlaneseq
        %v1652 = vshrl.u32 %v1651, 7
        %v1653 = vsub.s32 %v1650, %v1652
        %v1654 = vrot.slane %v1640, %v1653
        %v1655 = vcombine.high %v1647, %v1647
        %v1656 = vcombine.high %v1654, %v1654
        %v1657 = vld [vmem:[%s2] sm:$0xff]
        %v1658 = vld [vmem:[%s2 + $0x8] sm:$0xff]
        %v1659 = vld [vmem:[%s2 + $0x10] sm:$0xff]
        %v1660 = vld [vmem:[%s2 + $0x18] sm:$0xff]
        %v1661 = vsel %vm1629, 1, 0
        %v1662 = vlaneseq
        %v1663 = vshrl.u32 %v1662, 7
        %v1664 = vsub.s32 0, %v1663
        %v1665 = vrot.slane %v1661, %v1664
        %vm1666 = vcmp.eq.s32.totalorder %v1665, 1
        %v1667 = vlaneseq
        %v1668 = vshrl.u32 %v1667, 7
        %v1669 = vsub.s32 0, %v1668
        %v1670 = vrot.slane %v1647, %v1669
        %v1671 = vlaneseq
        %v1672 = vshrl.u32 %v1671, 7
        %v1673 = vsub.s32 0, %v1672
        %v1674 = vrot.slane %v1654, %v1673
        %v1675 = vlaneseq
        %v1676 = vshrl.u32 %v1675, 7
        %v1677 = vsub.s32 0, %v1676
        %v1678 = vrot.slane %v1655, %v1677
        %v1679 = vlaneseq
        %v1680 = vshrl.u32 %v1679, 7
        %v1681 = vsub.s32 0, %v1680
        %v1682 = vrot.slane %v1656, %v1681
        %1688 = vset.pattern.permute.xlu0 0
        %1689 = vperm.xlu0 %1688, %v1657
        %v1690 = vpop.permute.xlu0 %1689
        %1693 = vset.pattern.permute.xlu0 0
        %1694 = vperm.xlu0 %1693, %v1658
        %v1695 = vpop.permute.xlu0 %1694
        %1698 = vset.pattern.permute.xlu0 0
        %1699 = vperm.xlu0 %1698, %v1659
        %v1700 = vpop.permute.xlu0 %1699
        %1703 = vset.pattern.permute.xlu0 0
        %1704 = vperm.xlu0 %1703, %v1660
        %v1705 = vpop.permute.xlu0 %1704
        %v1707 = vsel %vm1666, %v1670, %v1690
        %v1708 = vsel %vm1666, %v1674, %v1695
        %v1709 = vsel %vm1666, %v1678, %v1700
        %v1710 = vsel %vm1666, %v1682, %v1705
        %v1711 = vsel %vm1666, %v1690, %v1670
        %v1712 = vsel %vm1666, %v1695, %v1674
        %v1713 = vsel %vm1666, %v1700, %v1678
        %v1714 = vsel %vm1666, %v1705, %v1682
        %v1715 = vadd.f32 %v1707, 0.0
        %v1716 = vadd.f32 %v1708, 0.0
        %v1717 = vadd.f32 %v1709, 0.0
        %v1718 = vadd.f32 %v1710, 0.0
        %v1719 = vmul.f32 %v1715, %v1711
        %v1720 = vmul.f32 %v1716, %v1712
        %v1721 = vmul.f32 %v1717, %v1713
        %v1722 = vmul.f32 %v1718, %v1714
        %v1723 = vld [vmem:[%s3] sm:$0xff]
        %v1724 = vld [vmem:[%s320] sm:$0xff]
        %v1725 = vld [vmem:[%s320 + $0x8] sm:$0xff]
        %v1726 = vld [vmem:[%s320 + $0x10] sm:$0xff]
        %v1727 = vld [vmem:[%s320 + $0x18] sm:$0xff]
        %v1728 = vsel %vm1630, 1, 0
        %v1729 = vlaneseq
        %v1730 = vshrl.u32 %v1729, 7
        %v1731 = vsub.s32 0, %v1730
        %v1732 = vrot.slane %v1728, %v1731
        %vm1733 = vcmp.eq.s32.totalorder %v1732, 1
        %v1734 = vlaneseq
        %v1735 = vshrl.u32 %v1734, 7
        %v1736 = vsub.s32 1, %v1735
        %v1737 = vrot.slane %v1647, %v1736
        %v1738 = vlaneseq
        %v1739 = vshrl.u32 %v1738, 7
        %v1740 = vsub.s32 1, %v1739
        %v1741 = vrot.slane %v1654, %v1740
        %v1742 = vlaneseq
        %v1743 = vshrl.u32 %v1742, 7
        %v1744 = vsub.s32 1, %v1743
        %v1745 = vrot.slane %v1655, %v1744
        %v1746 = vlaneseq
        %v1747 = vshrl.u32 %v1746, 7
        %v1748 = vsub.s32 1, %v1747
        %v1749 = vrot.slane %v1656, %v1748
        %1751 = vset.pattern.permute.xlu0 0
        %1752 = vperm.xlu0 %1751, %v1724
        %v1753 = vpop.permute.xlu0 %1752
        %1756 = vset.pattern.permute.xlu0 0
        %1757 = vperm.xlu0 %1756, %v1725
        %v1758 = vpop.permute.xlu0 %1757
        %1761 = vset.pattern.permute.xlu0 0
        %1762 = vperm.xlu0 %1761, %v1726
        %v1763 = vpop.permute.xlu0 %1762
        %1766 = vset.pattern.permute.xlu0 0
        %1767 = vperm.xlu0 %1766, %v1727
        %v1768 = vpop.permute.xlu0 %1767
        %1770 = vrot.lane.b32.xlu0 %v1670, 127
        %v1771 = vpop.permute.xlu0 %1770
        %1772 = vrot.lane.b32.xlu0 %v1737, 127
        %v1773 = vpop.permute.xlu0 %1772
        %1774 = vrot.lane.b32.xlu0 %v1674, 127
        %v1775 = vpop.permute.xlu0 %1774
        %1776 = vrot.lane.b32.xlu0 %v1741, 127
        %v1777 = vpop.permute.xlu0 %1776
        %1778 = vrot.lane.b32.xlu0 %v1678, 127
        %v1779 = vpop.permute.xlu0 %1778
        %1780 = vrot.lane.b32.xlu0 %v1745, 127
        %v1781 = vpop.permute.xlu0 %1780
        %1782 = vrot.lane.b32.xlu0 %v1682, 127
        %v1783 = vpop.permute.xlu0 %1782
        %1784 = vrot.lane.b32.xlu0 %v1749, 127
        %v1785 = vpop.permute.xlu0 %1784
        %v1786 = vsel %vm383, %v1771, %v1773
        %v1787 = vsel %vm383, %v1775, %v1777
        %v1788 = vsel %vm383, %v1779, %v1781
        %v1789 = vsel %vm383, %v1783, %v1785
        %v1794 = vsel %vm1733, %v1786, %v1753
        %v1795 = vsel %vm1733, %v1787, %v1758
        %v1796 = vsel %vm1733, %v1788, %v1763
        %v1797 = vsel %vm1733, %v1789, %v1768
        %v1798 = vsel %vm1733, %v1753, %v1786
        %v1799 = vsel %vm1733, %v1758, %v1787
        %v1800 = vsel %vm1733, %v1763, %v1788
        %v1801 = vsel %vm1733, %v1768, %v1789
        %v1802 = vadd.f32 %v1719, %v1794
        %v1803 = vadd.f32 %v1720, %v1795
        %v1804 = vadd.f32 %v1721, %v1796
        %v1805 = vadd.f32 %v1722, %v1797
        %v1806 = vmul.f32 %v1802, %v1798
        %v1807 = vmul.f32 %v1803, %v1799
        %v1808 = vmul.f32 %v1804, %v1800
        %v1809 = vmul.f32 %v1805, %v1801
        %v1810 = vld [vmem:[%s408] sm:$0xff]
        %v1811 = vcombine.high %v1631, %v1631
        %1812 = vrot.lane.b32.xlu0 %v1631, 127
        %v1813 = vpop.permute.xlu0 %1812
        %1814 = vrot.lane.b32.xlu0 %v1811, 127
        %v1815 = vpop.permute.xlu0 %1814
        %v1816 = vsel %vm383, %v1813, %v1815
        %v1818 = vsel %vm416, %v1810, 0
        %v1820 = vsel %vm420, %v1816, 0
        %1822 = vmatprep.subr.mxu0 0.0
        %1823 = vmatpush1.msra.mxu0 %v1820
        %1824 = vmatprep.subr.mxu0 0.0
        %1825 = vmatpush1.msra.mxu0 0.0
        %1826 = vmatprep.subr.mxu0 0.0
        %1827 = vmatpush1.msra.mxu0 0.0
        %1828 = vmatprep.subr.mxu0 0.0
        %1829 = vmatpush1.msra.mxu0 0.0
        %1830 = vmatprep.subr.mxu0 0.0
        %1831 = vmatpush1.msra.mxu0 0.0
        %1832 = vmatprep.subr.mxu0 0.0
        %1833 = vmatpush1.msra.mxu0 0.0
        %1834 = vmatprep.subr.mxu0 0.0
        %1835 = vmatpush1.msra.mxu0 0.0
        %1836 = vmatprep.subr.mxu0 0.0
        %1837 = vmatpush1.msra.mxu0 0.0
        %1838 = vmatprep.subr.mxu0 0.0
        %1839 = vmatpush1.msra.mxu0 0.0
        %1840 = vmatprep.subr.mxu0 0.0
        %1841 = vmatpush1.msra.mxu0 0.0
        %1842 = vmatprep.subr.mxu0 0.0
        %1843 = vmatpush1.msra.mxu0 0.0
        %1844 = vmatprep.subr.mxu0 0.0
        %1845 = vmatpush1.msra.mxu0 0.0
        %1846 = vmatprep.subr.mxu0 0.0
        %1847 = vmatpush1.msra.mxu0 0.0
        %1848 = vmatprep.subr.mxu0 0.0
        %1849 = vmatpush1.msra.mxu0 0.0
        %1850 = vmatprep.subr.mxu0 0.0
        %1851 = vmatpush1.msra.mxu0 0.0
        %1852 = vmatprep.subr.mxu0 0.0
        %1853 = vmatpush1.msra.mxu0 0.0
        %1854 = vmatprep.subr.mxu0 0.0
        %1855 = vmatpush1.msra.mxu0 0.0
        %1856 = vmatprep.subr.mxu0 0.0
        %1857 = vmatpush1.msra.mxu0 0.0
        %1858 = vmatprep.subr.mxu0 0.0
        %1859 = vmatpush1.msra.mxu0 0.0
        %1860 = vmatprep.subr.mxu0 0.0
        %1861 = vmatpush1.msra.mxu0 0.0
        %1862 = vmatprep.subr.mxu0 0.0
        %1863 = vmatpush1.msra.mxu0 0.0
        %1864 = vmatprep.subr.mxu0 0.0
        %1865 = vmatpush1.msra.mxu0 0.0
        %1866 = vmatprep.subr.mxu0 0.0
        %1867 = vmatpush1.msra.mxu0 0.0
        %1868 = vmatprep.subr.mxu0 0.0
        %1869 = vmatpush1.msra.mxu0 0.0
        %1870 = vmatprep.subr.mxu0 0.0
        %1871 = vmatpush1.msra.mxu0 0.0
        %1872 = vmatprep.subr.mxu0 0.0
        %1873 = vmatpush1.msra.mxu0 0.0
        %1874 = vmatprep.subr.mxu0 0.0
        %1875 = vmatpush1.msra.mxu0 0.0
        %1876 = vmatprep.subr.mxu0 0.0
        %1877 = vmatpush1.msra.mxu0 0.0
        %1878 = vmatprep.subr.mxu0 0.0
        %1879 = vmatpush1.msra.mxu0 0.0
        %1880 = vmatprep.subr.mxu0 0.0
        %1881 = vmatpush1.msra.mxu0 0.0
        %1882 = vmatprep.subr.mxu0 0.0
        %1883 = vmatpush1.msra.mxu0 0.0
        %1884 = vmatprep.subr.mxu0 0.0
        %1885 = vmatpush1.msra.mxu0 0.0
        %1886 = vmatprep.mubr.f32.mxu0 0.0
        %1887 = vmatmul.mubr.f32.gmra.mrb[0].mxu0 %v1818
        %v1888 = vpop.f32.mrb[0].mxu0
        %v1889 = vadd.f32 0.0, %v1888
        %v1890 = vpop.f32.mrb[0].mxu0
        %1891 = vdwg.mxu0
        %v1893 = vsel %vm416, %v1723, 0
        %v1895 = vsel %vm420, %v1631, 0
        %1897 = vmatprep.subr.mxu0 0.0
        %1898 = vmatpush1.msra.mxu0 %v1895
        %1899 = vmatprep.subr.mxu0 0.0
        %1900 = vmatpush1.msra.mxu0 0.0
        %1901 = vmatprep.subr.mxu0 0.0
        %1902 = vmatpush1.msra.mxu0 0.0
        %1903 = vmatprep.subr.mxu0 0.0
        %1904 = vmatpush1.msra.mxu0 0.0
        %1905 = vmatprep.subr.mxu0 0.0
        %1906 = vmatpush1.msra.mxu0 0.0
        %1907 = vmatprep.subr.mxu0 0.0
        %1908 = vmatpush1.msra.mxu0 0.0
        %1909 = vmatprep.subr.mxu0 0.0
        %1910 = vmatpush1.msra.mxu0 0.0
        %1911 = vmatprep.subr.mxu0 0.0
        %1912 = vmatpush1.msra.mxu0 0.0
        %1913 = vmatprep.subr.mxu0 0.0
        %1914 = vmatpush1.msra.mxu0 0.0
        %1915 = vmatprep.subr.mxu0 0.0
        %1916 = vmatpush1.msra.mxu0 0.0
        %1917 = vmatprep.subr.mxu0 0.0
        %1918 = vmatpush1.msra.mxu0 0.0
        %1919 = vmatprep.subr.mxu0 0.0
        %1920 = vmatpush1.msra.mxu0 0.0
        %1921 = vmatprep.subr.mxu0 0.0
        %1922 = vmatpush1.msra.mxu0 0.0
        %1923 = vmatprep.subr.mxu0 0.0
        %1924 = vmatpush1.msra.mxu0 0.0
        %1925 = vmatprep.subr.mxu0 0.0
        %1926 = vmatpush1.msra.mxu0 0.0
        %1927 = vmatprep.subr.mxu0 0.0
        %1928 = vmatpush1.msra.mxu0 0.0
        %1929 = vmatprep.subr.mxu0 0.0
        %1930 = vmatpush1.msra.mxu0 0.0
        %1931 = vmatprep.subr.mxu0 0.0
        %1932 = vmatpush1.msra.mxu0 0.0
        %1933 = vmatprep.subr.mxu0 0.0
        %1934 = vmatpush1.msra.mxu0 0.0
        %1935 = vmatprep.subr.mxu0 0.0
        %1936 = vmatpush1.msra.mxu0 0.0
        %1937 = vmatprep.subr.mxu0 0.0
        %1938 = vmatpush1.msra.mxu0 0.0
        %1939 = vmatprep.subr.mxu0 0.0
        %1940 = vmatpush1.msra.mxu0 0.0
        %1941 = vmatprep.subr.mxu0 0.0
        %1942 = vmatpush1.msra.mxu0 0.0
        %1943 = vmatprep.subr.mxu0 0.0
        %1944 = vmatpush1.msra.mxu0 0.0
        %1945 = vmatprep.subr.mxu0 0.0
        %1946 = vmatpush1.msra.mxu0 0.0
        %1947 = vmatprep.subr.mxu0 0.0
        %1948 = vmatpush1.msra.mxu0 0.0
        %1949 = vmatprep.subr.mxu0 0.0
        %1950 = vmatpush1.msra.mxu0 0.0
        %1951 = vmatprep.subr.mxu0 0.0
        %1952 = vmatpush1.msra.mxu0 0.0
        %1953 = vmatprep.subr.mxu0 0.0
        %1954 = vmatpush1.msra.mxu0 0.0
        %1955 = vmatprep.subr.mxu0 0.0
        %1956 = vmatpush1.msra.mxu0 0.0
        %1957 = vmatprep.subr.mxu0 0.0
        %1958 = vmatpush1.msra.mxu0 0.0
        %1959 = vmatprep.subr.mxu0 0.0
        %1960 = vmatpush1.msra.mxu0 0.0
        %1961 = vmatprep.mubr.f32.mxu0 0.0
        %1962 = vmatmul.mubr.f32.gmra.mrb[0].mxu0 %v1893
        %v1963 = vpop.f32.mrb[0].mxu0
        %v1964 = vadd.f32 %v1889, %v1963
        %v1965 = vpop.f32.mrb[0].mxu0
        %1966 = vdwg.mxu0
        %v1967 = vld [vmem:[%s568] sm:$0xff]
        %v1968 = vld [vmem:[%s568 + $0x8] sm:$0xff]
        %v1969 = vld [vmem:[%s568 + $0x10] sm:$0xff]
        %v1970 = vld [vmem:[%s568 + $0x18] sm:$0xff]
        %1972 = vset.pattern.permute.xlu0 0
        %1973 = vperm.xlu0 %1972, %v1967
        %v1974 = vpop.permute.xlu0 %1973
        %1977 = vset.pattern.permute.xlu0 0
        %1978 = vperm.xlu0 %1977, %v1968
        %v1979 = vpop.permute.xlu0 %1978
        %1982 = vset.pattern.permute.xlu0 0
        %1983 = vperm.xlu0 %1982, %v1969
        %v1984 = vpop.permute.xlu0 %1983
        %1987 = vset.pattern.permute.xlu0 0
        %1988 = vperm.xlu0 %1987, %v1970
        %v1989 = vpop.permute.xlu0 %1988
        %1991 = vrot.lane.b32.xlu0 %v1670, 126
        %v1992 = vpop.permute.xlu0 %1991
        %1993 = vrot.lane.b32.xlu0 %v1737, 126
        %v1994 = vpop.permute.xlu0 %1993
        %1995 = vrot.lane.b32.xlu0 %v1674, 126
        %v1996 = vpop.permute.xlu0 %1995
        %1997 = vrot.lane.b32.xlu0 %v1741, 126
        %v1998 = vpop.permute.xlu0 %1997
        %1999 = vrot.lane.b32.xlu0 %v1678, 126
        %v2000 = vpop.permute.xlu0 %1999
        %2001 = vrot.lane.b32.xlu0 %v1745, 126
        %v2002 = vpop.permute.xlu0 %2001
        %2003 = vrot.lane.b32.xlu0 %v1682, 126
        %v2004 = vpop.permute.xlu0 %2003
        %2005 = vrot.lane.b32.xlu0 %v1749, 126
        %v2006 = vpop.permute.xlu0 %2005
        %v2007 = vsel %vm609, %v1992, %v1994
        %v2008 = vsel %vm609, %v1996, %v1998
        %v2009 = vsel %vm609, %v2000, %v2002
        %v2010 = vsel %vm609, %v2004, %v2006
        %v2015 = vsel %vm1666, %v2007, %v1974
        %v2016 = vsel %vm1666, %v2008, %v1979
        %v2017 = vsel %vm1666, %v2009, %v1984
        %v2018 = vsel %vm1666, %v2010, %v1989
        %v2019 = vsel %vm1666, %v1974, %v2007
        %v2020 = vsel %vm1666, %v1979, %v2008
        %v2021 = vsel %vm1666, %v1984, %v2009
        %v2022 = vsel %vm1666, %v1989, %v2010
        %v2023 = vadd.f32 %v1806, %v2015
        %v2024 = vadd.f32 %v1807, %v2016
        %v2025 = vadd.f32 %v1808, %v2017
        %v2026 = vadd.f32 %v1809, %v2018
        %v2027 = vmul.f32 %v2023, %v2019
        %v2028 = vmul.f32 %v2024, %v2020
        %v2029 = vmul.f32 %v2025, %v2021
        %v2030 = vmul.f32 %v2026, %v2022
        %v2031 = vld [vmem:[%s634] sm:$0xff]
        %2032 = vrot.lane.b32.xlu0 %v1631, 126
        %v2033 = vpop.permute.xlu0 %2032
        %2034 = vrot.lane.b32.xlu0 %v1811, 126
        %v2035 = vpop.permute.xlu0 %2034
        %v2036 = vsel %vm609, %v2033, %v2035
        %v2038 = vsel %vm416, %v2031, 0
        %v2040 = vsel %vm420, %v2036, 0
        %2042 = vmatprep.subr.mxu0 0.0
        %2043 = vmatpush1.msra.mxu0 %v2040
        %2044 = vmatprep.subr.mxu0 0.0
        %2045 = vmatpush1.msra.mxu0 0.0
        %2046 = vmatprep.subr.mxu0 0.0
        %2047 = vmatpush1.msra.mxu0 0.0
        %2048 = vmatprep.subr.mxu0 0.0
        %2049 = vmatpush1.msra.mxu0 0.0
        %2050 = vmatprep.subr.mxu0 0.0
        %2051 = vmatpush1.msra.mxu0 0.0
        %2052 = vmatprep.subr.mxu0 0.0
        %2053 = vmatpush1.msra.mxu0 0.0
        %2054 = vmatprep.subr.mxu0 0.0
        %2055 = vmatpush1.msra.mxu0 0.0
        %2056 = vmatprep.subr.mxu0 0.0
        %2057 = vmatpush1.msra.mxu0 0.0
        %2058 = vmatprep.subr.mxu0 0.0
        %2059 = vmatpush1.msra.mxu0 0.0
        %2060 = vmatprep.subr.mxu0 0.0
        %2061 = vmatpush1.msra.mxu0 0.0
        %2062 = vmatprep.subr.mxu0 0.0
        %2063 = vmatpush1.msra.mxu0 0.0
        %2064 = vmatprep.subr.mxu0 0.0
        %2065 = vmatpush1.msra.mxu0 0.0
        %2066 = vmatprep.subr.mxu0 0.0
        %2067 = vmatpush1.msra.mxu0 0.0
        %2068 = vmatprep.subr.mxu0 0.0
        %2069 = vmatpush1.msra.mxu0 0.0
        %2070 = vmatprep.subr.mxu0 0.0
        %2071 = vmatpush1.msra.mxu0 0.0
        %2072 = vmatprep.subr.mxu0 0.0
        %2073 = vmatpush1.msra.mxu0 0.0
        %2074 = vmatprep.subr.mxu0 0.0
        %2075 = vmatpush1.msra.mxu0 0.0
        %2076 = vmatprep.subr.mxu0 0.0
        %2077 = vmatpush1.msra.mxu0 0.0
        %2078 = vmatprep.subr.mxu0 0.0
        %2079 = vmatpush1.msra.mxu0 0.0
        %2080 = vmatprep.subr.mxu0 0.0
        %2081 = vmatpush1.msra.mxu0 0.0
        %2082 = vmatprep.subr.mxu0 0.0
        %2083 = vmatpush1.msra.mxu0 0.0
        %2084 = vmatprep.subr.mxu0 0.0
        %2085 = vmatpush1.msra.mxu0 0.0
        %2086 = vmatprep.subr.mxu0 0.0
        %2087 = vmatpush1.msra.mxu0 0.0
        %2088 = vmatprep.subr.mxu0 0.0
        %2089 = vmatpush1.msra.mxu0 0.0
        %2090 = vmatprep.subr.mxu0 0.0
        %2091 = vmatpush1.msra.mxu0 0.0
        %2092 = vmatprep.subr.mxu0 0.0
        %2093 = vmatpush1.msra.mxu0 0.0
        %2094 = vmatprep.subr.mxu0 0.0
        %2095 = vmatpush1.msra.mxu0 0.0
        %2096 = vmatprep.subr.mxu0 0.0
        %2097 = vmatpush1.msra.mxu0 0.0
        %2098 = vmatprep.subr.mxu0 0.0
        %2099 = vmatpush1.msra.mxu0 0.0
        %2100 = vmatprep.subr.mxu0 0.0
        %2101 = vmatpush1.msra.mxu0 0.0
        %2102 = vmatprep.subr.mxu0 0.0
        %2103 = vmatpush1.msra.mxu0 0.0
        %2104 = vmatprep.subr.mxu0 0.0
        %2105 = vmatpush1.msra.mxu0 0.0
        %2106 = vmatprep.mubr.f32.mxu0 0.0
        %2107 = vmatmul.mubr.f32.gmra.mrb[0].mxu0 %v2038
        %v2108 = vpop.f32.mrb[0].mxu0
        %v2109 = vadd.f32 0.0, %v2108
        %v2110 = vpop.f32.mrb[0].mxu0
        %2111 = vdwg.mxu0
        %v2112 = vadd.f32 %v1964, %v2109
        %v2113 = vld [vmem:[%s717] sm:$0xff]
        %v2114 = vld [vmem:[%s717 + $0x8] sm:$0xff]
        %v2115 = vld [vmem:[%s717 + $0x10] sm:$0xff]
        %v2116 = vld [vmem:[%s717 + $0x18] sm:$0xff]
        %2118 = vset.pattern.permute.xlu0 0
        %2119 = vperm.xlu0 %2118, %v2113
        %v2120 = vpop.permute.xlu0 %2119
        %2123 = vset.pattern.permute.xlu0 0
        %2124 = vperm.xlu0 %2123, %v2114
        %v2125 = vpop.permute.xlu0 %2124
        %2128 = vset.pattern.permute.xlu0 0
        %2129 = vperm.xlu0 %2128, %v2115
        %v2130 = vpop.permute.xlu0 %2129
        %2133 = vset.pattern.permute.xlu0 0
        %2134 = vperm.xlu0 %2133, %v2116
        %v2135 = vpop.permute.xlu0 %2134
        %2137 = vrot.lane.b32.xlu0 %v1670, 110
        %v2138 = vpop.permute.xlu0 %2137
        %2139 = vrot.lane.b32.xlu0 %v1737, 110
        %v2140 = vpop.permute.xlu0 %2139
        %2141 = vrot.lane.b32.xlu0 %v1674, 110
        %v2142 = vpop.permute.xlu0 %2141
        %2143 = vrot.lane.b32.xlu0 %v1741, 110
        %v2144 = vpop.permute.xlu0 %2143
        %2145 = vrot.lane.b32.xlu0 %v1678, 110
        %v2146 = vpop.permute.xlu0 %2145
        %2147 = vrot.lane.b32.xlu0 %v1745, 110
        %v2148 = vpop.permute.xlu0 %2147
        %2149 = vrot.lane.b32.xlu0 %v1682, 110
        %v2150 = vpop.permute.xlu0 %2149
        %2151 = vrot.lane.b32.xlu0 %v1749, 110
        %v2152 = vpop.permute.xlu0 %2151
        %v2153 = vsel %vm758, %v2138, %v2140
        %v2154 = vsel %vm758, %v2142, %v2144
        %v2155 = vsel %vm758, %v2146, %v2148
        %v2156 = vsel %vm758, %v2150, %v2152
        %v2161 = vsel %vm1733, %v2153, %v2120
        %v2162 = vsel %vm1733, %v2154, %v2125
        %v2163 = vsel %vm1733, %v2155, %v2130
        %v2164 = vsel %vm1733, %v2156, %v2135
        %v2165 = vsel %vm1733, %v2120, %v2153
        %v2166 = vsel %vm1733, %v2125, %v2154
        %v2167 = vsel %vm1733, %v2130, %v2155
        %v2168 = vsel %vm1733, %v2135, %v2156
        %v2169 = vadd.f32 %v2027, %v2161
        %v2170 = vadd.f32 %v2028, %v2162
        %v2171 = vadd.f32 %v2029, %v2163
        %v2172 = vadd.f32 %v2030, %v2164
        %v2173 = vmul.f32 %v2169, %v2165
        %v2174 = vmul.f32 %v2170, %v2166
        %v2175 = vmul.f32 %v2171, %v2167
        %v2176 = vmul.f32 %v2172, %v2168
        %v2177 = vld [vmem:[%s783] sm:$0xff]
        %2178 = vrot.lane.b32.xlu0 %v1631, 110
        %v2179 = vpop.permute.xlu0 %2178
        %2180 = vrot.lane.b32.xlu0 %v1811, 110
        %v2181 = vpop.permute.xlu0 %2180
        %v2182 = vsel %vm758, %v2179, %v2181
        %v2184 = vsel %vm416, %v2177, 0
        %v2186 = vsel %vm420, %v2182, 0
        %2188 = vmatprep.subr.mxu0 0.0
        %2189 = vmatpush1.msra.mxu0 %v2186
        %2190 = vmatprep.subr.mxu0 0.0
        %2191 = vmatpush1.msra.mxu0 0.0
        %2192 = vmatprep.subr.mxu0 0.0
        %2193 = vmatpush1.msra.mxu0 0.0
        %2194 = vmatprep.subr.mxu0 0.0
        %2195 = vmatpush1.msra.mxu0 0.0
        %2196 = vmatprep.subr.mxu0 0.0
        %2197 = vmatpush1.msra.mxu0 0.0
        %2198 = vmatprep.subr.mxu0 0.0
        %2199 = vmatpush1.msra.mxu0 0.0
        %2200 = vmatprep.subr.mxu0 0.0
        %2201 = vmatpush1.msra.mxu0 0.0
        %2202 = vmatprep.subr.mxu0 0.0
        %2203 = vmatpush1.msra.mxu0 0.0
        %2204 = vmatprep.subr.mxu0 0.0
        %2205 = vmatpush1.msra.mxu0 0.0
        %2206 = vmatprep.subr.mxu0 0.0
        %2207 = vmatpush1.msra.mxu0 0.0
        %2208 = vmatprep.subr.mxu0 0.0
        %2209 = vmatpush1.msra.mxu0 0.0
        %2210 = vmatprep.subr.mxu0 0.0
        %2211 = vmatpush1.msra.mxu0 0.0
        %2212 = vmatprep.subr.mxu0 0.0
        %2213 = vmatpush1.msra.mxu0 0.0
        %2214 = vmatprep.subr.mxu0 0.0
        %2215 = vmatpush1.msra.mxu0 0.0
        %2216 = vmatprep.subr.mxu0 0.0
        %2217 = vmatpush1.msra.mxu0 0.0
        %2218 = vmatprep.subr.mxu0 0.0
        %2219 = vmatpush1.msra.mxu0 0.0
        %2220 = vmatprep.subr.mxu0 0.0
        %2221 = vmatpush1.msra.mxu0 0.0
        %2222 = vmatprep.subr.mxu0 0.0
        %2223 = vmatpush1.msra.mxu0 0.0
        %2224 = vmatprep.subr.mxu0 0.0
        %2225 = vmatpush1.msra.mxu0 0.0
        %2226 = vmatprep.subr.mxu0 0.0
        %2227 = vmatpush1.msra.mxu0 0.0
        %2228 = vmatprep.subr.mxu0 0.0
        %2229 = vmatpush1.msra.mxu0 0.0
        %2230 = vmatprep.subr.mxu0 0.0
        %2231 = vmatpush1.msra.mxu0 0.0
        %2232 = vmatprep.subr.mxu0 0.0
        %2233 = vmatpush1.msra.mxu0 0.0
        %2234 = vmatprep.subr.mxu0 0.0
        %2235 = vmatpush1.msra.mxu0 0.0
        %2236 = vmatprep.subr.mxu0 0.0
        %2237 = vmatpush1.msra.mxu0 0.0
        %2238 = vmatprep.subr.mxu0 0.0
        %2239 = vmatpush1.msra.mxu0 0.0
        %2240 = vmatprep.subr.mxu0 0.0
        %2241 = vmatpush1.msra.mxu0 0.0
        %2242 = vmatprep.subr.mxu0 0.0
        %2243 = vmatpush1.msra.mxu0 0.0
        %2244 = vmatprep.subr.mxu0 0.0
        %2245 = vmatpush1.msra.mxu0 0.0
        %2246 = vmatprep.subr.mxu0 0.0
        %2247 = vmatpush1.msra.mxu0 0.0
        %2248 = vmatprep.subr.mxu0 0.0
        %2249 = vmatpush1.msra.mxu0 0.0
        %2250 = vmatprep.subr.mxu0 0.0
        %2251 = vmatpush1.msra.mxu0 0.0
        %2252 = vmatprep.mubr.f32.mxu0 0.0
        %2253 = vmatmul.mubr.f32.gmra.mrb[0].mxu0 %v2184
        %v2254 = vpop.f32.mrb[0].mxu0
        %v2255 = vadd.f32 0.0, %v2254
        %v2256 = vpop.f32.mrb[0].mxu0
        %2257 = vdwg.mxu0
        %v2258 = vadd.f32 %v2112, %v2255
        %v2259 = vld [vmem:[%s866] sm:$0xff]
        %v2260 = vld [vmem:[%s866 + $0x8] sm:$0xff]
        %v2261 = vld [vmem:[%s866 + $0x10] sm:$0xff]
        %v2262 = vld [vmem:[%s866 + $0x18] sm:$0xff]
        %2264 = vset.pattern.permute.xlu0 0
        %2265 = vperm.xlu0 %2264, %v2259
        %v2266 = vpop.permute.xlu0 %2265
        %2269 = vset.pattern.permute.xlu0 0
        %2270 = vperm.xlu0 %2269, %v2260
        %v2271 = vpop.permute.xlu0 %2270
        %2274 = vset.pattern.permute.xlu0 0
        %2275 = vperm.xlu0 %2274, %v2261
        %v2276 = vpop.permute.xlu0 %2275
        %2279 = vset.pattern.permute.xlu0 0
        %2280 = vperm.xlu0 %2279, %v2262
        %v2281 = vpop.permute.xlu0 %2280
        %2283 = vrot.lane.b32.xlu0 %v1670, 109
        %v2284 = vpop.permute.xlu0 %2283
        %2285 = vrot.lane.b32.xlu0 %v1737, 109
        %v2286 = vpop.permute.xlu0 %2285
        %2287 = vrot.lane.b32.xlu0 %v1674, 109
        %v2288 = vpop.permute.xlu0 %2287
        %2289 = vrot.lane.b32.xlu0 %v1741, 109
        %v2290 = vpop.permute.xlu0 %2289
        %2291 = vrot.lane.b32.xlu0 %v1678, 109
        %v2292 = vpop.permute.xlu0 %2291
        %2293 = vrot.lane.b32.xlu0 %v1745, 109
        %v2294 = vpop.permute.xlu0 %2293
        %2295 = vrot.lane.b32.xlu0 %v1682, 109
        %v2296 = vpop.permute.xlu0 %2295
        %2297 = vrot.lane.b32.xlu0 %v1749, 109
        %v2298 = vpop.permute.xlu0 %2297
        %v2299 = vsel %vm907, %v2284, %v2286
        %v2300 = vsel %vm907, %v2288, %v2290
        %v2301 = vsel %vm907, %v2292, %v2294
        %v2302 = vsel %vm907, %v2296, %v2298
        %v2307 = vsel %vm1666, %v2299, %v2266
        %v2308 = vsel %vm1666, %v2300, %v2271
        %v2309 = vsel %vm1666, %v2301, %v2276
        %v2310 = vsel %vm1666, %v2302, %v2281
        %v2311 = vsel %vm1666, %v2266, %v2299
        %v2312 = vsel %vm1666, %v2271, %v2300
        %v2313 = vsel %vm1666, %v2276, %v2301
        %v2314 = vsel %vm1666, %v2281, %v2302
        %v2315 = vadd.f32 %v2173, %v2307
        %v2316 = vadd.f32 %v2174, %v2308
        %v2317 = vadd.f32 %v2175, %v2309
        %v2318 = vadd.f32 %v2176, %v2310
        %v2319 = vmul.f32 %v2315, %v2311
        %v2320 = vmul.f32 %v2316, %v2312
        %v2321 = vmul.f32 %v2317, %v2313
        %v2322 = vmul.f32 %v2318, %v2314
        %v2323 = vld [vmem:[%s932] sm:$0xff]
        %2324 = vrot.lane.b32.xlu0 %v1631, 109
        %v2325 = vpop.permute.xlu0 %2324
        %2326 = vrot.lane.b32.xlu0 %v1811, 109
        %v2327 = vpop.permute.xlu0 %2326
        %v2328 = vsel %vm907, %v2325, %v2327
        %v2330 = vsel %vm416, %v2323, 0
        %v2332 = vsel %vm420, %v2328, 0
        %2334 = vmatprep.subr.mxu0 0.0
        %2335 = vmatpush1.msra.mxu0 %v2332
        %2336 = vmatprep.subr.mxu0 0.0
        %2337 = vmatpush1.msra.mxu0 0.0
        %2338 = vmatprep.subr.mxu0 0.0
        %2339 = vmatpush1.msra.mxu0 0.0
        %2340 = vmatprep.subr.mxu0 0.0
        %2341 = vmatpush1.msra.mxu0 0.0
        %2342 = vmatprep.subr.mxu0 0.0
        %2343 = vmatpush1.msra.mxu0 0.0
        %2344 = vmatprep.subr.mxu0 0.0
        %2345 = vmatpush1.msra.mxu0 0.0
        %2346 = vmatprep.subr.mxu0 0.0
        %2347 = vmatpush1.msra.mxu0 0.0
        %2348 = vmatprep.subr.mxu0 0.0
        %2349 = vmatpush1.msra.mxu0 0.0
        %2350 = vmatprep.subr.mxu0 0.0
        %2351 = vmatpush1.msra.mxu0 0.0
        %2352 = vmatprep.subr.mxu0 0.0
        %2353 = vmatpush1.msra.mxu0 0.0
        %2354 = vmatprep.subr.mxu0 0.0
        %2355 = vmatpush1.msra.mxu0 0.0
        %2356 = vmatprep.subr.mxu0 0.0
        %2357 = vmatpush1.msra.mxu0 0.0
        %2358 = vmatprep.subr.mxu0 0.0
        %2359 = vmatpush1.msra.mxu0 0.0
        %2360 = vmatprep.subr.mxu0 0.0
        %2361 = vmatpush1.msra.mxu0 0.0
        %2362 = vmatprep.subr.mxu0 0.0
        %2363 = vmatpush1.msra.mxu0 0.0
        %2364 = vmatprep.subr.mxu0 0.0
        %2365 = vmatpush1.msra.mxu0 0.0
        %2366 = vmatprep.subr.mxu0 0.0
        %2367 = vmatpush1.msra.mxu0 0.0
        %2368 = vmatprep.subr.mxu0 0.0
        %2369 = vmatpush1.msra.mxu0 0.0
        %2370 = vmatprep.subr.mxu0 0.0
        %2371 = vmatpush1.msra.mxu0 0.0
        %2372 = vmatprep.subr.mxu0 0.0
        %2373 = vmatpush1.msra.mxu0 0.0
        %2374 = vmatprep.subr.mxu0 0.0
        %2375 = vmatpush1.msra.mxu0 0.0
        %2376 = vmatprep.subr.mxu0 0.0
        %2377 = vmatpush1.msra.mxu0 0.0
        %2378 = vmatprep.subr.mxu0 0.0
        %2379 = vmatpush1.msra.mxu0 0.0
        %2380 = vmatprep.subr.mxu0 0.0
        %2381 = vmatpush1.msra.mxu0 0.0
        %2382 = vmatprep.subr.mxu0 0.0
        %2383 = vmatpush1.msra.mxu0 0.0
        %2384 = vmatprep.subr.mxu0 0.0
        %2385 = vmatpush1.msra.mxu0 0.0
        %2386 = vmatprep.subr.mxu0 0.0
        %2387 = vmatpush1.msra.mxu0 0.0
        %2388 = vmatprep.subr.mxu0 0.0
        %2389 = vmatpush1.msra.mxu0 0.0
        %2390 = vmatprep.subr.mxu0 0.0
        %2391 = vmatpush1.msra.mxu0 0.0
        %2392 = vmatprep.subr.mxu0 0.0
        %2393 = vmatpush1.msra.mxu0 0.0
        %2394 = vmatprep.subr.mxu0 0.0
        %2395 = vmatpush1.msra.mxu0 0.0
        %2396 = vmatprep.subr.mxu0 0.0
        %2397 = vmatpush1.msra.mxu0 0.0
        %2398 = vmatprep.mubr.f32.mxu0 0.0
        %2399 = vmatmul.mubr.f32.gmra.mrb[0].mxu0 %v2330
        %v2400 = vpop.f32.mrb[0].mxu0
        %v2401 = vadd.f32 0.0, %v2400
        %v2402 = vpop.f32.mrb[0].mxu0
        %2403 = vdwg.mxu0
        %v2404 = vadd.f32 %v2258, %v2401
        %v2405 = vld [vmem:[%s1015] sm:$0xff]
        %v2406 = vld [vmem:[%s1015 + $0x8] sm:$0xff]
        %v2407 = vld [vmem:[%s1015 + $0x10] sm:$0xff]
        %v2408 = vld [vmem:[%s1015 + $0x18] sm:$0xff]
        %2410 = vset.pattern.permute.xlu0 0
        %2411 = vperm.xlu0 %2410, %v2405
        %v2412 = vpop.permute.xlu0 %2411
        %2415 = vset.pattern.permute.xlu0 0
        %2416 = vperm.xlu0 %2415, %v2406
        %v2417 = vpop.permute.xlu0 %2416
        %2420 = vset.pattern.permute.xlu0 0
        %2421 = vperm.xlu0 %2420, %v2407
        %v2422 = vpop.permute.xlu0 %2421
        %2425 = vset.pattern.permute.xlu0 0
        %2426 = vperm.xlu0 %2425, %v2408
        %v2427 = vpop.permute.xlu0 %2426
        %2429 = vrot.lane.b32.xlu0 %v1670, 108
        %v2430 = vpop.permute.xlu0 %2429
        %2431 = vrot.lane.b32.xlu0 %v1737, 108
        %v2432 = vpop.permute.xlu0 %2431
        %2433 = vrot.lane.b32.xlu0 %v1674, 108
        %v2434 = vpop.permute.xlu0 %2433
        %2435 = vrot.lane.b32.xlu0 %v1741, 108
        %v2436 = vpop.permute.xlu0 %2435
        %2437 = vrot.lane.b32.xlu0 %v1678, 108
        %v2438 = vpop.permute.xlu0 %2437
        %2439 = vrot.lane.b32.xlu0 %v1745, 108
        %v2440 = vpop.permute.xlu0 %2439
        %2441 = vrot.lane.b32.xlu0 %v1682, 108
        %v2442 = vpop.permute.xlu0 %2441
        %2443 = vrot.lane.b32.xlu0 %v1749, 108
        %v2444 = vpop.permute.xlu0 %2443
        %v2445 = vsel %vm1056, %v2430, %v2432
        %v2446 = vsel %vm1056, %v2434, %v2436
        %v2447 = vsel %vm1056, %v2438, %v2440
        %v2448 = vsel %vm1056, %v2442, %v2444
        %v2453 = vsel %vm1733, %v2445, %v2412
        %v2454 = vsel %vm1733, %v2446, %v2417
        %v2455 = vsel %vm1733, %v2447, %v2422
        %v2456 = vsel %vm1733, %v2448, %v2427
        %v2457 = vsel %vm1733, %v2412, %v2445
        %v2458 = vsel %vm1733, %v2417, %v2446
        %v2459 = vsel %vm1733, %v2422, %v2447
        %v2460 = vsel %vm1733, %v2427, %v2448
        %v2461 = vadd.f32 %v2319, %v2453
        %v2462 = vadd.f32 %v2320, %v2454
        %v2463 = vadd.f32 %v2321, %v2455
        %v2464 = vadd.f32 %v2322, %v2456
        %v2465 = vmul.f32 %v2461, %v2457
        %v2466 = vmul.f32 %v2462, %v2458
        %v2467 = vmul.f32 %v2463, %v2459
        %v2468 = vmul.f32 %v2464, %v2460
        %v2469 = vld [vmem:[%s1081] sm:$0xff]
        %2470 = vrot.lane.b32.xlu0 %v1631, 108
        %v2471 = vpop.permute.xlu0 %2470
        %2472 = vrot.lane.b32.xlu0 %v1811, 108
        %v2473 = vpop.permute.xlu0 %2472
        %v2474 = vsel %vm1056, %v2471, %v2473
        %v2476 = vsel %vm416, %v2469, 0
        %v2478 = vsel %vm420, %v2474, 0
        %2480 = vmatprep.subr.mxu0 0.0
        %2481 = vmatpush1.msra.mxu0 %v2478
        %2482 = vmatprep.subr.mxu0 0.0
        %2483 = vmatpush1.msra.mxu0 0.0
        %2484 = vmatprep.subr.mxu0 0.0
        %2485 = vmatpush1.msra.mxu0 0.0
        %2486 = vmatprep.subr.mxu0 0.0
        %2487 = vmatpush1.msra.mxu0 0.0
        %2488 = vmatprep.subr.mxu0 0.0
        %2489 = vmatpush1.msra.mxu0 0.0
        %2490 = vmatprep.subr.mxu0 0.0
        %2491 = vmatpush1.msra.mxu0 0.0
        %2492 = vmatprep.subr.mxu0 0.0
        %2493 = vmatpush1.msra.mxu0 0.0
        %2494 = vmatprep.subr.mxu0 0.0
        %2495 = vmatpush1.msra.mxu0 0.0
        %2496 = vmatprep.subr.mxu0 0.0
        %2497 = vmatpush1.msra.mxu0 0.0
        %2498 = vmatprep.subr.mxu0 0.0
        %2499 = vmatpush1.msra.mxu0 0.0
        %2500 = vmatprep.subr.mxu0 0.0
        %2501 = vmatpush1.msra.mxu0 0.0
        %2502 = vmatprep.subr.mxu0 0.0
        %2503 = vmatpush1.msra.mxu0 0.0
        %2504 = vmatprep.subr.mxu0 0.0
        %2505 = vmatpush1.msra.mxu0 0.0
        %2506 = vmatprep.subr.mxu0 0.0
        %2507 = vmatpush1.msra.mxu0 0.0
        %2508 = vmatprep.subr.mxu0 0.0
        %2509 = vmatpush1.msra.mxu0 0.0
        %2510 = vmatprep.subr.mxu0 0.0
        %2511 = vmatpush1.msra.mxu0 0.0
        %2512 = vmatprep.subr.mxu0 0.0
        %2513 = vmatpush1.msra.mxu0 0.0
        %2514 = vmatprep.subr.mxu0 0.0
        %2515 = vmatpush1.msra.mxu0 0.0
        %2516 = vmatprep.subr.mxu0 0.0
        %2517 = vmatpush1.msra.mxu0 0.0
        %2518 = vmatprep.subr.mxu0 0.0
        %2519 = vmatpush1.msra.mxu0 0.0
        %2520 = vmatprep.subr.mxu0 0.0
        %2521 = vmatpush1.msra.mxu0 0.0
        %2522 = vmatprep.subr.mxu0 0.0
        %2523 = vmatpush1.msra.mxu0 0.0
        %2524 = vmatprep.subr.mxu0 0.0
        %2525 = vmatpush1.msra.mxu0 0.0
        %2526 = vmatprep.subr.mxu0 0.0
        %2527 = vmatpush1.msra.mxu0 0.0
        %2528 = vmatprep.subr.mxu0 0.0
        %2529 = vmatpush1.msra.mxu0 0.0
        %2530 = vmatprep.subr.mxu0 0.0
        %2531 = vmatpush1.msra.mxu0 0.0
        %2532 = vmatprep.subr.mxu0 0.0
        %2533 = vmatpush1.msra.mxu0 0.0
        %2534 = vmatprep.subr.mxu0 0.0
        %2535 = vmatpush1.msra.mxu0 0.0
        %2536 = vmatprep.subr.mxu0 0.0
        %2537 = vmatpush1.msra.mxu0 0.0
        %2538 = vmatprep.subr.mxu0 0.0
        %2539 = vmatpush1.msra.mxu0 0.0
        %2540 = vmatprep.subr.mxu0 0.0
        %2541 = vmatpush1.msra.mxu0 0.0
        %2542 = vmatprep.subr.mxu0 0.0
        %2543 = vmatpush1.msra.mxu0 0.0
        %2544 = vmatprep.mubr.f32.mxu0 0.0
        %2545 = vmatmul.mubr.f32.gmra.mrb[0].mxu0 %v2476
        %v2546 = vpop.f32.mrb[0].mxu0
        %v2547 = vadd.f32 0.0, %v2546
        %v2548 = vpop.f32.mrb[0].mxu0
        %2549 = vdwg.mxu0
        %v2550 = vadd.f32 %v2404, %v2547
        %v2551 = vld [vmem:[%s1164] sm:$0xff]
        %v2552 = vld [vmem:[%s1164 + $0x8] sm:$0xff]
        %v2553 = vld [vmem:[%s1164 + $0x10] sm:$0xff]
        %v2554 = vld [vmem:[%s1164 + $0x18] sm:$0xff]
        %2556 = vset.pattern.permute.xlu0 0
        %2557 = vperm.xlu0 %2556, %v2551
        %v2558 = vpop.permute.xlu0 %2557
        %2561 = vset.pattern.permute.xlu0 0
        %2562 = vperm.xlu0 %2561, %v2552
        %v2563 = vpop.permute.xlu0 %2562
        %2566 = vset.pattern.permute.xlu0 0
        %2567 = vperm.xlu0 %2566, %v2553
        %v2568 = vpop.permute.xlu0 %2567
        %2571 = vset.pattern.permute.xlu0 0
        %2572 = vperm.xlu0 %2571, %v2554
        %v2573 = vpop.permute.xlu0 %2572
        %2575 = vrot.lane.b32.xlu0 %v1670, 92
        %v2576 = vpop.permute.xlu0 %2575
        %2577 = vrot.lane.b32.xlu0 %v1737, 92
        %v2578 = vpop.permute.xlu0 %2577
        %2579 = vrot.lane.b32.xlu0 %v1674, 92
        %v2580 = vpop.permute.xlu0 %2579
        %2581 = vrot.lane.b32.xlu0 %v1741, 92
        %v2582 = vpop.permute.xlu0 %2581
        %2583 = vrot.lane.b32.xlu0 %v1678, 92
        %v2584 = vpop.permute.xlu0 %2583
        %2585 = vrot.lane.b32.xlu0 %v1745, 92
        %v2586 = vpop.permute.xlu0 %2585
        %2587 = vrot.lane.b32.xlu0 %v1682, 92
        %v2588 = vpop.permute.xlu0 %2587
        %2589 = vrot.lane.b32.xlu0 %v1749, 92
        %v2590 = vpop.permute.xlu0 %2589
        %v2591 = vsel %vm1205, %v2576, %v2578
        %v2592 = vsel %vm1205, %v2580, %v2582
        %v2593 = vsel %vm1205, %v2584, %v2586
        %v2594 = vsel %vm1205, %v2588, %v2590
        %v2599 = vsel %vm1666, %v2591, %v2558
        %v2600 = vsel %vm1666, %v2592, %v2563
        %v2601 = vsel %vm1666, %v2593, %v2568
        %v2602 = vsel %vm1666, %v2594, %v2573
        %v2603 = vsel %vm1666, %v2558, %v2591
        %v2604 = vsel %vm1666, %v2563, %v2592
        %v2605 = vsel %vm1666, %v2568, %v2593
        %v2606 = vsel %vm1666, %v2573, %v2594
        %v2607 = vadd.f32 %v2465, %v2599
        %v2608 = vadd.f32 %v2466, %v2600
        %v2609 = vadd.f32 %v2467, %v2601
        %v2610 = vadd.f32 %v2468, %v2602
        %v2611 = vmul.f32 %v2607, %v2603
        %v2612 = vmul.f32 %v2608, %v2604
        %v2613 = vmul.f32 %v2609, %v2605
        %v2614 = vmul.f32 %v2610, %v2606
        %v2615 = vld [vmem:[%s1230] sm:$0xff]
        %2616 = vrot.lane.b32.xlu0 %v1631, 92
        %v2617 = vpop.permute.xlu0 %2616
        %2618 = vrot.lane.b32.xlu0 %v1811, 92
        %v2619 = vpop.permute.xlu0 %2618
        %v2620 = vsel %vm1205, %v2617, %v2619
        %v2622 = vsel %vm416, %v2615, 0
        %v2624 = vsel %vm420, %v2620, 0
        %2626 = vmatprep.subr.mxu0 0.0
        %2627 = vmatpush1.msra.mxu0 %v2624
        %2628 = vmatprep.subr.mxu0 0.0
        %2629 = vmatpush1.msra.mxu0 0.0
        %2630 = vmatprep.subr.mxu0 0.0
        %2631 = vmatpush1.msra.mxu0 0.0
        %2632 = vmatprep.subr.mxu0 0.0
        %2633 = vmatpush1.msra.mxu0 0.0
        %2634 = vmatprep.subr.mxu0 0.0
        %2635 = vmatpush1.msra.mxu0 0.0
        %2636 = vmatprep.subr.mxu0 0.0
        %2637 = vmatpush1.msra.mxu0 0.0
        %2638 = vmatprep.subr.mxu0 0.0
        %2639 = vmatpush1.msra.mxu0 0.0
        %2640 = vmatprep.subr.mxu0 0.0
        %2641 = vmatpush1.msra.mxu0 0.0
        %2642 = vmatprep.subr.mxu0 0.0
        %2643 = vmatpush1.msra.mxu0 0.0
        %2644 = vmatprep.subr.mxu0 0.0
        %2645 = vmatpush1.msra.mxu0 0.0
        %2646 = vmatprep.subr.mxu0 0.0
        %2647 = vmatpush1.msra.mxu0 0.0
        %2648 = vmatprep.subr.mxu0 0.0
        %2649 = vmatpush1.msra.mxu0 0.0
        %2650 = vmatprep.subr.mxu0 0.0
        %2651 = vmatpush1.msra.mxu0 0.0
        %2652 = vmatprep.subr.mxu0 0.0
        %2653 = vmatpush1.msra.mxu0 0.0
        %2654 = vmatprep.subr.mxu0 0.0
        %2655 = vmatpush1.msra.mxu0 0.0
        %2656 = vmatprep.subr.mxu0 0.0
        %2657 = vmatpush1.msra.mxu0 0.0
        %2658 = vmatprep.subr.mxu0 0.0
        %2659 = vmatpush1.msra.mxu0 0.0
        %2660 = vmatprep.subr.mxu0 0.0
        %2661 = vmatpush1.msra.mxu0 0.0
        %2662 = vmatprep.subr.mxu0 0.0
        %2663 = vmatpush1.msra.mxu0 0.0
        %2664 = vmatprep.subr.mxu0 0.0
        %2665 = vmatpush1.msra.mxu0 0.0
        %2666 = vmatprep.subr.mxu0 0.0
        %2667 = vmatpush1.msra.mxu0 0.0
        %2668 = vmatprep.subr.mxu0 0.0
        %2669 = vmatpush1.msra.mxu0 0.0
        %2670 = vmatprep.subr.mxu0 0.0
        %2671 = vmatpush1.msra.mxu0 0.0
        %2672 = vmatprep.subr.mxu0 0.0
        %2673 = vmatpush1.msra.mxu0 0.0
        %2674 = vmatprep.subr.mxu0 0.0
        %2675 = vmatpush1.msra.mxu0 0.0
        %2676 = vmatprep.subr.mxu0 0.0
        %2677 = vmatpush1.msra.mxu0 0.0
        %2678 = vmatprep.subr.mxu0 0.0
        %2679 = vmatpush1.msra.mxu0 0.0
        %2680 = vmatprep.subr.mxu0 0.0
        %2681 = vmatpush1.msra.mxu0 0.0
        %2682 = vmatprep.subr.mxu0 0.0
        %2683 = vmatpush1.msra.mxu0 0.0
        %2684 = vmatprep.subr.mxu0 0.0
        %2685 = vmatpush1.msra.mxu0 0.0
        %2686 = vmatprep.subr.mxu0 0.0
        %2687 = vmatpush1.msra.mxu0 0.0
        %2688 = vmatprep.subr.mxu0 0.0
        %2689 = vmatpush1.msra.mxu0 0.0
        %2690 = vmatprep.mubr.f32.mxu0 0.0
        %2691 = vmatmul.mubr.f32.gmra.mrb[0].mxu0 %v2622
        %v2692 = vpop.f32.mrb[0].mxu0
        %v2693 = vadd.f32 0.0, %v2692
        %v2694 = vpop.f32.mrb[0].mxu0
        %2695 = vdwg.mxu0
        %v2696 = vadd.f32 %v2550, %v2693
        %v2697 = vld [vmem:[%s1313] sm:$0xff]
        %v2698 = vld [vmem:[%s1313 + $0x8] sm:$0xff]
        %v2699 = vld [vmem:[%s1313 + $0x10] sm:$0xff]
        %v2700 = vld [vmem:[%s1313 + $0x18] sm:$0xff]
        %2702 = vset.pattern.permute.xlu0 0
        %2703 = vperm.xlu0 %2702, %v2697
        %v2704 = vpop.permute.xlu0 %2703
        %2707 = vset.pattern.permute.xlu0 0
        %2708 = vperm.xlu0 %2707, %v2698
        %v2709 = vpop.permute.xlu0 %2708
        %2712 = vset.pattern.permute.xlu0 0
        %2713 = vperm.xlu0 %2712, %v2699
        %v2714 = vpop.permute.xlu0 %2713
        %2717 = vset.pattern.permute.xlu0 0
        %2718 = vperm.xlu0 %2717, %v2700
        %v2719 = vpop.permute.xlu0 %2718
        %2721 = vrot.lane.b32.xlu0 %v1670, 91
        %v2722 = vpop.permute.xlu0 %2721
        %2723 = vrot.lane.b32.xlu0 %v1737, 91
        %v2724 = vpop.permute.xlu0 %2723
        %2725 = vrot.lane.b32.xlu0 %v1674, 91
        %v2726 = vpop.permute.xlu0 %2725
        %2727 = vrot.lane.b32.xlu0 %v1741, 91
        %v2728 = vpop.permute.xlu0 %2727
        %2729 = vrot.lane.b32.xlu0 %v1678, 91
        %v2730 = vpop.permute.xlu0 %2729
        %2731 = vrot.lane.b32.xlu0 %v1745, 91
        %v2732 = vpop.permute.xlu0 %2731
        %2733 = vrot.lane.b32.xlu0 %v1682, 91
        %v2734 = vpop.permute.xlu0 %2733
        %2735 = vrot.lane.b32.xlu0 %v1749, 91
        %v2736 = vpop.permute.xlu0 %2735
        %v2737 = vsel %vm1354, %v2722, %v2724
        %v2738 = vsel %vm1354, %v2726, %v2728
        %v2739 = vsel %vm1354, %v2730, %v2732
        %v2740 = vsel %vm1354, %v2734, %v2736
        %v2745 = vsel %vm1733, %v2737, %v2704
        %v2746 = vsel %vm1733, %v2738, %v2709
        %v2747 = vsel %vm1733, %v2739, %v2714
        %v2748 = vsel %vm1733, %v2740, %v2719
        %v2749 = vsel %vm1733, %v2704, %v2737
        %v2750 = vsel %vm1733, %v2709, %v2738
        %v2751 = vsel %vm1733, %v2714, %v2739
        %v2752 = vsel %vm1733, %v2719, %v2740
        %v2753 = vadd.f32 %v2611, %v2745
        %v2754 = vadd.f32 %v2612, %v2746
        %v2755 = vadd.f32 %v2613, %v2747
        %v2756 = vadd.f32 %v2614, %v2748
        %v2757 = vmul.f32 %v2753, %v2749
        %v2758 = vmul.f32 %v2754, %v2750
        %v2759 = vmul.f32 %v2755, %v2751
        %v2760 = vmul.f32 %v2756, %v2752
        %v2761 = vld [vmem:[%s1379] sm:$0xff]
        %2762 = vrot.lane.b32.xlu0 %v1631, 91
        %v2763 = vpop.permute.xlu0 %2762
        %2764 = vrot.lane.b32.xlu0 %v1811, 91
        %v2765 = vpop.permute.xlu0 %2764
        %v2766 = vsel %vm1354, %v2763, %v2765
        %v2768 = vsel %vm416, %v2761, 0
        %v2770 = vsel %vm420, %v2766, 0
        %2772 = vmatprep.subr.mxu0 0.0
        %2773 = vmatpush1.msra.mxu0 %v2770
        %2774 = vmatprep.subr.mxu0 0.0
        %2775 = vmatpush1.msra.mxu0 0.0
        %2776 = vmatprep.subr.mxu0 0.0
        %2777 = vmatpush1.msra.mxu0 0.0
        %2778 = vmatprep.subr.mxu0 0.0
        %2779 = vmatpush1.msra.mxu0 0.0
        %2780 = vmatprep.subr.mxu0 0.0
        %2781 = vmatpush1.msra.mxu0 0.0
        %2782 = vmatprep.subr.mxu0 0.0
        %2783 = vmatpush1.msra.mxu0 0.0
        %2784 = vmatprep.subr.mxu0 0.0
        %2785 = vmatpush1.msra.mxu0 0.0
        %2786 = vmatprep.subr.mxu0 0.0
        %2787 = vmatpush1.msra.mxu0 0.0
        %2788 = vmatprep.subr.mxu0 0.0
        %2789 = vmatpush1.msra.mxu0 0.0
        %2790 = vmatprep.subr.mxu0 0.0
        %2791 = vmatpush1.msra.mxu0 0.0
        %2792 = vmatprep.subr.mxu0 0.0
        %2793 = vmatpush1.msra.mxu0 0.0
        %2794 = vmatprep.subr.mxu0 0.0
        %2795 = vmatpush1.msra.mxu0 0.0
        %2796 = vmatprep.subr.mxu0 0.0
        %2797 = vmatpush1.msra.mxu0 0.0
        %2798 = vmatprep.subr.mxu0 0.0
        %2799 = vmatpush1.msra.mxu0 0.0
        %2800 = vmatprep.subr.mxu0 0.0
        %2801 = vmatpush1.msra.mxu0 0.0
        %2802 = vmatprep.subr.mxu0 0.0
        %2803 = vmatpush1.msra.mxu0 0.0
        %2804 = vmatprep.subr.mxu0 0.0
        %2805 = vmatpush1.msra.mxu0 0.0
        %2806 = vmatprep.subr.mxu0 0.0
        %2807 = vmatpush1.msra.mxu0 0.0
        %2808 = vmatprep.subr.mxu0 0.0
        %2809 = vmatpush1.msra.mxu0 0.0
        %2810 = vmatprep.subr.mxu0 0.0
        %2811 = vmatpush1.msra.mxu0 0.0
        %2812 = vmatprep.subr.mxu0 0.0
        %2813 = vmatpush1.msra.mxu0 0.0
        %2814 = vmatprep.subr.mxu0 0.0
        %2815 = vmatpush1.msra.mxu0 0.0
        %2816 = vmatprep.subr.mxu0 0.0
        %2817 = vmatpush1.msra.mxu0 0.0
        %2818 = vmatprep.subr.mxu0 0.0
        %2819 = vmatpush1.msra.mxu0 0.0
        %2820 = vmatprep.subr.mxu0 0.0
        %2821 = vmatpush1.msra.mxu0 0.0
        %2822 = vmatprep.subr.mxu0 0.0
        %2823 = vmatpush1.msra.mxu0 0.0
        %2824 = vmatprep.subr.mxu0 0.0
        %2825 = vmatpush1.msra.mxu0 0.0
        %2826 = vmatprep.subr.mxu0 0.0
        %2827 = vmatpush1.msra.mxu0 0.0
        %2828 = vmatprep.subr.mxu0 0.0
        %2829 = vmatpush1.msra.mxu0 0.0
        %2830 = vmatprep.subr.mxu0 0.0
        %2831 = vmatpush1.msra.mxu0 0.0
        %2832 = vmatprep.subr.mxu0 0.0
        %2833 = vmatpush1.msra.mxu0 0.0
        %2834 = vmatprep.subr.mxu0 0.0
        %2835 = vmatpush1.msra.mxu0 0.0
        %2836 = vmatprep.mubr.f32.mxu0 0.0
        %2837 = vmatmul.mubr.f32.gmra.mrb[0].mxu0 %v2768
        %v2838 = vpop.f32.mrb[0].mxu0
        %v2839 = vadd.f32 0.0, %v2838
        %v2840 = vpop.f32.mrb[0].mxu0
        %2841 = vdwg.mxu0
        %v2842 = vadd.f32 %v2696, %v2839
        %v2843 = vld [vmem:[%s1462] sm:$0xff]
        %v2844 = vld [vmem:[%s1462 + $0x8] sm:$0xff]
        %v2845 = vld [vmem:[%s1462 + $0x10] sm:$0xff]
        %v2846 = vld [vmem:[%s1462 + $0x18] sm:$0xff]
        %2848 = vset.pattern.permute.xlu0 0
        %2849 = vperm.xlu0 %2848, %v2843
        %v2850 = vpop.permute.xlu0 %2849
        %2853 = vset.pattern.permute.xlu0 0
        %2854 = vperm.xlu0 %2853, %v2844
        %v2855 = vpop.permute.xlu0 %2854
        %2858 = vset.pattern.permute.xlu0 0
        %2859 = vperm.xlu0 %2858, %v2845
        %v2860 = vpop.permute.xlu0 %2859
        %2863 = vset.pattern.permute.xlu0 0
        %2864 = vperm.xlu0 %2863, %v2846
        %v2865 = vpop.permute.xlu0 %2864
        %2867 = vrot.lane.b32.xlu0 %v1670, 90
        %v2868 = vpop.permute.xlu0 %2867
        %2869 = vrot.lane.b32.xlu0 %v1737, 90
        %v2870 = vpop.permute.xlu0 %2869
        %2871 = vrot.lane.b32.xlu0 %v1674, 90
        %v2872 = vpop.permute.xlu0 %2871
        %2873 = vrot.lane.b32.xlu0 %v1741, 90
        %v2874 = vpop.permute.xlu0 %2873
        %2875 = vrot.lane.b32.xlu0 %v1678, 90
        %v2876 = vpop.permute.xlu0 %2875
        %2877 = vrot.lane.b32.xlu0 %v1745, 90
        %v2878 = vpop.permute.xlu0 %2877
        %2879 = vrot.lane.b32.xlu0 %v1682, 90
        %v2880 = vpop.permute.xlu0 %2879
        %2881 = vrot.lane.b32.xlu0 %v1749, 90
        %v2882 = vpop.permute.xlu0 %2881
        %v2883 = vsel %vm1503, %v2868, %v2870
        %v2884 = vsel %vm1503, %v2872, %v2874
        %v2885 = vsel %vm1503, %v2876, %v2878
        %v2886 = vsel %vm1503, %v2880, %v2882
        %v2891 = vsel %vm1666, %v2883, %v2850
        %v2892 = vsel %vm1666, %v2884, %v2855
        %v2893 = vsel %vm1666, %v2885, %v2860
        %v2894 = vsel %vm1666, %v2886, %v2865
        %v2895 = vsel %vm1666, %v2850, %v2883
        %v2896 = vsel %vm1666, %v2855, %v2884
        %v2897 = vsel %vm1666, %v2860, %v2885
        %v2898 = vsel %vm1666, %v2865, %v2886
        %v2899 = vadd.f32 %v2757, %v2891
        %v2900 = vadd.f32 %v2758, %v2892
        %v2901 = vadd.f32 %v2759, %v2893
        %v2902 = vadd.f32 %v2760, %v2894
        %v2903 = vmul.f32 %v2899, %v2895
        %v2904 = vmul.f32 %v2900, %v2896
        %v2905 = vmul.f32 %v2901, %v2897
        %v2906 = vmul.f32 %v2902, %v2898
        %v2907 = vld [vmem:[%s1528] sm:$0xff]
        %2908 = vrot.lane.b32.xlu0 %v1631, 90
        %v2909 = vpop.permute.xlu0 %2908
        %2910 = vrot.lane.b32.xlu0 %v1811, 90
        %v2911 = vpop.permute.xlu0 %2910
        %v2912 = vsel %vm1503, %v2909, %v2911
        %v2914 = vsel %vm416, %v2907, 0
        %v2916 = vsel %vm420, %v2912, 0
        %2918 = vmatprep.subr.mxu0 0.0
        %2919 = vmatpush1.msra.mxu0 %v2916
        %2920 = vmatprep.subr.mxu0 0.0
        %2921 = vmatpush1.msra.mxu0 0.0
        %2922 = vmatprep.subr.mxu0 0.0
        %2923 = vmatpush1.msra.mxu0 0.0
        %2924 = vmatprep.subr.mxu0 0.0
        %2925 = vmatpush1.msra.mxu0 0.0
        %2926 = vmatprep.subr.mxu0 0.0
        %2927 = vmatpush1.msra.mxu0 0.0
        %2928 = vmatprep.subr.mxu0 0.0
        %2929 = vmatpush1.msra.mxu0 0.0
        %2930 = vmatprep.subr.mxu0 0.0
        %2931 = vmatpush1.msra.mxu0 0.0
        %2932 = vmatprep.subr.mxu0 0.0
        %2933 = vmatpush1.msra.mxu0 0.0
        %2934 = vmatprep.subr.mxu0 0.0
        %2935 = vmatpush1.msra.mxu0 0.0
        %2936 = vmatprep.subr.mxu0 0.0
        %2937 = vmatpush1.msra.mxu0 0.0
        %2938 = vmatprep.subr.mxu0 0.0
        %2939 = vmatpush1.msra.mxu0 0.0
        %2940 = vmatprep.subr.mxu0 0.0
        %2941 = vmatpush1.msra.mxu0 0.0
        %2942 = vmatprep.subr.mxu0 0.0
        %2943 = vmatpush1.msra.mxu0 0.0
        %2944 = vmatprep.subr.mxu0 0.0
        %2945 = vmatpush1.msra.mxu0 0.0
        %2946 = vmatprep.subr.mxu0 0.0
        %2947 = vmatpush1.msra.mxu0 0.0
        %2948 = vmatprep.subr.mxu0 0.0
        %2949 = vmatpush1.msra.mxu0 0.0
        %2950 = vmatprep.subr.mxu0 0.0
        %2951 = vmatpush1.msra.mxu0 0.0
        %2952 = vmatprep.subr.mxu0 0.0
        %2953 = vmatpush1.msra.mxu0 0.0
        %2954 = vmatprep.subr.mxu0 0.0
        %2955 = vmatpush1.msra.mxu0 0.0
        %2956 = vmatprep.subr.mxu0 0.0
        %2957 = vmatpush1.msra.mxu0 0.0
        %2958 = vmatprep.subr.mxu0 0.0
        %2959 = vmatpush1.msra.mxu0 0.0
        %2960 = vmatprep.subr.mxu0 0.0
        %2961 = vmatpush1.msra.mxu0 0.0
        %2962 = vmatprep.subr.mxu0 0.0
        %2963 = vmatpush1.msra.mxu0 0.0
        %2964 = vmatprep.subr.mxu0 0.0
        %2965 = vmatpush1.msra.mxu0 0.0
        %2966 = vmatprep.subr.mxu0 0.0
        %2967 = vmatpush1.msra.mxu0 0.0
        %2968 = vmatprep.subr.mxu0 0.0
        %2969 = vmatpush1.msra.mxu0 0.0
        %2970 = vmatprep.subr.mxu0 0.0
        %2971 = vmatpush1.msra.mxu0 0.0
        %2972 = vmatprep.subr.mxu0 0.0
        %2973 = vmatpush1.msra.mxu0 0.0
        %2974 = vmatprep.subr.mxu0 0.0
        %2975 = vmatpush1.msra.mxu0 0.0
        %2976 = vmatprep.subr.mxu0 0.0
        %2977 = vmatpush1.msra.mxu0 0.0
        %2978 = vmatprep.subr.mxu0 0.0
        %2979 = vmatpush1.msra.mxu0 0.0
        %2980 = vmatprep.subr.mxu0 0.0
        %2981 = vmatpush1.msra.mxu0 0.0
        %2982 = vmatprep.mubr.f32.mxu0 0.0
        %2983 = vmatmul.mubr.f32.gmra.mrb[0].mxu0 %v2914
        %v2984 = vpop.f32.mrb[0].mxu0
        %v2985 = vadd.f32 0.0, %v2984
        %v2986 = vpop.f32.mrb[0].mxu0
        %2987 = vdwg.mxu0
        %v2988 = vadd.f32 %v2842, %v2985
        %v2989 = vadd.f32 %v2903, %v2904
        %v2990 = vadd.f32 %v2989, %v2905
        %v2991 = vadd.f32 %v2990, %v2906
        %v2992 = vxor.u32 %v2991, 2147483648
        %v2993 = vmul.f32 %v2992, 1.442695
        %v2994 = vpow.pop %v2993
        %v2995 = vadd.f32 %v2994, 1.0
        %v2996 = vrcp.pop %v2995
        %v2997 = vmul.f32 1.0, %v2996
        %v2998 = vadd.f32 %v2988, %v1623
        %v2999 = vmul.f32 %v2997, %v2998
        %3000 = vst [vmem:[%s217 + $0x8] sm:$0xff] %v2999
        %v3001 = vld [vmem:[%s0 + $0x2] sm:$0x1]
        %vm3002 = vcmp.eq.s32.totalorder %v3001, 0
        %vm3003 = vcmp.ne.s32.totalorder %v3001, 0
        %v3004 = vld [vmem:[%s222 + $0x8] sm:$0xff]
        %v3007 = vunpack.c.l.s4 1966171168
        %v3008 = vunpack.c.0.s8 %v3007
        %v3009 = vlaneseq
        %v3010 = vshrl.u32 %v3009, 7
        %v3011 = vsub.s32 %v3008, %v3010
        %v3012 = vrot.slane %v3004, %v3011
        %v3013 = vcombine.high %v3012, %v3012
        %v3015 = vunpack.c.l.s4 1966171168
        %v3016 = vunpack.c.0.s8 %v3015
        %v3017 = vlaneseq
        %v3018 = vshrl.u32 %v3017, 7
        %v3019 = vsub.s32 %v3016, %v3018
        %v3020 = vrot.slane %v3012, %v3019
        %v3022 = vunpack.c.l.s4 1966171168
        %v3023 = vunpack.c.0.s8 %v3022
        %v3024 = vlaneseq
        %v3025 = vshrl.u32 %v3024, 7
        %v3026 = vsub.s32 %v3023, %v3025
        %v3027 = vrot.slane %v3013, %v3026
        %v3028 = vcombine.high %v3020, %v3020
        %v3029 = vcombine.high %v3027, %v3027
        %v3030 = vld [vmem:[%s2] sm:$0xff]
        %v3031 = vld [vmem:[%s2 + $0x8] sm:$0xff]
        %v3032 = vld [vmem:[%s2 + $0x10] sm:$0xff]
        %v3033 = vld [vmem:[%s2 + $0x18] sm:$0xff]
        %v3034 = vsel %vm3002, 1, 0
        %v3035 = vlaneseq
        %v3036 = vshrl.u32 %v3035, 7
        %v3037 = vsub.s32 0, %v3036
        %v3038 = vrot.slane %v3034, %v3037
        %vm3039 = vcmp.eq.s32.totalorder %v3038, 1
        %v3040 = vlaneseq
        %v3041 = vshrl.u32 %v3040, 7
        %v3042 = vsub.s32 0, %v3041
        %v3043 = vrot.slane %v3020, %v3042
        %v3044 = vlaneseq
        %v3045 = vshrl.u32 %v3044, 7
        %v3046 = vsub.s32 0, %v3045
        %v3047 = vrot.slane %v3027, %v3046
        %v3048 = vlaneseq
        %v3049 = vshrl.u32 %v3048, 7
        %v3050 = vsub.s32 0, %v3049
        %v3051 = vrot.slane %v3028, %v3050
        %v3052 = vlaneseq
        %v3053 = vshrl.u32 %v3052, 7
        %v3054 = vsub.s32 0, %v3053
        %v3055 = vrot.slane %v3029, %v3054
        %3061 = vset.pattern.permute.xlu0 0
        %3062 = vperm.xlu0 %3061, %v3030
        %v3063 = vpop.permute.xlu0 %3062
        %3066 = vset.pattern.permute.xlu0 0
        %3067 = vperm.xlu0 %3066, %v3031
        %v3068 = vpop.permute.xlu0 %3067
        %3071 = vset.pattern.permute.xlu0 0
        %3072 = vperm.xlu0 %3071, %v3032
        %v3073 = vpop.permute.xlu0 %3072
        %3076 = vset.pattern.permute.xlu0 0
        %3077 = vperm.xlu0 %3076, %v3033
        %v3078 = vpop.permute.xlu0 %3077
        %v3080 = vsel %vm3039, %v3043, %v3063
        %v3081 = vsel %vm3039, %v3047, %v3068
        %v3082 = vsel %vm3039, %v3051, %v3073
        %v3083 = vsel %vm3039, %v3055, %v3078
        %v3084 = vsel %vm3039, %v3063, %v3043
        %v3085 = vsel %vm3039, %v3068, %v3047
        %v3086 = vsel %vm3039, %v3073, %v3051
        %v3087 = vsel %vm3039, %v3078, %v3055
        %v3088 = vadd.f32 %v3080, 0.0
        %v3089 = vadd.f32 %v3081, 0.0
        %v3090 = vadd.f32 %v3082, 0.0
        %v3091 = vadd.f32 %v3083, 0.0
        %v3092 = vmul.f32 %v3088, %v3084
        %v3093 = vmul.f32 %v3089, %v3085
        %v3094 = vmul.f32 %v3090, %v3086
        %v3095 = vmul.f32 %v3091, %v3087
        %v3096 = vld [vmem:[%s3] sm:$0xff]
        %v3097 = vld [vmem:[%s320] sm:$0xff]
        %v3098 = vld [vmem:[%s320 + $0x8] sm:$0xff]
        %v3099 = vld [vmem:[%s320 + $0x10] sm:$0xff]
        %v3100 = vld [vmem:[%s320 + $0x18] sm:$0xff]
        %v3101 = vsel %vm3003, 1, 0
        %v3102 = vlaneseq
        %v3103 = vshrl.u32 %v3102, 7
        %v3104 = vsub.s32 0, %v3103
        %v3105 = vrot.slane %v3101, %v3104
        %vm3106 = vcmp.eq.s32.totalorder %v3105, 1
        %v3107 = vlaneseq
        %v3108 = vshrl.u32 %v3107, 7
        %v3109 = vsub.s32 1, %v3108
        %v3110 = vrot.slane %v3020, %v3109
        %v3111 = vlaneseq
        %v3112 = vshrl.u32 %v3111, 7
        %v3113 = vsub.s32 1, %v3112
        %v3114 = vrot.slane %v3027, %v3113
        %v3115 = vlaneseq
        %v3116 = vshrl.u32 %v3115, 7
        %v3117 = vsub.s32 1, %v3116
        %v3118 = vrot.slane %v3028, %v3117
        %v3119 = vlaneseq
        %v3120 = vshrl.u32 %v3119, 7
        %v3121 = vsub.s32 1, %v3120
        %v3122 = vrot.slane %v3029, %v3121
        %3124 = vset.pattern.permute.xlu0 0
        %3125 = vperm.xlu0 %3124, %v3097
        %v3126 = vpop.permute.xlu0 %3125
        %3129 = vset.pattern.permute.xlu0 0
        %3130 = vperm.xlu0 %3129, %v3098
        %v3131 = vpop.permute.xlu0 %3130
        %3134 = vset.pattern.permute.xlu0 0
        %3135 = vperm.xlu0 %3134, %v3099
        %v3136 = vpop.permute.xlu0 %3135
        %3139 = vset.pattern.permute.xlu0 0
        %3140 = vperm.xlu0 %3139, %v3100
        %v3141 = vpop.permute.xlu0 %3140
        %3143 = vrot.lane.b32.xlu0 %v3043, 127
        %v3144 = vpop.permute.xlu0 %3143
        %3145 = vrot.lane.b32.xlu0 %v3110, 127
        %v3146 = vpop.permute.xlu0 %3145
        %3147 = vrot.lane.b32.xlu0 %v3047, 127
        %v3148 = vpop.permute.xlu0 %3147
        %3149 = vrot.lane.b32.xlu0 %v3114, 127
        %v3150 = vpop.permute.xlu0 %3149
        %3151 = vrot.lane.b32.xlu0 %v3051, 127
        %v3152 = vpop.permute.xlu0 %3151
        %3153 = vrot.lane.b32.xlu0 %v3118, 127
        %v3154 = vpop.permute.xlu0 %3153
        %3155 = vrot.lane.b32.xlu0 %v3055, 127
        %v3156 = vpop.permute.xlu0 %3155
        %3157 = vrot.lane.b32.xlu0 %v3122, 127
        %v3158 = vpop.permute.xlu0 %3157
        %v3159 = vsel %vm383, %v3144, %v3146
        %v3160 = vsel %vm383, %v3148, %v3150
        %v3161 = vsel %vm383, %v3152, %v3154
        %v3162 = vsel %vm383, %v3156, %v3158
        %v3167 = vsel %vm3106, %v3159, %v3126
        %v3168 = vsel %vm3106, %v3160, %v3131
        %v3169 = vsel %vm3106, %v3161, %v3136
        %v3170 = vsel %vm3106, %v3162, %v3141
        %v3171 = vsel %vm3106, %v3126, %v3159
        %v3172 = vsel %vm3106, %v3131, %v3160
        %v3173 = vsel %vm3106, %v3136, %v3161
        %v3174 = vsel %vm3106, %v3141, %v3162
        %v3175 = vadd.f32 %v3092, %v3167
        %v3176 = vadd.f32 %v3093, %v3168
        %v3177 = vadd.f32 %v3094, %v3169
        %v3178 = vadd.f32 %v3095, %v3170
        %v3179 = vmul.f32 %v3175, %v3171
        %v3180 = vmul.f32 %v3176, %v3172
        %v3181 = vmul.f32 %v3177, %v3173
        %v3182 = vmul.f32 %v3178, %v3174
        %v3183 = vld [vmem:[%s408] sm:$0xff]
        %v3184 = vcombine.high %v3004, %v3004
        %3185 = vrot.lane.b32.xlu0 %v3004, 127
        %v3186 = vpop.permute.xlu0 %3185
        %3187 = vrot.lane.b32.xlu0 %v3184, 127
        %v3188 = vpop.permute.xlu0 %3187
        %v3189 = vsel %vm383, %v3186, %v3188
        %v3191 = vsel %vm416, %v3183, 0
        %v3193 = vsel %vm420, %v3189, 0
        %3195 = vmatprep.subr.mxu0 0.0
        %3196 = vmatpush1.msra.mxu0 %v3193
        %3197 = vmatprep.subr.mxu0 0.0
        %3198 = vmatpush1.msra.mxu0 0.0
        %3199 = vmatprep.subr.mxu0 0.0
        %3200 = vmatpush1.msra.mxu0 0.0
        %3201 = vmatprep.subr.mxu0 0.0
        %3202 = vmatpush1.msra.mxu0 0.0
        %3203 = vmatprep.subr.mxu0 0.0
        %3204 = vmatpush1.msra.mxu0 0.0
        %3205 = vmatprep.subr.mxu0 0.0
        %3206 = vmatpush1.msra.mxu0 0.0
        %3207 = vmatprep.subr.mxu0 0.0
        %3208 = vmatpush1.msra.mxu0 0.0
        %3209 = vmatprep.subr.mxu0 0.0
        %3210 = vmatpush1.msra.mxu0 0.0
        %3211 = vmatprep.subr.mxu0 0.0
        %3212 = vmatpush1.msra.mxu0 0.0
        %3213 = vmatprep.subr.mxu0 0.0
        %3214 = vmatpush1.msra.mxu0 0.0
        %3215 = vmatprep.subr.mxu0 0.0
        %3216 = vmatpush1.msra.mxu0 0.0
        %3217 = vmatprep.subr.mxu0 0.0
        %3218 = vmatpush1.msra.mxu0 0.0
        %3219 = vmatprep.subr.mxu0 0.0
        %3220 = vmatpush1.msra.mxu0 0.0
        %3221 = vmatprep.subr.mxu0 0.0
        %3222 = vmatpush1.msra.mxu0 0.0
        %3223 = vmatprep.subr.mxu0 0.0
        %3224 = vmatpush1.msra.mxu0 0.0
        %3225 = vmatprep.subr.mxu0 0.0
        %3226 = vmatpush1.msra.mxu0 0.0
        %3227 = vmatprep.subr.mxu0 0.0
        %3228 = vmatpush1.msra.mxu0 0.0
        %3229 = vmatprep.subr.mxu0 0.0
        %3230 = vmatpush1.msra.mxu0 0.0
        %3231 = vmatprep.subr.mxu0 0.0
        %3232 = vmatpush1.msra.mxu0 0.0
        %3233 = vmatprep.subr.mxu0 0.0
        %3234 = vmatpush1.msra.mxu0 0.0
        %3235 = vmatprep.subr.mxu0 0.0
        %3236 = vmatpush1.msra.mxu0 0.0
        %3237 = vmatprep.subr.mxu0 0.0
        %3238 = vmatpush1.msra.mxu0 0.0
        %3239 = vmatprep.subr.mxu0 0.0
        %3240 = vmatpush1.msra.mxu0 0.0
        %3241 = vmatprep.subr.mxu0 0.0
        %3242 = vmatpush1.msra.mxu0 0.0
        %3243 = vmatprep.subr.mxu0 0.0
        %3244 = vmatpush1.msra.mxu0 0.0
        %3245 = vmatprep.subr.mxu0 0.0
        %3246 = vmatpush1.msra.mxu0 0.0
        %3247 = vmatprep.subr.mxu0 0.0
        %3248 = vmatpush1.msra.mxu0 0.0
        %3249 = vmatprep.subr.mxu0 0.0
        %3250 = vmatpush1.msra.mxu0 0.0
        %3251 = vmatprep.subr.mxu0 0.0
        %3252 = vmatpush1.msra.mxu0 0.0
        %3253 = vmatprep.subr.mxu0 0.0
        %3254 = vmatpush1.msra.mxu0 0.0
        %3255 = vmatprep.subr.mxu0 0.0
        %3256 = vmatpush1.msra.mxu0 0.0
        %3257 = vmatprep.subr.mxu0 0.0
        %3258 = vmatpush1.msra.mxu0 0.0
        %3259 = vmatprep.mubr.f32.mxu0 0.0
        %3260 = vmatmul.mubr.f32.gmra.mrb[0].mxu0 %v3191
        %v3261 = vpop.f32.mrb[0].mxu0
        %v3262 = vadd.f32 0.0, %v3261
        %v3263 = vpop.f32.mrb[0].mxu0
        %3264 = vdwg.mxu0
        %v3266 = vsel %vm416, %v3096, 0
        %v3268 = vsel %vm420, %v3004, 0
        %3270 = vmatprep.subr.mxu0 0.0
        %3271 = vmatpush1.msra.mxu0 %v3268
        %3272 = vmatprep.subr.mxu0 0.0
        %3273 = vmatpush1.msra.mxu0 0.0
        %3274 = vmatprep.subr.mxu0 0.0
        %3275 = vmatpush1.msra.mxu0 0.0
        %3276 = vmatprep.subr.mxu0 0.0
        %3277 = vmatpush1.msra.mxu0 0.0
        %3278 = vmatprep.subr.mxu0 0.0
        %3279 = vmatpush1.msra.mxu0 0.0
        %3280 = vmatprep.subr.mxu0 0.0
        %3281 = vmatpush1.msra.mxu0 0.0
        %3282 = vmatprep.subr.mxu0 0.0
        %3283 = vmatpush1.msra.mxu0 0.0
        %3284 = vmatprep.subr.mxu0 0.0
        %3285 = vmatpush1.msra.mxu0 0.0
        %3286 = vmatprep.subr.mxu0 0.0
        %3287 = vmatpush1.msra.mxu0 0.0
        %3288 = vmatprep.subr.mxu0 0.0
        %3289 = vmatpush1.msra.mxu0 0.0
        %3290 = vmatprep.subr.mxu0 0.0
        %3291 = vmatpush1.msra.mxu0 0.0
        %3292 = vmatprep.subr.mxu0 0.0
        %3293 = vmatpush1.msra.mxu0 0.0
        %3294 = vmatprep.subr.mxu0 0.0
        %3295 = vmatpush1.msra.mxu0 0.0
        %3296 = vmatprep.subr.mxu0 0.0
        %3297 = vmatpush1.msra.mxu0 0.0
        %3298 = vmatprep.subr.mxu0 0.0
        %3299 = vmatpush1.msra.mxu0 0.0
        %3300 = vmatprep.subr.mxu0 0.0
        %3301 = vmatpush1.msra.mxu0 0.0
        %3302 = vmatprep.subr.mxu0 0.0
        %3303 = vmatpush1.msra.mxu0 0.0
        %3304 = vmatprep.subr.mxu0 0.0
        %3305 = vmatpush1.msra.mxu0 0.0
        %3306 = vmatprep.subr.mxu0 0.0
        %3307 = vmatpush1.msra.mxu0 0.0
        %3308 = vmatprep.subr.mxu0 0.0
        %3309 = vmatpush1.msra.mxu0 0.0
        %3310 = vmatprep.subr.mxu0 0.0
        %3311 = vmatpush1.msra.mxu0 0.0
        %3312 = vmatprep.subr.mxu0 0.0
        %3313 = vmatpush1.msra.mxu0 0.0
        %3314 = vmatprep.subr.mxu0 0.0
        %3315 = vmatpush1.msra.mxu0 0.0
        %3316 = vmatprep.subr.mxu0 0.0
        %3317 = vmatpush1.msra.mxu0 0.0
        %3318 = vmatprep.subr.mxu0 0.0
        %3319 = vmatpush1.msra.mxu0 0.0
        %3320 = vmatprep.subr.mxu0 0.0
        %3321 = vmatpush1.msra.mxu0 0.0
        %3322 = vmatprep.subr.mxu0 0.0
        %3323 = vmatpush1.msra.mxu0 0.0
        %3324 = vmatprep.subr.mxu0 0.0
        %3325 = vmatpush1.msra.mxu0 0.0
        %3326 = vmatprep.subr.mxu0 0.0
        %3327 = vmatpush1.msra.mxu0 0.0
        %3328 = vmatprep.subr.mxu0 0.0
        %3329 = vmatpush1.msra.mxu0 0.0
        %3330 = vmatprep.subr.mxu0 0.0
        %3331 = vmatpush1.msra.mxu0 0.0
        %3332 = vmatprep.subr.mxu0 0.0
        %3333 = vmatpush1.msra.mxu0 0.0
        %3334 = vmatprep.mubr.f32.mxu0 0.0
        %3335 = vmatmul.mubr.f32.gmra.mrb[0].mxu0 %v3266
        %v3336 = vpop.f32.mrb[0].mxu0
        %v3337 = vadd.f32 %v3262, %v3336
        %v3338 = vpop.f32.mrb[0].mxu0
        %3339 = vdwg.mxu0
        %v3340 = vld [vmem:[%s568] sm:$0xff]
        %v3341 = vld [vmem:[%s568 + $0x8] sm:$0xff]
        %v3342 = vld [vmem:[%s568 + $0x10] sm:$0xff]
        %v3343 = vld [vmem:[%s568 + $0x18] sm:$0xff]
        %3345 = vset.pattern.permute.xlu0 0
        %3346 = vperm.xlu0 %3345, %v3340
        %v3347 = vpop.permute.xlu0 %3346
        %3350 = vset.pattern.permute.xlu0 0
        %3351 = vperm.xlu0 %3350, %v3341
        %v3352 = vpop.permute.xlu0 %3351
        %3355 = vset.pattern.permute.xlu0 0
        %3356 = vperm.xlu0 %3355, %v3342
        %v3357 = vpop.permute.xlu0 %3356
        %3360 = vset.pattern.permute.xlu0 0
        %3361 = vperm.xlu0 %3360, %v3343
        %v3362 = vpop.permute.xlu0 %3361
        %3364 = vrot.lane.b32.xlu0 %v3043, 126
        %v3365 = vpop.permute.xlu0 %3364
        %3366 = vrot.lane.b32.xlu0 %v3110, 126
        %v3367 = vpop.permute.xlu0 %3366
        %3368 = vrot.lane.b32.xlu0 %v3047, 126
        %v3369 = vpop.permute.xlu0 %3368
        %3370 = vrot.lane.b32.xlu0 %v3114, 126
        %v3371 = vpop.permute.xlu0 %3370
        %3372 = vrot.lane.b32.xlu0 %v3051, 126
        %v3373 = vpop.permute.xlu0 %3372
        %3374 = vrot.lane.b32.xlu0 %v3118, 126
        %v3375 = vpop.permute.xlu0 %3374
        %3376 = vrot.lane.b32.xlu0 %v3055, 126
        %v3377 = vpop.permute.xlu0 %3376
        %3378 = vrot.lane.b32.xlu0 %v3122, 126
        %v3379 = vpop.permute.xlu0 %3378
        %v3380 = vsel %vm609, %v3365, %v3367
        %v3381 = vsel %vm609, %v3369, %v3371
        %v3382 = vsel %vm609, %v3373, %v3375
        %v3383 = vsel %vm609, %v3377, %v3379
        %v3388 = vsel %vm3039, %v3380, %v3347
        %v3389 = vsel %vm3039, %v3381, %v3352
        %v3390 = vsel %vm3039, %v3382, %v3357
        %v3391 = vsel %vm3039, %v3383, %v3362
        %v3392 = vsel %vm3039, %v3347, %v3380
        %v3393 = vsel %vm3039, %v3352, %v3381
        %v3394 = vsel %vm3039, %v3357, %v3382
        %v3395 = vsel %vm3039, %v3362, %v3383
        %v3396 = vadd.f32 %v3179, %v3388
        %v3397 = vadd.f32 %v3180, %v3389
        %v3398 = vadd.f32 %v3181, %v3390
        %v3399 = vadd.f32 %v3182, %v3391
        %v3400 = vmul.f32 %v3396, %v3392
        %v3401 = vmul.f32 %v3397, %v3393
        %v3402 = vmul.f32 %v3398, %v3394
        %v3403 = vmul.f32 %v3399, %v3395
        %v3404 = vld [vmem:[%s634] sm:$0xff]
        %3405 = vrot.lane.b32.xlu0 %v3004, 126
        %v3406 = vpop.permute.xlu0 %3405
        %3407 = vrot.lane.b32.xlu0 %v3184, 126
        %v3408 = vpop.permute.xlu0 %3407
        %v3409 = vsel %vm609, %v3406, %v3408
        %v3411 = vsel %vm416, %v3404, 0
        %v3413 = vsel %vm420, %v3409, 0
        %3415 = vmatprep.subr.mxu0 0.0
        %3416 = vmatpush1.msra.mxu0 %v3413
        %3417 = vmatprep.subr.mxu0 0.0
        %3418 = vmatpush1.msra.mxu0 0.0
        %3419 = vmatprep.subr.mxu0 0.0
        %3420 = vmatpush1.msra.mxu0 0.0
        %3421 = vmatprep.subr.mxu0 0.0
        %3422 = vmatpush1.msra.mxu0 0.0
        %3423 = vmatprep.subr.mxu0 0.0
        %3424 = vmatpush1.msra.mxu0 0.0
        %3425 = vmatprep.subr.mxu0 0.0
        %3426 = vmatpush1.msra.mxu0 0.0
        %3427 = vmatprep.subr.mxu0 0.0
        %3428 = vmatpush1.msra.mxu0 0.0
        %3429 = vmatprep.subr.mxu0 0.0
        %3430 = vmatpush1.msra.mxu0 0.0
        %3431 = vmatprep.subr.mxu0 0.0
        %3432 = vmatpush1.msra.mxu0 0.0
        %3433 = vmatprep.subr.mxu0 0.0
        %3434 = vmatpush1.msra.mxu0 0.0
        %3435 = vmatprep.subr.mxu0 0.0
        %3436 = vmatpush1.msra.mxu0 0.0
        %3437 = vmatprep.subr.mxu0 0.0
        %3438 = vmatpush1.msra.mxu0 0.0
        %3439 = vmatprep.subr.mxu0 0.0
        %3440 = vmatpush1.msra.mxu0 0.0
        %3441 = vmatprep.subr.mxu0 0.0
        %3442 = vmatpush1.msra.mxu0 0.0
        %3443 = vmatprep.subr.mxu0 0.0
        %3444 = vmatpush1.msra.mxu0 0.0
        %3445 = vmatprep.subr.mxu0 0.0
        %3446 = vmatpush1.msra.mxu0 0.0
        %3447 = vmatprep.subr.mxu0 0.0
        %3448 = vmatpush1.msra.mxu0 0.0
        %3449 = vmatprep.subr.mxu0 0.0
        %3450 = vmatpush1.msra.mxu0 0.0
        %3451 = vmatprep.subr.mxu0 0.0
        %3452 = vmatpush1.msra.mxu0 0.0
        %3453 = vmatprep.subr.mxu0 0.0
        %3454 = vmatpush1.msra.mxu0 0.0
        %3455 = vmatprep.subr.mxu0 0.0
        %3456 = vmatpush1.msra.mxu0 0.0
        %3457 = vmatprep.subr.mxu0 0.0
        %3458 = vmatpush1.msra.mxu0 0.0
        %3459 = vmatprep.subr.mxu0 0.0
        %3460 = vmatpush1.msra.mxu0 0.0
        %3461 = vmatprep.subr.mxu0 0.0
        %3462 = vmatpush1.msra.mxu0 0.0
        %3463 = vmatprep.subr.mxu0 0.0
        %3464 = vmatpush1.msra.mxu0 0.0
        %3465 = vmatprep.subr.mxu0 0.0
        %3466 = vmatpush1.msra.mxu0 0.0
        %3467 = vmatprep.subr.mxu0 0.0
        %3468 = vmatpush1.msra.mxu0 0.0
        %3469 = vmatprep.subr.mxu0 0.0
        %3470 = vmatpush1.msra.mxu0 0.0
        %3471 = vmatprep.subr.mxu0 0.0
        %3472 = vmatpush1.msra.mxu0 0.0
        %3473 = vmatprep.subr.mxu0 0.0
        %3474 = vmatpush1.msra.mxu0 0.0
        %3475 = vmatprep.subr.mxu0 0.0
        %3476 = vmatpush1.msra.mxu0 0.0
        %3477 = vmatprep.subr.mxu0 0.0
        %3478 = vmatpush1.msra.mxu0 0.0
        %3479 = vmatprep.mubr.f32.mxu0 0.0
        %3480 = vmatmul.mubr.f32.gmra.mrb[0].mxu0 %v3411
        %v3481 = vpop.f32.mrb[0].mxu0
        %v3482 = vadd.f32 0.0, %v3481
        %v3483 = vpop.f32.mrb[0].mxu0
        %3484 = vdwg.mxu0
        %v3485 = vadd.f32 %v3337, %v3482
        %v3486 = vld [vmem:[%s717] sm:$0xff]
        %v3487 = vld [vmem:[%s717 + $0x8] sm:$0xff]
        %v3488 = vld [vmem:[%s717 + $0x10] sm:$0xff]
        %v3489 = vld [vmem:[%s717 + $0x18] sm:$0xff]
        %3491 = vset.pattern.permute.xlu0 0
        %3492 = vperm.xlu0 %3491, %v3486
        %v3493 = vpop.permute.xlu0 %3492
        %3496 = vset.pattern.permute.xlu0 0
        %3497 = vperm.xlu0 %3496, %v3487
        %v3498 = vpop.permute.xlu0 %3497
        %3501 = vset.pattern.permute.xlu0 0
        %3502 = vperm.xlu0 %3501, %v3488
        %v3503 = vpop.permute.xlu0 %3502
        %3506 = vset.pattern.permute.xlu0 0
        %3507 = vperm.xlu0 %3506, %v3489
        %v3508 = vpop.permute.xlu0 %3507
        %3510 = vrot.lane.b32.xlu0 %v3043, 110
        %v3511 = vpop.permute.xlu0 %3510
        %3512 = vrot.lane.b32.xlu0 %v3110, 110
        %v3513 = vpop.permute.xlu0 %3512
        %3514 = vrot.lane.b32.xlu0 %v3047, 110
        %v3515 = vpop.permute.xlu0 %3514
        %3516 = vrot.lane.b32.xlu0 %v3114, 110
        %v3517 = vpop.permute.xlu0 %3516
        %3518 = vrot.lane.b32.xlu0 %v3051, 110
        %v3519 = vpop.permute.xlu0 %3518
        %3520 = vrot.lane.b32.xlu0 %v3118, 110
        %v3521 = vpop.permute.xlu0 %3520
        %3522 = vrot.lane.b32.xlu0 %v3055, 110
        %v3523 = vpop.permute.xlu0 %3522
        %3524 = vrot.lane.b32.xlu0 %v3122, 110
        %v3525 = vpop.permute.xlu0 %3524
        %v3526 = vsel %vm758, %v3511, %v3513
        %v3527 = vsel %vm758, %v3515, %v3517
        %v3528 = vsel %vm758, %v3519, %v3521
        %v3529 = vsel %vm758, %v3523, %v3525
        %v3534 = vsel %vm3106, %v3526, %v3493
        %v3535 = vsel %vm3106, %v3527, %v3498
        %v3536 = vsel %vm3106, %v3528, %v3503
        %v3537 = vsel %vm3106, %v3529, %v3508
        %v3538 = vsel %vm3106, %v3493, %v3526
        %v3539 = vsel %vm3106, %v3498, %v3527
        %v3540 = vsel %vm3106, %v3503, %v3528
        %v3541 = vsel %vm3106, %v3508, %v3529
        %v3542 = vadd.f32 %v3400, %v3534
        %v3543 = vadd.f32 %v3401, %v3535
        %v3544 = vadd.f32 %v3402, %v3536
        %v3545 = vadd.f32 %v3403, %v3537
        %v3546 = vmul.f32 %v3542, %v3538
        %v3547 = vmul.f32 %v3543, %v3539
        %v3548 = vmul.f32 %v3544, %v3540
        %v3549 = vmul.f32 %v3545, %v3541
        %v3550 = vld [vmem:[%s783] sm:$0xff]
        %3551 = vrot.lane.b32.xlu0 %v3004, 110
        %v3552 = vpop.permute.xlu0 %3551
        %3553 = vrot.lane.b32.xlu0 %v3184, 110
        %v3554 = vpop.permute.xlu0 %3553
        %v3555 = vsel %vm758, %v3552, %v3554
        %v3557 = vsel %vm416, %v3550, 0
        %v3559 = vsel %vm420, %v3555, 0
        %3561 = vmatprep.subr.mxu0 0.0
        %3562 = vmatpush1.msra.mxu0 %v3559
        %3563 = vmatprep.subr.mxu0 0.0
        %3564 = vmatpush1.msra.mxu0 0.0
        %3565 = vmatprep.subr.mxu0 0.0
        %3566 = vmatpush1.msra.mxu0 0.0
        %3567 = vmatprep.subr.mxu0 0.0
        %3568 = vmatpush1.msra.mxu0 0.0
        %3569 = vmatprep.subr.mxu0 0.0
        %3570 = vmatpush1.msra.mxu0 0.0
        %3571 = vmatprep.subr.mxu0 0.0
        %3572 = vmatpush1.msra.mxu0 0.0
        %3573 = vmatprep.subr.mxu0 0.0
        %3574 = vmatpush1.msra.mxu0 0.0
        %3575 = vmatprep.subr.mxu0 0.0
        %3576 = vmatpush1.msra.mxu0 0.0
        %3577 = vmatprep.subr.mxu0 0.0
        %3578 = vmatpush1.msra.mxu0 0.0
        %3579 = vmatprep.subr.mxu0 0.0
        %3580 = vmatpush1.msra.mxu0 0.0
        %3581 = vmatprep.subr.mxu0 0.0
        %3582 = vmatpush1.msra.mxu0 0.0
        %3583 = vmatprep.subr.mxu0 0.0
        %3584 = vmatpush1.msra.mxu0 0.0
        %3585 = vmatprep.subr.mxu0 0.0
        %3586 = vmatpush1.msra.mxu0 0.0
        %3587 = vmatprep.subr.mxu0 0.0
        %3588 = vmatpush1.msra.mxu0 0.0
        %3589 = vmatprep.subr.mxu0 0.0
        %3590 = vmatpush1.msra.mxu0 0.0
        %3591 = vmatprep.subr.mxu0 0.0
        %3592 = vmatpush1.msra.mxu0 0.0
        %3593 = vmatprep.subr.mxu0 0.0
        %3594 = vmatpush1.msra.mxu0 0.0
        %3595 = vmatprep.subr.mxu0 0.0
        %3596 = vmatpush1.msra.mxu0 0.0
        %3597 = vmatprep.subr.mxu0 0.0
        %3598 = vmatpush1.msra.mxu0 0.0
        %3599 = vmatprep.subr.mxu0 0.0
        %3600 = vmatpush1.msra.mxu0 0.0
        %3601 = vmatprep.subr.mxu0 0.0
        %3602 = vmatpush1.msra.mxu0 0.0
        %3603 = vmatprep.subr.mxu0 0.0
        %3604 = vmatpush1.msra.mxu0 0.0
        %3605 = vmatprep.subr.mxu0 0.0
        %3606 = vmatpush1.msra.mxu0 0.0
        %3607 = vmatprep.subr.mxu0 0.0
        %3608 = vmatpush1.msra.mxu0 0.0
        %3609 = vmatprep.subr.mxu0 0.0
        %3610 = vmatpush1.msra.mxu0 0.0
        %3611 = vmatprep.subr.mxu0 0.0
        %3612 = vmatpush1.msra.mxu0 0.0
        %3613 = vmatprep.subr.mxu0 0.0
        %3614 = vmatpush1.msra.mxu0 0.0
        %3615 = vmatprep.subr.mxu0 0.0
        %3616 = vmatpush1.msra.mxu0 0.0
        %3617 = vmatprep.subr.mxu0 0.0
        %3618 = vmatpush1.msra.mxu0 0.0
        %3619 = vmatprep.subr.mxu0 0.0
        %3620 = vmatpush1.msra.mxu0 0.0
        %3621 = vmatprep.subr.mxu0 0.0
        %3622 = vmatpush1.msra.mxu0 0.0
        %3623 = vmatprep.subr.mxu0 0.0
        %3624 = vmatpush1.msra.mxu0 0.0
        %3625 = vmatprep.mubr.f32.mxu0 0.0
        %3626 = vmatmul.mubr.f32.gmra.mrb[0].mxu0 %v3557
        %v3627 = vpop.f32.mrb[0].mxu0
        %v3628 = vadd.f32 0.0, %v3627
        %v3629 = vpop.f32.mrb[0].mxu0
        %3630 = vdwg.mxu0
        %v3631 = vadd.f32 %v3485, %v3628
        %v3632 = vld [vmem:[%s866] sm:$0xff]
        %v3633 = vld [vmem:[%s866 + $0x8] sm:$0xff]
        %v3634 = vld [vmem:[%s866 + $0x10] sm:$0xff]
        %v3635 = vld [vmem:[%s866 + $0x18] sm:$0xff]
        %3637 = vset.pattern.permute.xlu0 0
        %3638 = vperm.xlu0 %3637, %v3632
        %v3639 = vpop.permute.xlu0 %3638
        %3642 = vset.pattern.permute.xlu0 0
        %3643 = vperm.xlu0 %3642, %v3633
        %v3644 = vpop.permute.xlu0 %3643
        %3647 = vset.pattern.permute.xlu0 0
        %3648 = vperm.xlu0 %3647, %v3634
        %v3649 = vpop.permute.xlu0 %3648
        %3652 = vset.pattern.permute.xlu0 0
        %3653 = vperm.xlu0 %3652, %v3635
        %v3654 = vpop.permute.xlu0 %3653
        %3656 = vrot.lane.b32.xlu0 %v3043, 109
        %v3657 = vpop.permute.xlu0 %3656
        %3658 = vrot.lane.b32.xlu0 %v3110, 109
        %v3659 = vpop.permute.xlu0 %3658
        %3660 = vrot.lane.b32.xlu0 %v3047, 109
        %v3661 = vpop.permute.xlu0 %3660
        %3662 = vrot.lane.b32.xlu0 %v3114, 109
        %v3663 = vpop.permute.xlu0 %3662
        %3664 = vrot.lane.b32.xlu0 %v3051, 109
        %v3665 = vpop.permute.xlu0 %3664
        %3666 = vrot.lane.b32.xlu0 %v3118, 109
        %v3667 = vpop.permute.xlu0 %3666
        %3668 = vrot.lane.b32.xlu0 %v3055, 109
        %v3669 = vpop.permute.xlu0 %3668
        %3670 = vrot.lane.b32.xlu0 %v3122, 109
        %v3671 = vpop.permute.xlu0 %3670
        %v3672 = vsel %vm907, %v3657, %v3659
        %v3673 = vsel %vm907, %v3661, %v3663
        %v3674 = vsel %vm907, %v3665, %v3667
        %v3675 = vsel %vm907, %v3669, %v3671
        %v3680 = vsel %vm3039, %v3672, %v3639
        %v3681 = vsel %vm3039, %v3673, %v3644
        %v3682 = vsel %vm3039, %v3674, %v3649
        %v3683 = vsel %vm3039, %v3675, %v3654
        %v3684 = vsel %vm3039, %v3639, %v3672
        %v3685 = vsel %vm3039, %v3644, %v3673
        %v3686 = vsel %vm3039, %v3649, %v3674
        %v3687 = vsel %vm3039, %v3654, %v3675
        %v3688 = vadd.f32 %v3546, %v3680
        %v3689 = vadd.f32 %v3547, %v3681
        %v3690 = vadd.f32 %v3548, %v3682
        %v3691 = vadd.f32 %v3549, %v3683
        %v3692 = vmul.f32 %v3688, %v3684
        %v3693 = vmul.f32 %v3689, %v3685
        %v3694 = vmul.f32 %v3690, %v3686
        %v3695 = vmul.f32 %v3691, %v3687
        %v3696 = vld [vmem:[%s932] sm:$0xff]
        %3697 = vrot.lane.b32.xlu0 %v3004, 109
        %v3698 = vpop.permute.xlu0 %3697
        %3699 = vrot.lane.b32.xlu0 %v3184, 109
        %v3700 = vpop.permute.xlu0 %3699
        %v3701 = vsel %vm907, %v3698, %v3700
        %v3703 = vsel %vm416, %v3696, 0
        %v3705 = vsel %vm420, %v3701, 0
        %3707 = vmatprep.subr.mxu0 0.0
        %3708 = vmatpush1.msra.mxu0 %v3705
        %3709 = vmatprep.subr.mxu0 0.0
        %3710 = vmatpush1.msra.mxu0 0.0
        %3711 = vmatprep.subr.mxu0 0.0
        %3712 = vmatpush1.msra.mxu0 0.0
        %3713 = vmatprep.subr.mxu0 0.0
        %3714 = vmatpush1.msra.mxu0 0.0
        %3715 = vmatprep.subr.mxu0 0.0
        %3716 = vmatpush1.msra.mxu0 0.0
        %3717 = vmatprep.subr.mxu0 0.0
        %3718 = vmatpush1.msra.mxu0 0.0
        %3719 = vmatprep.subr.mxu0 0.0
        %3720 = vmatpush1.msra.mxu0 0.0
        %3721 = vmatprep.subr.mxu0 0.0
        %3722 = vmatpush1.msra.mxu0 0.0
        %3723 = vmatprep.subr.mxu0 0.0
        %3724 = vmatpush1.msra.mxu0 0.0
        %3725 = vmatprep.subr.mxu0 0.0
        %3726 = vmatpush1.msra.mxu0 0.0
        %3727 = vmatprep.subr.mxu0 0.0
        %3728 = vmatpush1.msra.mxu0 0.0
        %3729 = vmatprep.subr.mxu0 0.0
        %3730 = vmatpush1.msra.mxu0 0.0
        %3731 = vmatprep.subr.mxu0 0.0
        %3732 = vmatpush1.msra.mxu0 0.0
        %3733 = vmatprep.subr.mxu0 0.0
        %3734 = vmatpush1.msra.mxu0 0.0
        %3735 = vmatprep.subr.mxu0 0.0
        %3736 = vmatpush1.msra.mxu0 0.0
        %3737 = vmatprep.subr.mxu0 0.0
        %3738 = vmatpush1.msra.mxu0 0.0
        %3739 = vmatprep.subr.mxu0 0.0
        %3740 = vmatpush1.msra.mxu0 0.0
        %3741 = vmatprep.subr.mxu0 0.0
        %3742 = vmatpush1.msra.mxu0 0.0
        %3743 = vmatprep.subr.mxu0 0.0
        %3744 = vmatpush1.msra.mxu0 0.0
        %3745 = vmatprep.subr.mxu0 0.0
        %3746 = vmatpush1.msra.mxu0 0.0
        %3747 = vmatprep.subr.mxu0 0.0
        %3748 = vmatpush1.msra.mxu0 0.0
        %3749 = vmatprep.subr.mxu0 0.0
        %3750 = vmatpush1.msra.mxu0 0.0
        %3751 = vmatprep.subr.mxu0 0.0
        %3752 = vmatpush1.msra.mxu0 0.0
        %3753 = vmatprep.subr.mxu0 0.0
        %3754 = vmatpush1.msra.mxu0 0.0
        %3755 = vmatprep.subr.mxu0 0.0
        %3756 = vmatpush1.msra.mxu0 0.0
        %3757 = vmatprep.subr.mxu0 0.0
        %3758 = vmatpush1.msra.mxu0 0.0
        %3759 = vmatprep.subr.mxu0 0.0
        %3760 = vmatpush1.msra.mxu0 0.0
        %3761 = vmatprep.subr.mxu0 0.0
        %3762 = vmatpush1.msra.mxu0 0.0
        %3763 = vmatprep.subr.mxu0 0.0
        %3764 = vmatpush1.msra.mxu0 0.0
        %3765 = vmatprep.subr.mxu0 0.0
        %3766 = vmatpush1.msra.mxu0 0.0
        %3767 = vmatprep.subr.mxu0 0.0
        %3768 = vmatpush1.msra.mxu0 0.0
        %3769 = vmatprep.subr.mxu0 0.0
        %3770 = vmatpush1.msra.mxu0 0.0
        %3771 = vmatprep.mubr.f32.mxu0 0.0
        %3772 = vmatmul.mubr.f32.gmra.mrb[0].mxu0 %v3703
        %v3773 = vpop.f32.mrb[0].mxu0
        %v3774 = vadd.f32 0.0, %v3773
        %v3775 = vpop.f32.mrb[0].mxu0
        %3776 = vdwg.mxu0
        %v3777 = vadd.f32 %v3631, %v3774
        %v3778 = vld [vmem:[%s1015] sm:$0xff]
        %v3779 = vld [vmem:[%s1015 + $0x8] sm:$0xff]
        %v3780 = vld [vmem:[%s1015 + $0x10] sm:$0xff]
        %v3781 = vld [vmem:[%s1015 + $0x18] sm:$0xff]
        %3783 = vset.pattern.permute.xlu0 0
        %3784 = vperm.xlu0 %3783, %v3778
        %v3785 = vpop.permute.xlu0 %3784
        %3788 = vset.pattern.permute.xlu0 0
        %3789 = vperm.xlu0 %3788, %v3779
        %v3790 = vpop.permute.xlu0 %3789
        %3793 = vset.pattern.permute.xlu0 0
        %3794 = vperm.xlu0 %3793, %v3780
        %v3795 = vpop.permute.xlu0 %3794
        %3798 = vset.pattern.permute.xlu0 0
        %3799 = vperm.xlu0 %3798, %v3781
        %v3800 = vpop.permute.xlu0 %3799
        %3802 = vrot.lane.b32.xlu0 %v3043, 108
        %v3803 = vpop.permute.xlu0 %3802
        %3804 = vrot.lane.b32.xlu0 %v3110, 108
        %v3805 = vpop.permute.xlu0 %3804
        %3806 = vrot.lane.b32.xlu0 %v3047, 108
        %v3807 = vpop.permute.xlu0 %3806
        %3808 = vrot.lane.b32.xlu0 %v3114, 108
        %v3809 = vpop.permute.xlu0 %3808
        %3810 = vrot.lane.b32.xlu0 %v3051, 108
        %v3811 = vpop.permute.xlu0 %3810
        %3812 = vrot.lane.b32.xlu0 %v3118, 108
        %v3813 = vpop.permute.xlu0 %3812
        %3814 = vrot.lane.b32.xlu0 %v3055, 108
        %v3815 = vpop.permute.xlu0 %3814
        %3816 = vrot.lane.b32.xlu0 %v3122, 108
        %v3817 = vpop.permute.xlu0 %3816
        %v3818 = vsel %vm1056, %v3803, %v3805
        %v3819 = vsel %vm1056, %v3807, %v3809
        %v3820 = vsel %vm1056, %v3811, %v3813
        %v3821 = vsel %vm1056, %v3815, %v3817
        %v3826 = vsel %vm3106, %v3818, %v3785
        %v3827 = vsel %vm3106, %v3819, %v3790
        %v3828 = vsel %vm3106, %v3820, %v3795
        %v3829 = vsel %vm3106, %v3821, %v3800
        %v3830 = vsel %vm3106, %v3785, %v3818
        %v3831 = vsel %vm3106, %v3790, %v3819
        %v3832 = vsel %vm3106, %v3795, %v3820
        %v3833 = vsel %vm3106, %v3800, %v3821
        %v3834 = vadd.f32 %v3692, %v3826
        %v3835 = vadd.f32 %v3693, %v3827
        %v3836 = vadd.f32 %v3694, %v3828
        %v3837 = vadd.f32 %v3695, %v3829
        %v3838 = vmul.f32 %v3834, %v3830
        %v3839 = vmul.f32 %v3835, %v3831
        %v3840 = vmul.f32 %v3836, %v3832
        %v3841 = vmul.f32 %v3837, %v3833
        %v3842 = vld [vmem:[%s1081] sm:$0xff]
        %3843 = vrot.lane.b32.xlu0 %v3004, 108
        %v3844 = vpop.permute.xlu0 %3843
        %3845 = vrot.lane.b32.xlu0 %v3184, 108
        %v3846 = vpop.permute.xlu0 %3845
        %v3847 = vsel %vm1056, %v3844, %v3846
        %v3849 = vsel %vm416, %v3842, 0
        %v3851 = vsel %vm420, %v3847, 0
        %3853 = vmatprep.subr.mxu0 0.0
        %3854 = vmatpush1.msra.mxu0 %v3851
        %3855 = vmatprep.subr.mxu0 0.0
        %3856 = vmatpush1.msra.mxu0 0.0
        %3857 = vmatprep.subr.mxu0 0.0
        %3858 = vmatpush1.msra.mxu0 0.0
        %3859 = vmatprep.subr.mxu0 0.0
        %3860 = vmatpush1.msra.mxu0 0.0
        %3861 = vmatprep.subr.mxu0 0.0
        %3862 = vmatpush1.msra.mxu0 0.0
        %3863 = vmatprep.subr.mxu0 0.0
        %3864 = vmatpush1.msra.mxu0 0.0
        %3865 = vmatprep.subr.mxu0 0.0
        %3866 = vmatpush1.msra.mxu0 0.0
        %3867 = vmatprep.subr.mxu0 0.0
        %3868 = vmatpush1.msra.mxu0 0.0
        %3869 = vmatprep.subr.mxu0 0.0
        %3870 = vmatpush1.msra.mxu0 0.0
        %3871 = vmatprep.subr.mxu0 0.0
        %3872 = vmatpush1.msra.mxu0 0.0
        %3873 = vmatprep.subr.mxu0 0.0
        %3874 = vmatpush1.msra.mxu0 0.0
        %3875 = vmatprep.subr.mxu0 0.0
        %3876 = vmatpush1.msra.mxu0 0.0
        %3877 = vmatprep.subr.mxu0 0.0
        %3878 = vmatpush1.msra.mxu0 0.0
        %3879 = vmatprep.subr.mxu0 0.0
        %3880 = vmatpush1.msra.mxu0 0.0
        %3881 = vmatprep.subr.mxu0 0.0
        %3882 = vmatpush1.msra.mxu0 0.0
        %3883 = vmatprep.subr.mxu0 0.0
        %3884 = vmatpush1.msra.mxu0 0.0
        %3885 = vmatprep.subr.mxu0 0.0
        %3886 = vmatpush1.msra.mxu0 0.0
        %3887 = vmatprep.subr.mxu0 0.0
        %3888 = vmatpush1.msra.mxu0 0.0
        %3889 = vmatprep.subr.mxu0 0.0
        %3890 = vmatpush1.msra.mxu0 0.0
        %3891 = vmatprep.subr.mxu0 0.0
        %3892 = vmatpush1.msra.mxu0 0.0
        %3893 = vmatprep.subr.mxu0 0.0
        %3894 = vmatpush1.msra.mxu0 0.0
        %3895 = vmatprep.subr.mxu0 0.0
        %3896 = vmatpush1.msra.mxu0 0.0
        %3897 = vmatprep.subr.mxu0 0.0
        %3898 = vmatpush1.msra.mxu0 0.0
        %3899 = vmatprep.subr.mxu0 0.0
        %3900 = vmatpush1.msra.mxu0 0.0
        %3901 = vmatprep.subr.mxu0 0.0
        %3902 = vmatpush1.msra.mxu0 0.0
        %3903 = vmatprep.subr.mxu0 0.0
        %3904 = vmatpush1.msra.mxu0 0.0
        %3905 = vmatprep.subr.mxu0 0.0
        %3906 = vmatpush1.msra.mxu0 0.0
        %3907 = vmatprep.subr.mxu0 0.0
        %3908 = vmatpush1.msra.mxu0 0.0
        %3909 = vmatprep.subr.mxu0 0.0
        %3910 = vmatpush1.msra.mxu0 0.0
        %3911 = vmatprep.subr.mxu0 0.0
        %3912 = vmatpush1.msra.mxu0 0.0
        %3913 = vmatprep.subr.mxu0 0.0
        %3914 = vmatpush1.msra.mxu0 0.0
        %3915 = vmatprep.subr.mxu0 0.0
        %3916 = vmatpush1.msra.mxu0 0.0
        %3917 = vmatprep.mubr.f32.mxu0 0.0
        %3918 = vmatmul.mubr.f32.gmra.mrb[0].mxu0 %v3849
        %v3919 = vpop.f32.mrb[0].mxu0
        %v3920 = vadd.f32 0.0, %v3919
        %v3921 = vpop.f32.mrb[0].mxu0
        %3922 = vdwg.mxu0
        %v3923 = vadd.f32 %v3777, %v3920
        %v3924 = vld [vmem:[%s1164] sm:$0xff]
        %v3925 = vld [vmem:[%s1164 + $0x8] sm:$0xff]
        %v3926 = vld [vmem:[%s1164 + $0x10] sm:$0xff]
        %v3927 = vld [vmem:[%s1164 + $0x18] sm:$0xff]
        %3929 = vset.pattern.permute.xlu0 0
        %3930 = vperm.xlu0 %3929, %v3924
        %v3931 = vpop.permute.xlu0 %3930
        %3934 = vset.pattern.permute.xlu0 0
        %3935 = vperm.xlu0 %3934, %v3925
        %v3936 = vpop.permute.xlu0 %3935
        %3939 = vset.pattern.permute.xlu0 0
        %3940 = vperm.xlu0 %3939, %v3926
        %v3941 = vpop.permute.xlu0 %3940
        %3944 = vset.pattern.permute.xlu0 0
        %3945 = vperm.xlu0 %3944, %v3927
        %v3946 = vpop.permute.xlu0 %3945
        %3948 = vrot.lane.b32.xlu0 %v3043, 92
        %v3949 = vpop.permute.xlu0 %3948
        %3950 = vrot.lane.b32.xlu0 %v3110, 92
        %v3951 = vpop.permute.xlu0 %3950
        %3952 = vrot.lane.b32.xlu0 %v3047, 92
        %v3953 = vpop.permute.xlu0 %3952
        %3954 = vrot.lane.b32.xlu0 %v3114, 92
        %v3955 = vpop.permute.xlu0 %3954
        %3956 = vrot.lane.b32.xlu0 %v3051, 92
        %v3957 = vpop.permute.xlu0 %3956
        %3958 = vrot.lane.b32.xlu0 %v3118, 92
        %v3959 = vpop.permute.xlu0 %3958
        %3960 = vrot.lane.b32.xlu0 %v3055, 92
        %v3961 = vpop.permute.xlu0 %3960
        %3962 = vrot.lane.b32.xlu0 %v3122, 92
        %v3963 = vpop.permute.xlu0 %3962
        %v3964 = vsel %vm1205, %v3949, %v3951
        %v3965 = vsel %vm1205, %v3953, %v3955
        %v3966 = vsel %vm1205, %v3957, %v3959
        %v3967 = vsel %vm1205, %v3961, %v3963
        %v3972 = vsel %vm3039, %v3964, %v3931
        %v3973 = vsel %vm3039, %v3965, %v3936
        %v3974 = vsel %vm3039, %v3966, %v3941
        %v3975 = vsel %vm3039, %v3967, %v3946
        %v3976 = vsel %vm3039, %v3931, %v3964
        %v3977 = vsel %vm3039, %v3936, %v3965
        %v3978 = vsel %vm3039, %v3941, %v3966
        %v3979 = vsel %vm3039, %v3946, %v3967
        %v3980 = vadd.f32 %v3838, %v3972
        %v3981 = vadd.f32 %v3839, %v3973
        %v3982 = vadd.f32 %v3840, %v3974
        %v3983 = vadd.f32 %v3841, %v3975
        %v3984 = vmul.f32 %v3980, %v3976
        %v3985 = vmul.f32 %v3981, %v3977
        %v3986 = vmul.f32 %v3982, %v3978
        %v3987 = vmul.f32 %v3983, %v3979
        %v3988 = vld [vmem:[%s1230] sm:$0xff]
        %3989 = vrot.lane.b32.xlu0 %v3004, 92
        %v3990 = vpop.permute.xlu0 %3989
        %3991 = vrot.lane.b32.xlu0 %v3184, 92
        %v3992 = vpop.permute.xlu0 %3991
        %v3993 = vsel %vm1205, %v3990, %v3992
        %v3995 = vsel %vm416, %v3988, 0
        %v3997 = vsel %vm420, %v3993, 0
        %3999 = vmatprep.subr.mxu0 0.0
        %4000 = vmatpush1.msra.mxu0 %v3997
        %4001 = vmatprep.subr.mxu0 0.0
        %4002 = vmatpush1.msra.mxu0 0.0
        %4003 = vmatprep.subr.mxu0 0.0
        %4004 = vmatpush1.msra.mxu0 0.0
        %4005 = vmatprep.subr.mxu0 0.0
        %4006 = vmatpush1.msra.mxu0 0.0
        %4007 = vmatprep.subr.mxu0 0.0
        %4008 = vmatpush1.msra.mxu0 0.0
        %4009 = vmatprep.subr.mxu0 0.0
        %4010 = vmatpush1.msra.mxu0 0.0
        %4011 = vmatprep.subr.mxu0 0.0
        %4012 = vmatpush1.msra.mxu0 0.0
        %4013 = vmatprep.subr.mxu0 0.0
        %4014 = vmatpush1.msra.mxu0 0.0
        %4015 = vmatprep.subr.mxu0 0.0
        %4016 = vmatpush1.msra.mxu0 0.0
        %4017 = vmatprep.subr.mxu0 0.0
        %4018 = vmatpush1.msra.mxu0 0.0
        %4019 = vmatprep.subr.mxu0 0.0
        %4020 = vmatpush1.msra.mxu0 0.0
        %4021 = vmatprep.subr.mxu0 0.0
        %4022 = vmatpush1.msra.mxu0 0.0
        %4023 = vmatprep.subr.mxu0 0.0
        %4024 = vmatpush1.msra.mxu0 0.0
        %4025 = vmatprep.subr.mxu0 0.0
        %4026 = vmatpush1.msra.mxu0 0.0
        %4027 = vmatprep.subr.mxu0 0.0
        %4028 = vmatpush1.msra.mxu0 0.0
        %4029 = vmatprep.subr.mxu0 0.0
        %4030 = vmatpush1.msra.mxu0 0.0
        %4031 = vmatprep.subr.mxu0 0.0
        %4032 = vmatpush1.msra.mxu0 0.0
        %4033 = vmatprep.subr.mxu0 0.0
        %4034 = vmatpush1.msra.mxu0 0.0
        %4035 = vmatprep.subr.mxu0 0.0
        %4036 = vmatpush1.msra.mxu0 0.0
        %4037 = vmatprep.subr.mxu0 0.0
        %4038 = vmatpush1.msra.mxu0 0.0
        %4039 = vmatprep.subr.mxu0 0.0
        %4040 = vmatpush1.msra.mxu0 0.0
        %4041 = vmatprep.subr.mxu0 0.0
        %4042 = vmatpush1.msra.mxu0 0.0
        %4043 = vmatprep.subr.mxu0 0.0
        %4044 = vmatpush1.msra.mxu0 0.0
        %4045 = vmatprep.subr.mxu0 0.0
        %4046 = vmatpush1.msra.mxu0 0.0
        %4047 = vmatprep.subr.mxu0 0.0
        %4048 = vmatpush1.msra.mxu0 0.0
        %4049 = vmatprep.subr.mxu0 0.0
        %4050 = vmatpush1.msra.mxu0 0.0
        %4051 = vmatprep.subr.mxu0 0.0
        %4052 = vmatpush1.msra.mxu0 0.0
        %4053 = vmatprep.subr.mxu0 0.0
        %4054 = vmatpush1.msra.mxu0 0.0
        %4055 = vmatprep.subr.mxu0 0.0
        %4056 = vmatpush1.msra.mxu0 0.0
        %4057 = vmatprep.subr.mxu0 0.0
        %4058 = vmatpush1.msra.mxu0 0.0
        %4059 = vmatprep.subr.mxu0 0.0
        %4060 = vmatpush1.msra.mxu0 0.0
        %4061 = vmatprep.subr.mxu0 0.0
        %4062 = vmatpush1.msra.mxu0 0.0
        %4063 = vmatprep.mubr.f32.mxu0 0.0
        %4064 = vmatmul.mubr.f32.gmra.mrb[0].mxu0 %v3995
        %v4065 = vpop.f32.mrb[0].mxu0
        %v4066 = vadd.f32 0.0, %v4065
        %v4067 = vpop.f32.mrb[0].mxu0
        %4068 = vdwg.mxu0
        %v4069 = vadd.f32 %v3923, %v4066
        %v4070 = vld [vmem:[%s1313] sm:$0xff]
        %v4071 = vld [vmem:[%s1313 + $0x8] sm:$0xff]
        %v4072 = vld [vmem:[%s1313 + $0x10] sm:$0xff]
        %v4073 = vld [vmem:[%s1313 + $0x18] sm:$0xff]
        %4075 = vset.pattern.permute.xlu0 0
        %4076 = vperm.xlu0 %4075, %v4070
        %v4077 = vpop.permute.xlu0 %4076
        %4080 = vset.pattern.permute.xlu0 0
        %4081 = vperm.xlu0 %4080, %v4071
        %v4082 = vpop.permute.xlu0 %4081
        %4085 = vset.pattern.permute.xlu0 0
        %4086 = vperm.xlu0 %4085, %v4072
        %v4087 = vpop.permute.xlu0 %4086
        %4090 = vset.pattern.permute.xlu0 0
        %4091 = vperm.xlu0 %4090, %v4073
        %v4092 = vpop.permute.xlu0 %4091
        %4094 = vrot.lane.b32.xlu0 %v3043, 91
        %v4095 = vpop.permute.xlu0 %4094
        %4096 = vrot.lane.b32.xlu0 %v3110, 91
        %v4097 = vpop.permute.xlu0 %4096
        %4098 = vrot.lane.b32.xlu0 %v3047, 91
        %v4099 = vpop.permute.xlu0 %4098
        %4100 = vrot.lane.b32.xlu0 %v3114, 91
        %v4101 = vpop.permute.xlu0 %4100
        %4102 = vrot.lane.b32.xlu0 %v3051, 91
        %v4103 = vpop.permute.xlu0 %4102
        %4104 = vrot.lane.b32.xlu0 %v3118, 91
        %v4105 = vpop.permute.xlu0 %4104
        %4106 = vrot.lane.b32.xlu0 %v3055, 91
        %v4107 = vpop.permute.xlu0 %4106
        %4108 = vrot.lane.b32.xlu0 %v3122, 91
        %v4109 = vpop.permute.xlu0 %4108
        %v4110 = vsel %vm1354, %v4095, %v4097
        %v4111 = vsel %vm1354, %v4099, %v4101
        %v4112 = vsel %vm1354, %v4103, %v4105
        %v4113 = vsel %vm1354, %v4107, %v4109
        %v4118 = vsel %vm3106, %v4110, %v4077
        %v4119 = vsel %vm3106, %v4111, %v4082
        %v4120 = vsel %vm3106, %v4112, %v4087
        %v4121 = vsel %vm3106, %v4113, %v4092
        %v4122 = vsel %vm3106, %v4077, %v4110
        %v4123 = vsel %vm3106, %v4082, %v4111
        %v4124 = vsel %vm3106, %v4087, %v4112
        %v4125 = vsel %vm3106, %v4092, %v4113
        %v4126 = vadd.f32 %v3984, %v4118
        %v4127 = vadd.f32 %v3985, %v4119
        %v4128 = vadd.f32 %v3986, %v4120
        %v4129 = vadd.f32 %v3987, %v4121
        %v4130 = vmul.f32 %v4126, %v4122
        %v4131 = vmul.f32 %v4127, %v4123
        %v4132 = vmul.f32 %v4128, %v4124
        %v4133 = vmul.f32 %v4129, %v4125
        %v4134 = vld [vmem:[%s1379] sm:$0xff]
        %4135 = vrot.lane.b32.xlu0 %v3004, 91
        %v4136 = vpop.permute.xlu0 %4135
        %4137 = vrot.lane.b32.xlu0 %v3184, 91
        %v4138 = vpop.permute.xlu0 %4137
        %v4139 = vsel %vm1354, %v4136, %v4138
        %v4141 = vsel %vm416, %v4134, 0
        %v4143 = vsel %vm420, %v4139, 0
        %4145 = vmatprep.subr.mxu0 0.0
        %4146 = vmatpush1.msra.mxu0 %v4143
        %4147 = vmatprep.subr.mxu0 0.0
        %4148 = vmatpush1.msra.mxu0 0.0
        %4149 = vmatprep.subr.mxu0 0.0
        %4150 = vmatpush1.msra.mxu0 0.0
        %4151 = vmatprep.subr.mxu0 0.0
        %4152 = vmatpush1.msra.mxu0 0.0
        %4153 = vmatprep.subr.mxu0 0.0
        %4154 = vmatpush1.msra.mxu0 0.0
        %4155 = vmatprep.subr.mxu0 0.0
        %4156 = vmatpush1.msra.mxu0 0.0
        %4157 = vmatprep.subr.mxu0 0.0
        %4158 = vmatpush1.msra.mxu0 0.0
        %4159 = vmatprep.subr.mxu0 0.0
        %4160 = vmatpush1.msra.mxu0 0.0
        %4161 = vmatprep.subr.mxu0 0.0
        %4162 = vmatpush1.msra.mxu0 0.0
        %4163 = vmatprep.subr.mxu0 0.0
        %4164 = vmatpush1.msra.mxu0 0.0
        %4165 = vmatprep.subr.mxu0 0.0
        %4166 = vmatpush1.msra.mxu0 0.0
        %4167 = vmatprep.subr.mxu0 0.0
        %4168 = vmatpush1.msra.mxu0 0.0
        %4169 = vmatprep.subr.mxu0 0.0
        %4170 = vmatpush1.msra.mxu0 0.0
        %4171 = vmatprep.subr.mxu0 0.0
        %4172 = vmatpush1.msra.mxu0 0.0
        %4173 = vmatprep.subr.mxu0 0.0
        %4174 = vmatpush1.msra.mxu0 0.0
        %4175 = vmatprep.subr.mxu0 0.0
        %4176 = vmatpush1.msra.mxu0 0.0
        %4177 = vmatprep.subr.mxu0 0.0
        %4178 = vmatpush1.msra.mxu0 0.0
        %4179 = vmatprep.subr.mxu0 0.0
        %4180 = vmatpush1.msra.mxu0 0.0
        %4181 = vmatprep.subr.mxu0 0.0
        %4182 = vmatpush1.msra.mxu0 0.0
        %4183 = vmatprep.subr.mxu0 0.0
        %4184 = vmatpush1.msra.mxu0 0.0
        %4185 = vmatprep.subr.mxu0 0.0
        %4186 = vmatpush1.msra.mxu0 0.0
        %4187 = vmatprep.subr.mxu0 0.0
        %4188 = vmatpush1.msra.mxu0 0.0
        %4189 = vmatprep.subr.mxu0 0.0
        %4190 = vmatpush1.msra.mxu0 0.0
        %4191 = vmatprep.subr.mxu0 0.0
        %4192 = vmatpush1.msra.mxu0 0.0
        %4193 = vmatprep.subr.mxu0 0.0
        %4194 = vmatpush1.msra.mxu0 0.0
        %4195 = vmatprep.subr.mxu0 0.0
        %4196 = vmatpush1.msra.mxu0 0.0
        %4197 = vmatprep.subr.mxu0 0.0
        %4198 = vmatpush1.msra.mxu0 0.0
        %4199 = vmatprep.subr.mxu0 0.0
        %4200 = vmatpush1.msra.mxu0 0.0
        %4201 = vmatprep.subr.mxu0 0.0
        %4202 = vmatpush1.msra.mxu0 0.0
        %4203 = vmatprep.subr.mxu0 0.0
        %4204 = vmatpush1.msra.mxu0 0.0
        %4205 = vmatprep.subr.mxu0 0.0
        %4206 = vmatpush1.msra.mxu0 0.0
        %4207 = vmatprep.subr.mxu0 0.0
        %4208 = vmatpush1.msra.mxu0 0.0
        %4209 = vmatprep.mubr.f32.mxu0 0.0
        %4210 = vmatmul.mubr.f32.gmra.mrb[0].mxu0 %v4141
        %v4211 = vpop.f32.mrb[0].mxu0
        %v4212 = vadd.f32 0.0, %v4211
        %v4213 = vpop.f32.mrb[0].mxu0
        %4214 = vdwg.mxu0
        %v4215 = vadd.f32 %v4069, %v4212
        %v4216 = vld [vmem:[%s1462] sm:$0xff]
        %v4217 = vld [vmem:[%s1462 + $0x8] sm:$0xff]
        %v4218 = vld [vmem:[%s1462 + $0x10] sm:$0xff]
        %v4219 = vld [vmem:[%s1462 + $0x18] sm:$0xff]
        %4221 = vset.pattern.permute.xlu0 0
        %4222 = vperm.xlu0 %4221, %v4216
        %v4223 = vpop.permute.xlu0 %4222
        %4226 = vset.pattern.permute.xlu0 0
        %4227 = vperm.xlu0 %4226, %v4217
        %v4228 = vpop.permute.xlu0 %4227
        %4231 = vset.pattern.permute.xlu0 0
        %4232 = vperm.xlu0 %4231, %v4218
        %v4233 = vpop.permute.xlu0 %4232
        %4236 = vset.pattern.permute.xlu0 0
        %4237 = vperm.xlu0 %4236, %v4219
        %v4238 = vpop.permute.xlu0 %4237
        %4240 = vrot.lane.b32.xlu0 %v3043, 90
        %v4241 = vpop.permute.xlu0 %4240
        %4242 = vrot.lane.b32.xlu0 %v3110, 90
        %v4243 = vpop.permute.xlu0 %4242
        %4244 = vrot.lane.b32.xlu0 %v3047, 90
        %v4245 = vpop.permute.xlu0 %4244
        %4246 = vrot.lane.b32.xlu0 %v3114, 90
        %v4247 = vpop.permute.xlu0 %4246
        %4248 = vrot.lane.b32.xlu0 %v3051, 90
        %v4249 = vpop.permute.xlu0 %4248
        %4250 = vrot.lane.b32.xlu0 %v3118, 90
        %v4251 = vpop.permute.xlu0 %4250
        %4252 = vrot.lane.b32.xlu0 %v3055, 90
        %v4253 = vpop.permute.xlu0 %4252
        %4254 = vrot.lane.b32.xlu0 %v3122, 90
        %v4255 = vpop.permute.xlu0 %4254
        %v4256 = vsel %vm1503, %v4241, %v4243
        %v4257 = vsel %vm1503, %v4245, %v4247
        %v4258 = vsel %vm1503, %v4249, %v4251
        %v4259 = vsel %vm1503, %v4253, %v4255
        %v4264 = vsel %vm3039, %v4256, %v4223
        %v4265 = vsel %vm3039, %v4257, %v4228
        %v4266 = vsel %vm3039, %v4258, %v4233
        %v4267 = vsel %vm3039, %v4259, %v4238
        %v4268 = vsel %vm3039, %v4223, %v4256
        %v4269 = vsel %vm3039, %v4228, %v4257
        %v4270 = vsel %vm3039, %v4233, %v4258
        %v4271 = vsel %vm3039, %v4238, %v4259
        %v4272 = vadd.f32 %v4130, %v4264
        %v4273 = vadd.f32 %v4131, %v4265
        %v4274 = vadd.f32 %v4132, %v4266
        %v4275 = vadd.f32 %v4133, %v4267
        %v4276 = vmul.f32 %v4272, %v4268
        %v4277 = vmul.f32 %v4273, %v4269
        %v4278 = vmul.f32 %v4274, %v4270
        %v4279 = vmul.f32 %v4275, %v4271
        %v4280 = vld [vmem:[%s1528] sm:$0xff]
        %4281 = vrot.lane.b32.xlu0 %v3004, 90
        %v4282 = vpop.permute.xlu0 %4281
        %4283 = vrot.lane.b32.xlu0 %v3184, 90
        %v4284 = vpop.permute.xlu0 %4283
        %v4285 = vsel %vm1503, %v4282, %v4284
        %v4287 = vsel %vm416, %v4280, 0
        %v4289 = vsel %vm420, %v4285, 0
        %4291 = vmatprep.subr.mxu0 0.0
        %4292 = vmatpush1.msra.mxu0 %v4289
        %4293 = vmatprep.subr.mxu0 0.0
        %4294 = vmatpush1.msra.mxu0 0.0
        %4295 = vmatprep.subr.mxu0 0.0
        %4296 = vmatpush1.msra.mxu0 0.0
        %4297 = vmatprep.subr.mxu0 0.0
        %4298 = vmatpush1.msra.mxu0 0.0
        %4299 = vmatprep.subr.mxu0 0.0
        %4300 = vmatpush1.msra.mxu0 0.0
        %4301 = vmatprep.subr.mxu0 0.0
        %4302 = vmatpush1.msra.mxu0 0.0
        %4303 = vmatprep.subr.mxu0 0.0
        %4304 = vmatpush1.msra.mxu0 0.0
        %4305 = vmatprep.subr.mxu0 0.0
        %4306 = vmatpush1.msra.mxu0 0.0
        %4307 = vmatprep.subr.mxu0 0.0
        %4308 = vmatpush1.msra.mxu0 0.0
        %4309 = vmatprep.subr.mxu0 0.0
        %4310 = vmatpush1.msra.mxu0 0.0
        %4311 = vmatprep.subr.mxu0 0.0
        %4312 = vmatpush1.msra.mxu0 0.0
        %4313 = vmatprep.subr.mxu0 0.0
        %4314 = vmatpush1.msra.mxu0 0.0
        %4315 = vmatprep.subr.mxu0 0.0
        %4316 = vmatpush1.msra.mxu0 0.0
        %4317 = vmatprep.subr.mxu0 0.0
        %4318 = vmatpush1.msra.mxu0 0.0
        %4319 = vmatprep.subr.mxu0 0.0
        %4320 = vmatpush1.msra.mxu0 0.0
        %4321 = vmatprep.subr.mxu0 0.0
        %4322 = vmatpush1.msra.mxu0 0.0
        %4323 = vmatprep.subr.mxu0 0.0
        %4324 = vmatpush1.msra.mxu0 0.0
        %4325 = vmatprep.subr.mxu0 0.0
        %4326 = vmatpush1.msra.mxu0 0.0
        %4327 = vmatprep.subr.mxu0 0.0
        %4328 = vmatpush1.msra.mxu0 0.0
        %4329 = vmatprep.subr.mxu0 0.0
        %4330 = vmatpush1.msra.mxu0 0.0
        %4331 = vmatprep.subr.mxu0 0.0
        %4332 = vmatpush1.msra.mxu0 0.0
        %4333 = vmatprep.subr.mxu0 0.0
        %4334 = vmatpush1.msra.mxu0 0.0
        %4335 = vmatprep.subr.mxu0 0.0
        %4336 = vmatpush1.msra.mxu0 0.0
        %4337 = vmatprep.subr.mxu0 0.0
        %4338 = vmatpush1.msra.mxu0 0.0
        %4339 = vmatprep.subr.mxu0 0.0
        %4340 = vmatpush1.msra.mxu0 0.0
        %4341 = vmatprep.subr.mxu0 0.0
        %4342 = vmatpush1.msra.mxu0 0.0
        %4343 = vmatprep.subr.mxu0 0.0
        %4344 = vmatpush1.msra.mxu0 0.0
        %4345 = vmatprep.subr.mxu0 0.0
        %4346 = vmatpush1.msra.mxu0 0.0
        %4347 = vmatprep.subr.mxu0 0.0
        %4348 = vmatpush1.msra.mxu0 0.0
        %4349 = vmatprep.subr.mxu0 0.0
        %4350 = vmatpush1.msra.mxu0 0.0
        %4351 = vmatprep.subr.mxu0 0.0
        %4352 = vmatpush1.msra.mxu0 0.0
        %4353 = vmatprep.subr.mxu0 0.0
        %4354 = vmatpush1.msra.mxu0 0.0
        %4355 = vmatprep.mubr.f32.mxu0 0.0
        %4356 = vmatmul.mubr.f32.gmra.mrb[0].mxu0 %v4287
        %v4357 = vpop.f32.mrb[0].mxu0
        %v4358 = vadd.f32 0.0, %v4357
        %v4359 = vpop.f32.mrb[0].mxu0
        %4360 = vdwg.mxu0
        %v4361 = vadd.f32 %v4215, %v4358
        %v4362 = vadd.f32 %v4276, %v4277
        %v4363 = vadd.f32 %v4362, %v4278
        %v4364 = vadd.f32 %v4363, %v4279
        %v4365 = vxor.u32 %v4364, 2147483648
        %v4366 = vmul.f32 %v4365, 1.442695
        %v4367 = vpow.pop %v4366
        %v4368 = vadd.f32 %v4367, 1.0
        %v4369 = vrcp.pop %v4368
        %v4370 = vmul.f32 1.0, %v4369
        %v4371 = vadd.f32 %v4361, %v1623
        %v4372 = vmul.f32 %v4370, %v4371
        %4373 = vst [vmem:[%s217 + $0x10] sm:$0xff] %v4372
        %s4374 = sand.u32 %s137, 1
        %s4375 = scalar_lea.sflag [#allocation3], %s4374
        %s4376 = sand.u32 %s137, 1
        %s4377 = smul.addr %s4376, 24
        %s4378 = scalar_lea.vmem [#allocation2], %s4377
        // Predicated region
        $region41: #{tpu_custom_call.1} parent=39 // pred_check
          %p4379 = pneg %p147
        $region42: #{tpu_custom_call.1} parent=39 // pred_check_branch
          %4381 = sbr.rel (%p4379) target = $region44
        $region43: #{tpu_custom_call.1} parent=39 // pred_region
          %s4383 = ssub.s32 384, 384
          %4384 = vsyncadd %s4375, %s4383
          %s4385 = smul.addr %s19, 3
          %s4386 = smul.addr %s4385, 128
          %s4387 = scalar_lea.hbm %s5, %s4386
          %s4389 = sshll.u32 %s4378, 4
          %s4390 = int_to_ptr.vmem [resolvable:$true] %s4389
          %4392 = dma.vmem_to_hbm [thread:$0]  %s4390, 384, %s4387, %s4375
        $region44: #{tpu_custom_call.1} parent=39 // pred_fallthru
          _
      $region40: #{tpu_custom_call.1} parent=5 // pred_fallthru
        _
      %p4393 = scmp.le.s32.totalorder 2, %s14
      // Predicated region
      $region45: #{tpu_custom_call.1} parent=5 // pred_check
        %p4394 = pneg %p4393
      $region46: #{tpu_custom_call.1} parent=5 // pred_check_branch
        %4396 = sbr.rel (%p4394) target = $region48
      $region47: #{tpu_custom_call.1} parent=5 // pred_region
        %s4397 = ssub.s32 %s14, 2
        // Predicated region
        $region49: #{tpu_custom_call.1} parent=47 // pred_check
          %p4398 = pneg %p153
        $region50: #{tpu_custom_call.1} parent=47 // pred_check_branch
          %4400 = sbr.rel (%p4398) target = $region52
        $region51: #{tpu_custom_call.1} parent=47 // pred_region
          %s4401 = sand.u32 %s138, 1
          %s4402 = scalar_lea.sflag [#allocation3], %s4401
          %s4403 = sand.u32 %s138, 1
          %s4404 = smul.addr %s4403, 24
          %s4405 = scalar_lea.vmem [#allocation2], %s4404
          %4406 = dma.done %s4402, 384
        $region52: #{tpu_custom_call.1} parent=47 // pred_fallthru
          _
      $region48: #{tpu_custom_call.1} parent=5 // pred_fallthru
        _
    $region6: #{tpu_custom_call.1} parent=1 // loop_footer
      %s18 = sadd.s32 1, %s14
    $region7: #{tpu_custom_call.1} parent=1 // loop_footer_branch
      %13 = sbr.rel target = $region3
    $region8: #{tpu_custom_call.1} parent=1 // loop_exit
      _
    %4407 = vsyncpa [#allocation3], 1
    %s4408 = scalar_lea.sflag [#allocation3], 1
    %4409 = vsyncpa %s4408, 1

</llo_original>
